<compile_context>
chip_gen: v7x
topology: tpu7x:2x2x1
jax: 0.10.0
libtpu: 0.0.40
codegen_flags: <defaults>
</compile_context>

<pallas_src>
import numpy as np

import jax
import jax.numpy as jnp
from jax import lax
from jax.experimental import pallas as pl
from jax.experimental.pallas import tpu as pltpu


# ----------------------------- config ---------------------------------------
CONFIG = {
    "sleep_epoch_len": 4,
    "preprocess": {"sequence_epochs": 8},
    "train": {
        "filters": [8, 8, 8, 8, 8],
        "kernel_size": 3,
        "pooling_sizes": [2, 1, 1, 1],
        "dilation_sizes": [1, 2],
        "activation": "relu",
        "u_depths": [1, 1, 1, 1],
        "u_inner_filter": 8,
        "mse_filters": [8, 8, 8, 8, 8],
    },
}
# NOTE: the PyTorch forward as written (pooling inside UEncoder *and* again in the
# forward, skip concatenation, MSE re-using in_channels) only shape-checks when
# pooling_sizes[1:] == 1, filters == mse_filters and kernel_size is odd; this config
# satisfies every such constraint.


# ------------------- host-side weight init & folding ------------------------
def _init_raw_conv(key, cin, cout, kh, kw):
    kkey, bkey = jax.random.split(key)
    fan_in = cin * kh * kw
    w = jax.random.normal(kkey, (kh, kw, cin, cout), jnp.float32) / np.sqrt(fan_in)
    b = 0.01 * jax.random.normal(bkey, (cout,), jnp.float32)
    return np.asarray(w), np.asarray(b)


def _fold_conv_taps(w, b, width, dil_w, pad_w):
    """Fold kw taps + W 'same' padding, then stack the kh H-taps along rows.

    Returns (kh*cin*width, cout*width) weight and (1, cout*width) bias.  Lane index
    is channel-major (lane = c*width + w), so a channel concat of two tensors is a
    plain lane concat of the folded activations."""
    kh, kw, cin, cout = w.shape
    K = cin * width
    wf = np.zeros((kh, K, cout * width), np.float32)
    for i in range(kh):
        for j in range(kw):
            shift = j * dil_w - pad_w
            for wo in range(width):
                wi = wo + shift
                if 0 <= wi < width:
                    wf[i, wi::width, wo::width] += w[i, j]
    wfold = wf.reshape(kh * K, cout * width)
    bf = np.repeat(b, width)[None, :].astype(np.float32)
    return wfold, bf


def build_params(key, cfg):
    """Flat, forward-ordered list of (tap-stacked folded weight, folded bias)."""
    t = cfg["train"]
    f, mf, k = t["filters"], t["mse_filters"], t["kernel_size"]
    mid, dep, dil = t["u_inner_filter"], t["u_depths"], t["dilation_sizes"]
    E = cfg["sleep_epoch_len"]
    pk = (k - 1) // 2
    ki = iter(jax.random.split(key, 64))
    flat = []

    def add_conv(cin, cout, kh, kw, width, dil_w, pad_w):
        w, b = _init_raw_conv(next(ki), cin, cout, kh, kw)
        flat.append(_fold_conv_taps(w, b, width, dil_w, pad_w))

    def add_uencoder(cin, cout, depth):
        c = cin
        for _ in range(depth):
            add_conv(c, mid, k, k, E, 1, pk)
            c = mid
        add_conv(c, cout, k, k, E, 1, pk)

    def add_mse(cin, cout):
        for d in dil:
            add_conv(cin, cout, k, k, E, d, d * pk)   # PyTorch MSE keeps in_channels

    add_uencoder(1, f[0], dep[0]);    add_mse(f[0], mf[0])
    add_uencoder(f[0], f[1], dep[1]); add_mse(f[1], mf[1])
    add_uencoder(f[1], f[2], dep[2]); add_mse(f[2], mf[2])
    add_uencoder(f[2], f[3], dep[3]); add_mse(f[3], mf[3])
    add_uencoder(f[3], f[4], dep[3]); add_mse(f[4], mf[4])
    add_uencoder(f[3] * 2, f[3], dep[3])
    add_uencoder(f[2] * 2, f[2], dep[2])
    add_uencoder(f[1] * 2, f[1], dep[1])
    add_uencoder(f[0] * 2, f[0], dep[0])
    add_conv(f[0], f[0], 1, 1, E, 1, 0)               # reshape_conv (1x1)
    add_conv(f[0], 5, k, 1, 1, 1, 0)                  # final_conv (k,1) at width==1
    return flat


# ------------------- height plan & selection-matrix constants ----------------
def _forward_heights(cfg):
    t = cfg["train"]
    ps = t["pooling_sizes"]
    L = cfg["preprocess"]["sequence_epochs"]
    E = cfg["sleep_epoch_len"]
    H0 = L * E
    pools, ups = set(), set()

    def pool(H, p):
        if p > 1:
            pools.add((H, p))
        return H // p

    def up(H, s):
        if s > 1:
            ups.add((H, s))
        return H * s

    h1 = pool(H0, ps[0]); hp1 = pool(h1, ps[0])
    h2 = pool(hp1, ps[1]); hp2 = pool(h2, ps[1])
    h3 = pool(hp2, ps[2]); hp3 = pool(h3, ps[2])
    h4 = pool(hp3, ps[3]); hp4 = pool(h4, ps[3])
    h5 = pool(hp4, ps[3])
    hu4 = up(h5, ps[3]); hd4 = pool(hu4, ps[3])
    hu3 = up(hd4, ps[2]); hd3 = pool(hu3, ps[2])
    hu2 = up(hd3, ps[1]); hd2 = pool(hu2, ps[1])
    hu1 = up(hd2, ps[0]); hd1 = pool(hu1, ps[0])
    padh = H0 // 2
    return dict(H0=H0, hd1=hd1, padh=padh, Hout=hd1 + 2 * padh,
                pools=pools, ups=ups)


def _selection_consts(cfg, nb):
    """Block-diagonal (over nb folded batch elements) 0/1 selection matrices for
    maxpool / nearest-upsample / ZeroPad2d plus the 1/E avg-pool lane fold."""
    t = cfg["train"]
    E = cfg["sleep_epoch_len"]
    f = t["filters"]
    hs = _forward_heights(cfg)
    consts = {}

    for (H, p) in sorted(hs["pools"]):
        Ho = H // p
        for phase in range(p):
            m = np.zeros((nb * Ho, nb * H), np.float32)
            for bb in range(nb):
                for o in range(Ho):
                    m[bb * Ho + o, bb * H + o * p + phase] = 1.0
            consts[f"mp{H}_{p}_{phase}"] = m

    for (H, s) in sorted(hs["ups"]):
        m = np.zeros((nb * H * s, nb * H), np.float32)
        for bb in range(nb):
            for r in range(H * s):
                m[bb * H * s + r, bb * H + r // s] = 1.0
        consts[f"up{H}_{s}"] = m

    hd1, padh = hs["hd1"], hs["padh"]
    Ho = hd1 + 2 * padh
    m = np.zeros((nb * Ho, nb * hd1), np.float32)
    for bb in range(nb):
        for h in range(hd1):
            m[bb * Ho + padh + h, bb * hd1 + h] = 1.0
    consts["zp"] = m

    c0 = f[0]
    a = np.zeros((c0 * E, c0), np.float32)
    for c in range(c0):
        a[c * E:(c + 1) * E, c] = 1.0 / E
    consts["avg"] = a
    return consts


def pack_blob(cfg, flat_params, nb):
    """Pack all weights, biases and selection constants into one (R, 128) blob."""
    entries = []
    n = len(flat_params)
    for i, (w, b) in enumerate(flat_params):
        if i == n - 1:
            # final conv: pad to 128 lanes; pad-lane bias = -1e30 so the padded
            # softmax lanes come out exactly 0 -> lane-dense unmasked output store.
            wpad = np.zeros((w.shape[0], 128), np.float32); wpad[:, :w.shape[1]] = w
            bpad = np.full((1, 128), -1e30, np.float32);    bpad[:, :b.shape[1]] = b
            w, b = wpad, bpad
        entries.append((f"w{i}", w))
        entries.append((f"b{i}", b))
    for name, arr in _selection_consts(cfg, nb).items():
        entries.append((name, arr))

    meta = {}
    off = 0
    for name, arr in entries:
        r, c = arr.shape
        assert c <= 128 and r >= 1
        meta[name] = (off, r, c)
        off += ((r + 7) // 8) * 8               # sublane-aligned start per entry
    blob = np.zeros((max(off, 8), 128), np.float32)
    for name, arr in entries:
        o, r, c = meta[name]
        blob[o:o + r, :c] = arr
    return jnp.asarray(blob), meta


# ----------------------------- fused kernel ---------------------------------
def _make_kernel(cfg, meta, nb):
    t = cfg["train"]
    k, act = t["kernel_size"], t["activation"]
    ps, dil, dep = t["pooling_sizes"], t["dilation_sizes"], t["u_depths"]
    hs = _forward_heights(cfg)
    H0, padh = hs["H0"], hs["padh"]

    def kernel(x_ref, blob_ref, o_ref):
        loaded = {}
        mask_cache = {}
        conv_idx = [0]

        def get(name):
            if name not in loaded:
                off, rows, cols = meta[name]
                loaded[name] = blob_ref[off:off + rows, 0:cols]   # static slice load
            return loaded[name]

        def next_conv():
            i = conv_idx[0]
            conv_idx[0] += 1
            return get(f"w{i}"), get(f"b{i}")

        def mm(a, b):
            return jnp.dot(a, b, preferred_element_type=jnp.float32)

        def shift_mask(shape, h_local, delta):
            key = (shape, h_local, delta)
            if key not in mask_cache:
                r = lax.broadcasted_iota(jnp.int32, shape, 0)
                if nb > 1:
                    r = r % h_local                      # per-sample local row index
                mask_cache[key] = jnp.logical_and(r + delta >= 0, r + delta < h_local)
            return mask_cache[key]

        def shifted(a, delta, h_local):
            # s[r] = a[r + delta] within each per-sample block of h_local rows,
            # zero at the edges ('same' padding).  XLU roll + VPU select, no MXU.
            if delta == 0:
                return a
            rolled = pltpu.roll(a, shift=(-delta) % a.shape[0], axis=0)
            return jnp.where(shift_mask(a.shape, h_local, delta), rolled, 0.0)

        def conv(xs, kh, dh, act_name, h_local):
            """'same' conv along H on folded (nb*H, C*W) slabs: lane-concat the kh
            shifted taps (and the skip slabs) and issue ONE MXU matmul."""
            w, b = next_conv()
            a = xs[0] if len(xs) == 1 else jnp.concatenate(xs, axis=1)
            if kh == 1:
                xcat = a
            else:
                ph = dh * (kh - 1) // 2
                xcat = jnp.concatenate(
                    [shifted(a, i * dh - ph, h_local) for i in range(kh)], axis=1)
            out = mm(xcat, w) + b
            if act_name == "relu":
                out = jnp.maximum(out, 0.0)
            elif act_name == "sigmoid":
                out = jnp.where(out >= 0.0,
                                1.0 / (1.0 + jnp.exp(-out)),
                                jnp.exp(out) / (1.0 + jnp.exp(out)))
            return out

        def maxpool(a, p, h_local):
            if p == 1:
                return a, h_local
            y = mm(get(f"mp{h_local}_{p}_0"), a)
            for phase in range(1, p):
                y = jnp.maximum(y, mm(get(f"mp{h_local}_{p}_{phase}"), a))
            return y, h_local // p

        def upsample(a, s, h_local):
            if s == 1:
                return a, h_local
            return mm(get(f"up{h_local}_{s}"), a), h_local * s

        def uencoder(xs, depth, pool, h_local):
            h = xs
            for _ in range(depth):
                h = [conv(h, k, 1, act, h_local)]
            y = conv(h, k, 1, "none", h_local)
            return maxpool(y, pool, h_local)

        def mse(a, h_local):
            for d in dil:
                a = conv([a], k, d, act, h_local)
            return a

        # TODO(synk): HLFAE is referenced by the PyTorch model but its definition is
        # not part of the provided module; it is treated as the identity here.
        x = x_ref[0]                                   # (nb*H0, Cin*W) with Cin == 1

        u1, h1 = uencoder([x], dep[0], ps[0], H0);    u1 = mse(u1, h1)
        p1, hp1 = maxpool(u1, ps[0], h1)
        u2, h2 = uencoder([p1], dep[1], ps[1], hp1);  u2 = mse(u2, h2)
        p2, hp2 = maxpool(u2, ps[1], h2)
        u3, h3 = uencoder([p2], dep[2], ps[2], hp2);  u3 = mse(u3, h3)
        p3, hp3 = maxpool(u3, ps[2], h3)
        u4, h4 = uencoder([p3], dep[3], ps[3], hp3);  u4 = mse(u4, h4)
        p4, hp4 = maxpool(u4, ps[3], h4)
        u5, h5 = uencoder([p4], dep[3], ps[3], hp4);  u5 = mse(u5, h5)

        up4, hu4 = upsample(u5, ps[3], h5)
        d4, hd4 = uencoder([up4, u4], dep[3], ps[3], hu4)
        up3, hu3 = upsample(d4, ps[2], hd4)
        d3, hd3 = uencoder([up3, u3], dep[2], ps[2], hu3)
        up2, hu2 = upsample(d3, ps[1], hd3)
        d2, hd2 = uencoder([up2, u2], dep[1], ps[1], hu2)
        up1, hu1 = upsample(d2, ps[0], hd2)
        d1, hd1 = uencoder([up1, u1], dep[0], ps[0], hu1)

        z = mm(get("zp"), d1)                          # ZeroPad2d along H (block-diag)
        hz = hd1 + 2 * padh
        r = conv([z], 1, 1, "none", hz)                # reshape_conv (1x1)
        pooled = mm(r, get("avg"))                     # avg_pool2d((1, E)) lane fold
        logits = conv([pooled], k, 1, "none", hz)      # final_conv; 128 lanes, pads -> -1e30
        m = jnp.max(logits, axis=-1, keepdims=True)
        e = jnp.exp(logits - m)
        sm = e / jnp.sum(e, axis=-1, keepdims=True)    # softmax over classes; pad lanes -> 0
        o_ref[0] = sm.astype(o_ref.dtype)

    return kernel


# ----------------------------- wrapper ---------------------------------------
def _pick_nb(batch):
    """Fold the batch onto sublanes on single-TensorCore chips (v5e/v6e); keep the
    batch on a 'parallel' grid axis on multi-TC chips (v7x), one element per core."""
    try:
        kind = jax.devices()[0].device_kind.lower()
    except Exception:
        kind = ""
    single_tc = any(s in kind for s in ("v5 lite", "v5e", "v5litepod", "v6 lite", "v6e"))
    return batch if single_tc else 1


def build_forward(cfg, flat_params, batch, nb=None):
    E = cfg["sleep_epoch_len"]
    hs = _forward_heights(cfg)
    H0, Hout = hs["H0"], hs["Hout"]
    if nb is None:
        nb = _pick_nb(batch)
    assert batch % nb == 0
    G = batch // nb
    n_lanes = 128

    blob, meta = pack_blob(cfg, flat_params, nb)
    kernel = _make_kernel(cfg, meta, nb)

    call = pl.pallas_call(
        kernel,
        out_shape=jax.ShapeDtypeStruct((G, nb * Hout, n_lanes), jnp.float32),
        grid=(G,),
        in_specs=[pl.BlockSpec((1, nb * H0, E), lambda g: (g, 0, 0)),
                  pl.BlockSpec(blob.shape, lambda g: (0, 0))],   # one packed blob, one DMA
        out_specs=pl.BlockSpec((1, nb * Hout, n_lanes), lambda g: (g, 0, 0)),
        compiler_params=pltpu.CompilerParams(
            dimension_semantics=("parallel",),        # v7x: one batch element per TC
            vmem_limit_bytes=32 * 1024 * 1024),
    )

    @jax.jit
    def forward(blob_arr, x_nchw):
        # x_nchw: (B, 1, L*E, E)  ->  fused layout (G, nb*H, C*W); input C == 1.
        x = x_nchw[:, 0, :, :].reshape(G, nb * H0, E)
        y = call(x, blob_arr)                          # (G, nb*Hout, 128), softmaxed
        y = y.reshape(batch, Hout, n_lanes)[:, :, :5]
        return jnp.transpose(y, (0, 2, 1))[:, :, :, None]   # NCHW (B, 5, Hout, 1)

    return forward, blob


# ----------------------------- main -------------------------------------------
if __name__ == "__main__":
    key = jax.random.PRNGKey(0)
    pkey, xkey = jax.random.split(key)
    params = build_params(pkey, CONFIG)

    B = 2
    E = CONFIG["sleep_epoch_len"]
    L = CONFIG["preprocess"]["sequence_epochs"]
    H0, W0 = L * E, E                                  # PyTorch input: (B, 1, L*E, E)
    x_nchw = jax.random.normal(xkey, (B, 1, H0, W0), jnp.float32)

    fwd, blob = build_forward(CONFIG, params, B)
    y = jax.block_until_ready(fwd(blob, x_nchw))

    p0 = CONFIG["train"]["pooling_sizes"][0]
    assert y.shape == (B, 5, H0 // (p0 * p0) + H0, 1), y.shape
    assert bool(jnp.all(jnp.isfinite(y)))
    assert bool(jnp.allclose(jnp.sum(y, axis=1), 1.0, atol=1e-4))
    print("KERNEL_OK")
</pallas_src>

<mosaic_0001>
module attributes {stable_mosaic.version = 11 : i64} {
  func.func @kernel(%arg0: i32, %arg1: memref<1x32x4xf32, #tpu.memory_space<vmem>>, %arg2: memref<3424x128xf32, #tpu.memory_space<vmem>>, %arg3: memref<1x40x128xf32, #tpu.memory_space<vmem>>) attributes {dimension_semantics = [#tpu.dimension_semantics<parallel>], iteration_bounds = array<i64: 2>, scalar_prefetch = 0 : i64, scratch_operands = 0 : i64, tpu.core_type = #tpu.core_type<tc>, window_params = [{transform_indices = @transform_0, window_bounds = array<i64: 1, 32, 4>}, {pipeline_mode = #tpu.pipeline_mode<synchronous>, transform_indices = @transform_1, window_bounds = array<i64: 3424, 128>}, {transform_indices = @transform_2, window_bounds = array<i64: 1, 40, 128>}]} {
    %c0 = arith.constant 0 : index
    %c0_0 = arith.constant 0 : index
    %c0_1 = arith.constant 0 : index
    %0 = vector.load %arg1[%c0, %c0_0, %c0_1] : memref<1x32x4xf32, #tpu.memory_space<vmem>>, vector<1x32x4xf32>
    %1 = vector.shape_cast %0 : vector<1x32x4xf32> to vector<32x4xf32>
    %c0_2 = arith.constant 0 : index
    %c0_3 = arith.constant 0 : index
    %2 = vector.load %arg2[%c0_2, %c0_3] : memref<3424x128xf32, #tpu.memory_space<vmem>>, vector<12x32xf32>
    %c16 = arith.constant 16 : index
    %c0_4 = arith.constant 0 : index
    %3 = vector.load %arg2[%c16, %c0_4] : memref<3424x128xf32, #tpu.memory_space<vmem>>, vector<1x32xf32>
    %c1_i32 = arith.constant 1 : i32
    %4 = tpu.dynamic_rotate %1 by %c1_i32 dim 0 : vector<32x4xf32>, i32 -> vector<32x4xf32>
    %5 = tpu.iota {dimensions = array<i32: 0>} : vector<32x4xi32>
    %c-1_i32 = arith.constant -1 : i32
    %6 = vector.broadcast %c-1_i32 : i32 to vector<32x4xi32>
    %7 = arith.addi %5, %6 : vector<32x4xi32>
    %c0_i32 = arith.constant 0 : i32
    %8 = vector.broadcast %c0_i32 : i32 to vector<32x4xi32>
    %9 = arith.cmpi sge, %7, %8 : vector<32x4xi32>
    %c-1_i32_5 = arith.constant -1 : i32
    %10 = vector.broadcast %c-1_i32_5 : i32 to vector<32x4xi32>
    %11 = arith.addi %5, %10 : vector<32x4xi32>
    %c32_i32 = arith.constant 32 : i32
    %12 = vector.broadcast %c32_i32 : i32 to vector<32x4xi32>
    %13 = arith.cmpi slt, %11, %12 : vector<32x4xi32>
    %14 = arith.andi %9, %13 : vector<32x4xi1>
    %cst = arith.constant 0.000000e+00 : f32
    %15 = vector.broadcast %cst : f32 to vector<32x4xf32>
    %16 = arith.select %14, %4, %15 : vector<32x4xi1>, vector<32x4xf32>
    %c31_i32 = arith.constant 31 : i32
    %17 = tpu.dynamic_rotate %1 by %c31_i32 dim 0 : vector<32x4xf32>, i32 -> vector<32x4xf32>
    %18 = tpu.iota {dimensions = array<i32: 0>} : vector<32x4xi32>
    %c1_i32_6 = arith.constant 1 : i32
    %19 = vector.broadcast %c1_i32_6 : i32 to vector<32x4xi32>
    %20 = arith.addi %18, %19 : vector<32x4xi32>
    %c0_i32_7 = arith.constant 0 : i32
    %21 = vector.broadcast %c0_i32_7 : i32 to vector<32x4xi32>
    %22 = arith.cmpi sge, %20, %21 : vector<32x4xi32>
    %c1_i32_8 = arith.constant 1 : i32
    %23 = vector.broadcast %c1_i32_8 : i32 to vector<32x4xi32>
    %24 = arith.addi %18, %23 : vector<32x4xi32>
    %c32_i32_9 = arith.constant 32 : i32
    %25 = vector.broadcast %c32_i32_9 : i32 to vector<32x4xi32>
    %26 = arith.cmpi slt, %24, %25 : vector<32x4xi32>
    %27 = arith.andi %22, %26 : vector<32x4xi1>
    %cst_10 = arith.constant 0.000000e+00 : f32
    %28 = vector.broadcast %cst_10 : f32 to vector<32x4xf32>
    %29 = arith.select %27, %17, %28 : vector<32x4xi1>, vector<32x4xf32>
    %30 = tpu.concatenate %16, %1, %29 in 1 : vector<32x4xf32>, vector<32x4xf32>, vector<32x4xf32> -> vector<32x12xf32>
    %cst_11 = arith.constant dense<0.000000e+00> : vector<32x32xf32>
    %31 = tpu.matmul %30, %2, %cst_11 {dimension_numbers = #tpu.dot_dimension_numbers<[1], [0], [0], [1], [0, 0, 1, 1], [], []>} : vector<32x12xf32>, vector<12x32xf32>, vector<32x32xf32> -> vector<32x32xf32>
    %32 = vector.broadcast %3 : vector<1x32xf32> to vector<32x32xf32>
    %33 = arith.addf %31, %32 : vector<32x32xf32>
    %cst_12 = arith.constant 0.000000e+00 : f32
    %34 = vector.broadcast %cst_12 : f32 to vector<32x32xf32>
    %35 = arith.maximumf %33, %34 : vector<32x32xf32>
    %c24 = arith.constant 24 : index
    %c0_13 = arith.constant 0 : index
    %36 = vector.load %arg2[%c24, %c0_13] : memref<3424x128xf32, #tpu.memory_space<vmem>>, vector<96x32xf32>
    %c120 = arith.constant 120 : index
    %c0_14 = arith.constant 0 : index
    %37 = vector.load %arg2[%c120, %c0_14] : memref<3424x128xf32, #tpu.memory_space<vmem>>, vector<1x32xf32>
    %c1_i32_15 = arith.constant 1 : i32
    %38 = tpu.dynamic_rotate %35 by %c1_i32_15 dim 0 : vector<32x32xf32>, i32 -> vector<32x32xf32>
    %39 = tpu.iota {dimensions = array<i32: 0>} : vector<32x32xi32>
    %c-1_i32_16 = arith.constant -1 : i32
    %40 = vector.broadcast %c-1_i32_16 : i32 to vector<32x32xi32>
    %41 = arith.addi %39, %40 : vector<32x32xi32>
    %c0_i32_17 = arith.constant 0 : i32
    %42 = vector.broadcast %c0_i32_17 : i32 to vector<32x32xi32>
    %43 = arith.cmpi sge, %41, %42 : vector<32x32xi32>
    %c-1_i32_18 = arith.constant -1 : i32
    %44 = vector.broadcast %c-1_i32_18 : i32 to vector<32x32xi32>
    %45 = arith.addi %39, %44 : vector<32x32xi32>
    %c32_i32_19 = arith.constant 32 : i32
    %46 = vector.broadcast %c32_i32_19 : i32 to vector<32x32xi32>
    %47 = arith.cmpi slt, %45, %46 : vector<32x32xi32>
    %48 = arith.andi %43, %47 : vector<32x32xi1>
    %cst_20 = arith.constant 0.000000e+00 : f32
    %49 = vector.broadcast %cst_20 : f32 to vector<32x32xf32>
    %50 = arith.select %48, %38, %49 : vector<32x32xi1>, vector<32x32xf32>
    %c31_i32_21 = arith.constant 31 : i32
    %51 = tpu.dynamic_rotate %35 by %c31_i32_21 dim 0 : vector<32x32xf32>, i32 -> vector<32x32xf32>
    %52 = tpu.iota {dimensions = array<i32: 0>} : vector<32x32xi32>
    %c1_i32_22 = arith.constant 1 : i32
    %53 = vector.broadcast %c1_i32_22 : i32 to vector<32x32xi32>
    %54 = arith.addi %52, %53 : vector<32x32xi32>
    %c0_i32_23 = arith.constant 0 : i32
    %55 = vector.broadcast %c0_i32_23 : i32 to vector<32x32xi32>
    %56 = arith.cmpi sge, %54, %55 : vector<32x32xi32>
    %c1_i32_24 = arith.constant 1 : i32
    %57 = vector.broadcast %c1_i32_24 : i32 to vector<32x32xi32>
    %58 = arith.addi %52, %57 : vector<32x32xi32>
    %c32_i32_25 = arith.constant 32 : i32
    %59 = vector.broadcast %c32_i32_25 : i32 to vector<32x32xi32>
    %60 = arith.cmpi slt, %58, %59 : vector<32x32xi32>
    %61 = arith.andi %56, %60 : vector<32x32xi1>
    %cst_26 = arith.constant 0.000000e+00 : f32
    %62 = vector.broadcast %cst_26 : f32 to vector<32x32xf32>
    %63 = arith.select %61, %51, %62 : vector<32x32xi1>, vector<32x32xf32>
    %64 = tpu.concatenate %50, %35, %63 in 1 : vector<32x32xf32>, vector<32x32xf32>, vector<32x32xf32> -> vector<32x96xf32>
    %cst_27 = arith.constant dense<0.000000e+00> : vector<32x32xf32>
    %65 = tpu.matmul %64, %36, %cst_27 {dimension_numbers = #tpu.dot_dimension_numbers<[1], [0], [0], [1], [0, 0, 1, 1], [], []>} : vector<32x96xf32>, vector<96x32xf32>, vector<32x32xf32> -> vector<32x32xf32>
    %66 = vector.broadcast %37 : vector<1x32xf32> to vector<32x32xf32>
    %67 = arith.addf %65, %66 : vector<32x32xf32>
    %c3304 = arith.constant 3304 : index
    %c0_28 = arith.constant 0 : index
    %68 = vector.load %arg2[%c3304, %c0_28] : memref<3424x128xf32, #tpu.memory_space<vmem>>, vector<16x32xf32>
    %cst_29 = arith.constant dense<0.000000e+00> : vector<16x32xf32>
    %69 = tpu.matmul %68, %67, %cst_29 {dimension_numbers = #tpu.dot_dimension_numbers<[1], [0], [0], [1], [0, 0, 1, 1], [], []>} : vector<16x32xf32>, vector<32x32xf32>, vector<16x32xf32> -> vector<16x32xf32>
    %c3320 = arith.constant 3320 : index
    %c0_30 = arith.constant 0 : index
    %70 = vector.load %arg2[%c3320, %c0_30] : memref<3424x128xf32, #tpu.memory_space<vmem>>, vector<16x32xf32>
    %cst_31 = arith.constant dense<0.000000e+00> : vector<16x32xf32>
    %71 = tpu.matmul %70, %67, %cst_31 {dimension_numbers = #tpu.dot_dimension_numbers<[1], [0], [0], [1], [0, 0, 1, 1], [], []>} : vector<16x32xf32>, vector<32x32xf32>, vector<16x32xf32> -> vector<16x32xf32>
    %72 = arith.maximumf %69, %71 : vector<16x32xf32>
    %c128 = arith.constant 128 : index
    %c0_32 = arith.constant 0 : index
    %73 = vector.load %arg2[%c128, %c0_32] : memref<3424x128xf32, #tpu.memory_space<vmem>>, vector<96x32xf32>
    %c224 = arith.constant 224 : index
    %c0_33 = arith.constant 0 : index
    %74 = vector.load %arg2[%c224, %c0_33] : memref<3424x128xf32, #tpu.memory_space<vmem>>, vector<1x32xf32>
    %c1_i32_34 = arith.constant 1 : i32
    %75 = tpu.dynamic_rotate %72 by %c1_i32_34 dim 0 : vector<16x32xf32>, i32 -> vector<16x32xf32>
    %76 = tpu.iota {dimensions = array<i32: 0>} : vector<16x32xi32>
    %c-1_i32_35 = arith.constant -1 : i32
    %77 = vector.broadcast %c-1_i32_35 : i32 to vector<16x32xi32>
    %78 = arith.addi %76, %77 : vector<16x32xi32>
    %c0_i32_36 = arith.constant 0 : i32
    %79 = vector.broadcast %c0_i32_36 : i32 to vector<16x32xi32>
    %80 = arith.cmpi sge, %78, %79 : vector<16x32xi32>
    %c-1_i32_37 = arith.constant -1 : i32
    %81 = vector.broadcast %c-1_i32_37 : i32 to vector<16x32xi32>
    %82 = arith.addi %76, %81 : vector<16x32xi32>
    %c16_i32 = arith.constant 16 : i32
    %83 = vector.broadcast %c16_i32 : i32 to vector<16x32xi32>
    %84 = arith.cmpi slt, %82, %83 : vector<16x32xi32>
    %85 = arith.andi %80, %84 : vector<16x32xi1>
    %cst_38 = arith.constant 0.000000e+00 : f32
    %86 = vector.broadcast %cst_38 : f32 to vector<16x32xf32>
    %87 = arith.select %85, %75, %86 : vector<16x32xi1>, vector<16x32xf32>
    %c15_i32 = arith.constant 15 : i32
    %88 = tpu.dynamic_rotate %72 by %c15_i32 dim 0 : vector<16x32xf32>, i32 -> vector<16x32xf32>
    %89 = tpu.iota {dimensions = array<i32: 0>} : vector<16x32xi32>
    %c1_i32_39 = arith.constant 1 : i32
    %90 = vector.broadcast %c1_i32_39 : i32 to vector<16x32xi32>
    %91 = arith.addi %89, %90 : vector<16x32xi32>
    %c0_i32_40 = arith.constant 0 : i32
    %92 = vector.broadcast %c0_i32_40 : i32 to vector<16x32xi32>
    %93 = arith.cmpi sge, %91, %92 : vector<16x32xi32>
    %c1_i32_41 = arith.constant 1 : i32
    %94 = vector.broadcast %c1_i32_41 : i32 to vector<16x32xi32>
    %95 = arith.addi %89, %94 : vector<16x32xi32>
    %c16_i32_42 = arith.constant 16 : i32
    %96 = vector.broadcast %c16_i32_42 : i32 to vector<16x32xi32>
    %97 = arith.cmpi slt, %95, %96 : vector<16x32xi32>
    %98 = arith.andi %93, %97 : vector<16x32xi1>
    %cst_43 = arith.constant 0.000000e+00 : f32
    %99 = vector.broadcast %cst_43 : f32 to vector<16x32xf32>
    %100 = arith.select %98, %88, %99 : vector<16x32xi1>, vector<16x32xf32>
    %101 = tpu.concatenate %87, %72, %100 in 1 : vector<16x32xf32>, vector<16x32xf32>, vector<16x32xf32> -> vector<16x96xf32>
    %cst_44 = arith.constant dense<0.000000e+00> : vector<16x32xf32>
    %102 = tpu.matmul %101, %73, %cst_44 {dimension_numbers = #tpu.dot_dimension_numbers<[1], [0], [0], [1], [0, 0, 1, 1], [], []>} : vector<16x96xf32>, vector<96x32xf32>, vector<16x32xf32> -> vector<16x32xf32>
    %103 = vector.broadcast %74 : vector<1x32xf32> to vector<16x32xf32>
    %104 = arith.addf %102, %103 : vector<16x32xf32>
    %cst_45 = arith.constant 0.000000e+00 : f32
    %105 = vector.broadcast %cst_45 : f32 to vector<16x32xf32>
    %106 = arith.maximumf %104, %105 : vector<16x32xf32>
    %c232 = arith.constant 232 : index
    %c0_46 = arith.constant 0 : index
    %107 = vector.load %arg2[%c232, %c0_46] : memref<3424x128xf32, #tpu.memory_space<vmem>>, vector<96x32xf32>
    %c328 = arith.constant 328 : index
    %c0_47 = arith.constant 0 : index
    %108 = vector.load %arg2[%c328, %c0_47] : memref<3424x128xf32, #tpu.memory_space<vmem>>, vector<1x32xf32>
    %c2_i32 = arith.constant 2 : i32
    %109 = tpu.dynamic_rotate %106 by %c2_i32 dim 0 : vector<16x32xf32>, i32 -> vector<16x32xf32>
    %110 = tpu.iota {dimensions = array<i32: 0>} : vector<16x32xi32>
    %c-2_i32 = arith.constant -2 : i32
    %111 = vector.broadcast %c-2_i32 : i32 to vector<16x32xi32>
    %112 = arith.addi %110, %111 : vector<16x32xi32>
    %c0_i32_48 = arith.constant 0 : i32
    %113 = vector.broadcast %c0_i32_48 : i32 to vector<16x32xi32>
    %114 = arith.cmpi sge, %112, %113 : vector<16x32xi32>
    %c-2_i32_49 = arith.constant -2 : i32
    %115 = vector.broadcast %c-2_i32_49 : i32 to vector<16x32xi32>
    %116 = arith.addi %110, %115 : vector<16x32xi32>
    %c16_i32_50 = arith.constant 16 : i32
    %117 = vector.broadcast %c16_i32_50 : i32 to vector<16x32xi32>
    %118 = arith.cmpi slt, %116, %117 : vector<16x32xi32>
    %119 = arith.andi %114, %118 : vector<16x32xi1>
    %cst_51 = arith.constant 0.000000e+00 : f32
    %120 = vector.broadcast %cst_51 : f32 to vector<16x32xf32>
    %121 = arith.select %119, %109, %120 : vector<16x32xi1>, vector<16x32xf32>
    %c14_i32 = arith.constant 14 : i32
    %122 = tpu.dynamic_rotate %106 by %c14_i32 dim 0 : vector<16x32xf32>, i32 -> vector<16x32xf32>
    %123 = tpu.iota {dimensions = array<i32: 0>} : vector<16x32xi32>
    %c2_i32_52 = arith.constant 2 : i32
    %124 = vector.broadcast %c2_i32_52 : i32 to vector<16x32xi32>
    %125 = arith.addi %123, %124 : vector<16x32xi32>
    %c0_i32_53 = arith.constant 0 : i32
    %126 = vector.broadcast %c0_i32_53 : i32 to vector<16x32xi32>
    %127 = arith.cmpi sge, %125, %126 : vector<16x32xi32>
    %c2_i32_54 = arith.constant 2 : i32
    %128 = vector.broadcast %c2_i32_54 : i32 to vector<16x32xi32>
    %129 = arith.addi %123, %128 : vector<16x32xi32>
    %c16_i32_55 = arith.constant 16 : i32
    %130 = vector.broadcast %c16_i32_55 : i32 to vector<16x32xi32>
    %131 = arith.cmpi slt, %129, %130 : vector<16x32xi32>
    %132 = arith.andi %127, %131 : vector<16x32xi1>
    %cst_56 = arith.constant 0.000000e+00 : f32
    %133 = vector.broadcast %cst_56 : f32 to vector<16x32xf32>
    %134 = arith.select %132, %122, %133 : vector<16x32xi1>, vector<16x32xf32>
    %135 = tpu.concatenate %121, %106, %134 in 1 : vector<16x32xf32>, vector<16x32xf32>, vector<16x32xf32> -> vector<16x96xf32>
    %cst_57 = arith.constant dense<0.000000e+00> : vector<16x32xf32>
    %136 = tpu.matmul %135, %107, %cst_57 {dimension_numbers = #tpu.dot_dimension_numbers<[1], [0], [0], [1], [0, 0, 1, 1], [], []>} : vector<16x96xf32>, vector<96x32xf32>, vector<16x32xf32> -> vector<16x32xf32>
    %137 = vector.broadcast %108 : vector<1x32xf32> to vector<16x32xf32>
    %138 = arith.addf %136, %137 : vector<16x32xf32>
    %cst_58 = arith.constant 0.000000e+00 : f32
    %139 = vector.broadcast %cst_58 : f32 to vector<16x32xf32>
    %140 = arith.maximumf %138, %139 : vector<16x32xf32>
    %c3288 = arith.constant 3288 : index
    %c0_59 = arith.constant 0 : index
    %141 = vector.load %arg2[%c3288, %c0_59] : memref<3424x128xf32, #tpu.memory_space<vmem>>, vector<8x16xf32>
    %cst_60 = arith.constant dense<0.000000e+00> : vector<8x32xf32>
    %142 = tpu.matmul %141, %140, %cst_60 {dimension_numbers = #tpu.dot_dimension_numbers<[1], [0], [0], [1], [0, 0, 1, 1], [], []>} : vector<8x16xf32>, vector<16x32xf32>, vector<8x32xf32> -> vector<8x32xf32>
    %c3296 = arith.constant 3296 : index
    %c0_61 = arith.constant 0 : index
    %143 = vector.load %arg2[%c3296, %c0_61] : memref<3424x128xf32, #tpu.memory_space<vmem>>, vector<8x16xf32>
    %cst_62 = arith.constant dense<0.000000e+00> : vector<8x32xf32>
    %144 = tpu.matmul %143, %140, %cst_62 {dimension_numbers = #tpu.dot_dimension_numbers<[1], [0], [0], [1], [0, 0, 1, 1], [], []>} : vector<8x16xf32>, vector<16x32xf32>, vector<8x32xf32> -> vector<8x32xf32>
    %145 = arith.maximumf %142, %144 : vector<8x32xf32>
    %c336 = arith.constant 336 : index
    %c0_63 = arith.constant 0 : index
    %146 = vector.load %arg2[%c336, %c0_63] : memref<3424x128xf32, #tpu.memory_space<vmem>>, vector<96x32xf32>
    %c432 = arith.constant 432 : index
    %c0_64 = arith.constant 0 : index
    %147 = vector.load %arg2[%c432, %c0_64] : memref<3424x128xf32, #tpu.memory_space<vmem>>, vector<1x32xf32>
    %c1_i32_65 = arith.constant 1 : i32
    %148 = tpu.dynamic_rotate %145 by %c1_i32_65 dim 0 : vector<8x32xf32>, i32 -> vector<8x32xf32>
    %149 = tpu.iota {dimensions = array<i32: 0>} : vector<8x32xi32>
    %c-1_i32_66 = arith.constant -1 : i32
    %150 = vector.broadcast %c-1_i32_66 : i32 to vector<8x32xi32>
    %151 = arith.addi %149, %150 : vector<8x32xi32>
    %c0_i32_67 = arith.constant 0 : i32
    %152 = vector.broadcast %c0_i32_67 : i32 to vector<8x32xi32>
    %153 = arith.cmpi sge, %151, %152 : vector<8x32xi32>
    %c-1_i32_68 = arith.constant -1 : i32
    %154 = vector.broadcast %c-1_i32_68 : i32 to vector<8x32xi32>
    %155 = arith.addi %149, %154 : vector<8x32xi32>
    %c8_i32 = arith.constant 8 : i32
    %156 = vector.broadcast %c8_i32 : i32 to vector<8x32xi32>
    %157 = arith.cmpi slt, %155, %156 : vector<8x32xi32>
    %158 = arith.andi %153, %157 : vector<8x32xi1>
    %cst_69 = arith.constant 0.000000e+00 : f32
    %159 = vector.broadcast %cst_69 : f32 to vector<8x32xf32>
    %160 = arith.select %158, %148, %159 : vector<8x32xi1>, vector<8x32xf32>
    %c7_i32 = arith.constant 7 : i32
    %161 = tpu.dynamic_rotate %145 by %c7_i32 dim 0 : vector<8x32xf32>, i32 -> vector<8x32xf32>
    %162 = tpu.iota {dimensions = array<i32: 0>} : vector<8x32xi32>
    %c1_i32_70 = arith.constant 1 : i32
    %163 = vector.broadcast %c1_i32_70 : i32 to vector<8x32xi32>
    %164 = arith.addi %162, %163 : vector<8x32xi32>
    %c0_i32_71 = arith.constant 0 : i32
    %165 = vector.broadcast %c0_i32_71 : i32 to vector<8x32xi32>
    %166 = arith.cmpi sge, %164, %165 : vector<8x32xi32>
    %c1_i32_72 = arith.constant 1 : i32
    %167 = vector.broadcast %c1_i32_72 : i32 to vector<8x32xi32>
    %168 = arith.addi %162, %167 : vector<8x32xi32>
    %c8_i32_73 = arith.constant 8 : i32
    %169 = vector.broadcast %c8_i32_73 : i32 to vector<8x32xi32>
    %170 = arith.cmpi slt, %168, %169 : vector<8x32xi32>
    %171 = arith.andi %166, %170 : vector<8x32xi1>
    %cst_74 = arith.constant 0.000000e+00 : f32
    %172 = vector.broadcast %cst_74 : f32 to vector<8x32xf32>
    %173 = arith.select %171, %161, %172 : vector<8x32xi1>, vector<8x32xf32>
    %174 = tpu.concatenate %160, %145, %173 in 1 : vector<8x32xf32>, vector<8x32xf32>, vector<8x32xf32> -> vector<8x96xf32>
    %cst_75 = arith.constant dense<0.000000e+00> : vector<8x32xf32>
    %175 = tpu.matmul %174, %146, %cst_75 {dimension_numbers = #tpu.dot_dimension_numbers<[1], [0], [0], [1], [0, 0, 1, 1], [], []>} : vector<8x96xf32>, vector<96x32xf32>, vector<8x32xf32> -> vector<8x32xf32>
    %176 = vector.broadcast %147 : vector<1x32xf32> to vector<8x32xf32>
    %177 = arith.addf %175, %176 : vector<8x32xf32>
    %cst_76 = arith.constant 0.000000e+00 : f32
    %178 = vector.broadcast %cst_76 : f32 to vector<8x32xf32>
    %179 = arith.maximumf %177, %178 : vector<8x32xf32>
    %c440 = arith.constant 440 : index
    %c0_77 = arith.constant 0 : index
    %180 = vector.load %arg2[%c440, %c0_77] : memref<3424x128xf32, #tpu.memory_space<vmem>>, vector<96x32xf32>
    %c536 = arith.constant 536 : index
    %c0_78 = arith.constant 0 : index
    %181 = vector.load %arg2[%c536, %c0_78] : memref<3424x128xf32, #tpu.memory_space<vmem>>, vector<1x32xf32>
    %c1_i32_79 = arith.constant 1 : i32
    %182 = tpu.dynamic_rotate %179 by %c1_i32_79 dim 0 : vector<8x32xf32>, i32 -> vector<8x32xf32>
    %cst_80 = arith.constant 0.000000e+00 : f32
    %183 = vector.broadcast %cst_80 : f32 to vector<8x32xf32>
    %184 = arith.select %158, %182, %183 : vector<8x32xi1>, vector<8x32xf32>
    %c7_i32_81 = arith.constant 7 : i32
    %185 = tpu.dynamic_rotate %179 by %c7_i32_81 dim 0 : vector<8x32xf32>, i32 -> vector<8x32xf32>
    %cst_82 = arith.constant 0.000000e+00 : f32
    %186 = vector.broadcast %cst_82 : f32 to vector<8x32xf32>
    %187 = arith.select %171, %185, %186 : vector<8x32xi1>, vector<8x32xf32>
    %188 = tpu.concatenate %184, %179, %187 in 1 : vector<8x32xf32>, vector<8x32xf32>, vector<8x32xf32> -> vector<8x96xf32>
    %cst_83 = arith.constant dense<0.000000e+00> : vector<8x32xf32>
    %189 = tpu.matmul %188, %180, %cst_83 {dimension_numbers = #tpu.dot_dimension_numbers<[1], [0], [0], [1], [0, 0, 1, 1], [], []>} : vector<8x96xf32>, vector<96x32xf32>, vector<8x32xf32> -> vector<8x32xf32>
    %190 = vector.broadcast %181 : vector<1x32xf32> to vector<8x32xf32>
    %191 = arith.addf %189, %190 : vector<8x32xf32>
    %c544 = arith.constant 544 : index
    %c0_84 = arith.constant 0 : index
    %192 = vector.load %arg2[%c544, %c0_84] : memref<3424x128xf32, #tpu.memory_space<vmem>>, vector<96x32xf32>
    %c640 = arith.constant 640 : index
    %c0_85 = arith.constant 0 : index
    %193 = vector.load %arg2[%c640, %c0_85] : memref<3424x128xf32, #tpu.memory_space<vmem>>, vector<1x32xf32>
    %c1_i32_86 = arith.constant 1 : i32
    %194 = tpu.dynamic_rotate %191 by %c1_i32_86 dim 0 : vector<8x32xf32>, i32 -> vector<8x32xf32>
    %cst_87 = arith.constant 0.000000e+00 : f32
    %195 = vector.broadcast %cst_87 : f32 to vector<8x32xf32>
    %196 = arith.select %158, %194, %195 : vector<8x32xi1>, vector<8x32xf32>
    %c7_i32_88 = arith.constant 7 : i32
    %197 = tpu.dynamic_rotate %191 by %c7_i32_88 dim 0 : vector<8x32xf32>, i32 -> vector<8x32xf32>
    %cst_89 = arith.constant 0.000000e+00 : f32
    %198 = vector.broadcast %cst_89 : f32 to vector<8x32xf32>
    %199 = arith.select %171, %197, %198 : vector<8x32xi1>, vector<8x32xf32>
    %200 = tpu.concatenate %196, %191, %199 in 1 : vector<8x32xf32>, vector<8x32xf32>, vector<8x32xf32> -> vector<8x96xf32>
    %cst_90 = arith.constant dense<0.000000e+00> : vector<8x32xf32>
    %201 = tpu.matmul %200, %192, %cst_90 {dimension_numbers = #tpu.dot_dimension_numbers<[1], [0], [0], [1], [0, 0, 1, 1], [], []>} : vector<8x96xf32>, vector<96x32xf32>, vector<8x32xf32> -> vector<8x32xf32>
    %202 = vector.broadcast %193 : vector<1x32xf32> to vector<8x32xf32>
    %203 = arith.addf %201, %202 : vector<8x32xf32>
    %cst_91 = arith.constant 0.000000e+00 : f32
    %204 = vector.broadcast %cst_91 : f32 to vector<8x32xf32>
    %205 = arith.maximumf %203, %204 : vector<8x32xf32>
    %c648 = arith.constant 648 : index
    %c0_92 = arith.constant 0 : index
    %206 = vector.load %arg2[%c648, %c0_92] : memref<3424x128xf32, #tpu.memory_space<vmem>>, vector<96x32xf32>
    %c744 = arith.constant 744 : index
    %c0_93 = arith.constant 0 : index
    %207 = vector.load %arg2[%c744, %c0_93] : memref<3424x128xf32, #tpu.memory_space<vmem>>, vector<1x32xf32>
    %c2_i32_94 = arith.constant 2 : i32
    %208 = tpu.dynamic_rotate %205 by %c2_i32_94 dim 0 : vector<8x32xf32>, i32 -> vector<8x32xf32>
    %209 = tpu.iota {dimensions = array<i32: 0>} : vector<8x32xi32>
    %c-2_i32_95 = arith.constant -2 : i32
    %210 = vector.broadcast %c-2_i32_95 : i32 to vector<8x32xi32>
    %211 = arith.addi %209, %210 : vector<8x32xi32>
    %c0_i32_96 = arith.constant 0 : i32
    %212 = vector.broadcast %c0_i32_96 : i32 to vector<8x32xi32>
    %213 = arith.cmpi sge, %211, %212 : vector<8x32xi32>
    %c-2_i32_97 = arith.constant -2 : i32
    %214 = vector.broadcast %c-2_i32_97 : i32 to vector<8x32xi32>
    %215 = arith.addi %209, %214 : vector<8x32xi32>
    %c8_i32_98 = arith.constant 8 : i32
    %216 = vector.broadcast %c8_i32_98 : i32 to vector<8x32xi32>
    %217 = arith.cmpi slt, %215, %216 : vector<8x32xi32>
    %218 = arith.andi %213, %217 : vector<8x32xi1>
    %cst_99 = arith.constant 0.000000e+00 : f32
    %219 = vector.broadcast %cst_99 : f32 to vector<8x32xf32>
    %220 = arith.select %218, %208, %219 : vector<8x32xi1>, vector<8x32xf32>
    %c6_i32 = arith.constant 6 : i32
    %221 = tpu.dynamic_rotate %205 by %c6_i32 dim 0 : vector<8x32xf32>, i32 -> vector<8x32xf32>
    %222 = tpu.iota {dimensions = array<i32: 0>} : vector<8x32xi32>
    %c2_i32_100 = arith.constant 2 : i32
    %223 = vector.broadcast %c2_i32_100 : i32 to vector<8x32xi32>
    %224 = arith.addi %222, %223 : vector<8x32xi32>
    %c0_i32_101 = arith.constant 0 : i32
    %225 = vector.broadcast %c0_i32_101 : i32 to vector<8x32xi32>
    %226 = arith.cmpi sge, %224, %225 : vector<8x32xi32>
    %c2_i32_102 = arith.constant 2 : i32
    %227 = vector.broadcast %c2_i32_102 : i32 to vector<8x32xi32>
    %228 = arith.addi %222, %227 : vector<8x32xi32>
    %c8_i32_103 = arith.constant 8 : i32
    %229 = vector.broadcast %c8_i32_103 : i32 to vector<8x32xi32>
    %230 = arith.cmpi slt, %228, %229 : vector<8x32xi32>
    %231 = arith.andi %226, %230 : vector<8x32xi1>
    %cst_104 = arith.constant 0.000000e+00 : f32
    %232 = vector.broadcast %cst_104 : f32 to vector<8x32xf32>
    %233 = arith.select %231, %221, %232 : vector<8x32xi1>, vector<8x32xf32>
    %234 = tpu.concatenate %220, %205, %233 in 1 : vector<8x32xf32>, vector<8x32xf32>, vector<8x32xf32> -> vector<8x96xf32>
    %cst_105 = arith.constant dense<0.000000e+00> : vector<8x32xf32>
    %235 = tpu.matmul %234, %206, %cst_105 {dimension_numbers = #tpu.dot_dimension_numbers<[1], [0], [0], [1], [0, 0, 1, 1], [], []>} : vector<8x96xf32>, vector<96x32xf32>, vector<8x32xf32> -> vector<8x32xf32>
    %236 = vector.broadcast %207 : vector<1x32xf32> to vector<8x32xf32>
    %237 = arith.addf %235, %236 : vector<8x32xf32>
    %cst_106 = arith.constant 0.000000e+00 : f32
    %238 = vector.broadcast %cst_106 : f32 to vector<8x32xf32>
    %239 = arith.maximumf %237, %238 : vector<8x32xf32>
    %c752 = arith.constant 752 : index
    %c0_107 = arith.constant 0 : index
    %240 = vector.load %arg2[%c752, %c0_107] : memref<3424x128xf32, #tpu.memory_space<vmem>>, vector<96x32xf32>
    %c848 = arith.constant 848 : index
    %c0_108 = arith.constant 0 : index
    %241 = vector.load %arg2[%c848, %c0_108] : memref<3424x128xf32, #tpu.memory_space<vmem>>, vector<1x32xf32>
    %c1_i32_109 = arith.constant 1 : i32
    %242 = tpu.dynamic_rotate %239 by %c1_i32_109 dim 0 : vector<8x32xf32>, i32 -> vector<8x32xf32>
    %cst_110 = arith.constant 0.000000e+00 : f32
    %243 = vector.broadcast %cst_110 : f32 to vector<8x32xf32>
    %244 = arith.select %158, %242, %243 : vector<8x32xi1>, vector<8x32xf32>
    %c7_i32_111 = arith.constant 7 : i32
    %245 = tpu.dynamic_rotate %239 by %c7_i32_111 dim 0 : vector<8x32xf32>, i32 -> vector<8x32xf32>
    %cst_112 = arith.constant 0.000000e+00 : f32
    %246 = vector.broadcast %cst_112 : f32 to vector<8x32xf32>
    %247 = arith.select %171, %245, %246 : vector<8x32xi1>, vector<8x32xf32>
    %248 = tpu.concatenate %244, %239, %247 in 1 : vector<8x32xf32>, vector<8x32xf32>, vector<8x32xf32> -> vector<8x96xf32>
    %cst_113 = arith.constant dense<0.000000e+00> : vector<8x32xf32>
    %249 = tpu.matmul %248, %240, %cst_113 {dimension_numbers = #tpu.dot_dimension_numbers<[1], [0], [0], [1], [0, 0, 1, 1], [], []>} : vector<8x96xf32>, vector<96x32xf32>, vector<8x32xf32> -> vector<8x32xf32>
    %250 = vector.broadcast %241 : vector<1x32xf32> to vector<8x32xf32>
    %251 = arith.addf %249, %250 : vector<8x32xf32>
    %cst_114 = arith.constant 0.000000e+00 : f32
    %252 = vector.broadcast %cst_114 : f32 to vector<8x32xf32>
    %253 = arith.maximumf %251, %252 : vector<8x32xf32>
    %c856 = arith.constant 856 : index
    %c0_115 = arith.constant 0 : index
    %254 = vector.load %arg2[%c856, %c0_115] : memref<3424x128xf32, #tpu.memory_space<vmem>>, vector<96x32xf32>
    %c952 = arith.constant 952 : index
    %c0_116 = arith.constant 0 : index
    %255 = vector.load %arg2[%c952, %c0_116] : memref<3424x128xf32, #tpu.memory_space<vmem>>, vector<1x32xf32>
    %c1_i32_117 = arith.constant 1 : i32
    %256 = tpu.dynamic_rotate %253 by %c1_i32_117 dim 0 : vector<8x32xf32>, i32 -> vector<8x32xf32>
    %cst_118 = arith.constant 0.000000e+00 : f32
    %257 = vector.broadcast %cst_118 : f32 to vector<8x32xf32>
    %258 = arith.select %158, %256, %257 : vector<8x32xi1>, vector<8x32xf32>
    %c7_i32_119 = arith.constant 7 : i32
    %259 = tpu.dynamic_rotate %253 by %c7_i32_119 dim 0 : vector<8x32xf32>, i32 -> vector<8x32xf32>
    %cst_120 = arith.constant 0.000000e+00 : f32
    %260 = vector.broadcast %cst_120 : f32 to vector<8x32xf32>
    %261 = arith.select %171, %259, %260 : vector<8x32xi1>, vector<8x32xf32>
    %262 = tpu.concatenate %258, %253, %261 in 1 : vector<8x32xf32>, vector<8x32xf32>, vector<8x32xf32> -> vector<8x96xf32>
    %cst_121 = arith.constant dense<0.000000e+00> : vector<8x32xf32>
    %263 = tpu.matmul %262, %254, %cst_121 {dimension_numbers = #tpu.dot_dimension_numbers<[1], [0], [0], [1], [0, 0, 1, 1], [], []>} : vector<8x96xf32>, vector<96x32xf32>, vector<8x32xf32> -> vector<8x32xf32>
    %264 = vector.broadcast %255 : vector<1x32xf32> to vector<8x32xf32>
    %265 = arith.addf %263, %264 : vector<8x32xf32>
    %c960 = arith.constant 960 : index
    %c0_122 = arith.constant 0 : index
    %266 = vector.load %arg2[%c960, %c0_122] : memref<3424x128xf32, #tpu.memory_space<vmem>>, vector<96x32xf32>
    %c1056 = arith.constant 1056 : index
    %c0_123 = arith.constant 0 : index
    %267 = vector.load %arg2[%c1056, %c0_123] : memref<3424x128xf32, #tpu.memory_space<vmem>>, vector<1x32xf32>
    %c1_i32_124 = arith.constant 1 : i32
    %268 = tpu.dynamic_rotate %265 by %c1_i32_124 dim 0 : vector<8x32xf32>, i32 -> vector<8x32xf32>
    %cst_125 = arith.constant 0.000000e+00 : f32
    %269 = vector.broadcast %cst_125 : f32 to vector<8x32xf32>
    %270 = arith.select %158, %268, %269 : vector<8x32xi1>, vector<8x32xf32>
    %c7_i32_126 = arith.constant 7 : i32
    %271 = tpu.dynamic_rotate %265 by %c7_i32_126 dim 0 : vector<8x32xf32>, i32 -> vector<8x32xf32>
    %cst_127 = arith.constant 0.000000e+00 : f32
    %272 = vector.broadcast %cst_127 : f32 to vector<8x32xf32>
    %273 = arith.select %171, %271, %272 : vector<8x32xi1>, vector<8x32xf32>
    %274 = tpu.concatenate %270, %265, %273 in 1 : vector<8x32xf32>, vector<8x32xf32>, vector<8x32xf32> -> vector<8x96xf32>
    %cst_128 = arith.constant dense<0.000000e+00> : vector<8x32xf32>
    %275 = tpu.matmul %274, %266, %cst_128 {dimension_numbers = #tpu.dot_dimension_numbers<[1], [0], [0], [1], [0, 0, 1, 1], [], []>} : vector<8x96xf32>, vector<96x32xf32>, vector<8x32xf32> -> vector<8x32xf32>
    %276 = vector.broadcast %267 : vector<1x32xf32> to vector<8x32xf32>
    %277 = arith.addf %275, %276 : vector<8x32xf32>
    %cst_129 = arith.constant 0.000000e+00 : f32
    %278 = vector.broadcast %cst_129 : f32 to vector<8x32xf32>
    %279 = arith.maximumf %277, %278 : vector<8x32xf32>
    %c1064 = arith.constant 1064 : index
    %c0_130 = arith.constant 0 : index
    %280 = vector.load %arg2[%c1064, %c0_130] : memref<3424x128xf32, #tpu.memory_space<vmem>>, vector<96x32xf32>
    %c1160 = arith.constant 1160 : index
    %c0_131 = arith.constant 0 : index
    %281 = vector.load %arg2[%c1160, %c0_131] : memref<3424x128xf32, #tpu.memory_space<vmem>>, vector<1x32xf32>
    %c2_i32_132 = arith.constant 2 : i32
    %282 = tpu.dynamic_rotate %279 by %c2_i32_132 dim 0 : vector<8x32xf32>, i32 -> vector<8x32xf32>
    %cst_133 = arith.constant 0.000000e+00 : f32
    %283 = vector.broadcast %cst_133 : f32 to vector<8x32xf32>
    %284 = arith.select %218, %282, %283 : vector<8x32xi1>, vector<8x32xf32>
    %c6_i32_134 = arith.constant 6 : i32
    %285 = tpu.dynamic_rotate %279 by %c6_i32_134 dim 0 : vector<8x32xf32>, i32 -> vector<8x32xf32>
    %cst_135 = arith.constant 0.000000e+00 : f32
    %286 = vector.broadcast %cst_135 : f32 to vector<8x32xf32>
    %287 = arith.select %231, %285, %286 : vector<8x32xi1>, vector<8x32xf32>
    %288 = tpu.concatenate %284, %279, %287 in 1 : vector<8x32xf32>, vector<8x32xf32>, vector<8x32xf32> -> vector<8x96xf32>
    %cst_136 = arith.constant dense<0.000000e+00> : vector<8x32xf32>
    %289 = tpu.matmul %288, %280, %cst_136 {dimension_numbers = #tpu.dot_dimension_numbers<[1], [0], [0], [1], [0, 0, 1, 1], [], []>} : vector<8x96xf32>, vector<96x32xf32>, vector<8x32xf32> -> vector<8x32xf32>
    %290 = vector.broadcast %281 : vector<1x32xf32> to vector<8x32xf32>
    %291 = arith.addf %289, %290 : vector<8x32xf32>
    %cst_137 = arith.constant 0.000000e+00 : f32
    %292 = vector.broadcast %cst_137 : f32 to vector<8x32xf32>
    %293 = arith.maximumf %291, %292 : vector<8x32xf32>
    %c1168 = arith.constant 1168 : index
    %c0_138 = arith.constant 0 : index
    %294 = vector.load %arg2[%c1168, %c0_138] : memref<3424x128xf32, #tpu.memory_space<vmem>>, vector<96x32xf32>
    %c1264 = arith.constant 1264 : index
    %c0_139 = arith.constant 0 : index
    %295 = vector.load %arg2[%c1264, %c0_139] : memref<3424x128xf32, #tpu.memory_space<vmem>>, vector<1x32xf32>
    %c1_i32_140 = arith.constant 1 : i32
    %296 = tpu.dynamic_rotate %293 by %c1_i32_140 dim 0 : vector<8x32xf32>, i32 -> vector<8x32xf32>
    %cst_141 = arith.constant 0.000000e+00 : f32
    %297 = vector.broadcast %cst_141 : f32 to vector<8x32xf32>
    %298 = arith.select %158, %296, %297 : vector<8x32xi1>, vector<8x32xf32>
    %c7_i32_142 = arith.constant 7 : i32
    %299 = tpu.dynamic_rotate %293 by %c7_i32_142 dim 0 : vector<8x32xf32>, i32 -> vector<8x32xf32>
    %cst_143 = arith.constant 0.000000e+00 : f32
    %300 = vector.broadcast %cst_143 : f32 to vector<8x32xf32>
    %301 = arith.select %171, %299, %300 : vector<8x32xi1>, vector<8x32xf32>
    %302 = tpu.concatenate %298, %293, %301 in 1 : vector<8x32xf32>, vector<8x32xf32>, vector<8x32xf32> -> vector<8x96xf32>
    %cst_144 = arith.constant dense<0.000000e+00> : vector<8x32xf32>
    %303 = tpu.matmul %302, %294, %cst_144 {dimension_numbers = #tpu.dot_dimension_numbers<[1], [0], [0], [1], [0, 0, 1, 1], [], []>} : vector<8x96xf32>, vector<96x32xf32>, vector<8x32xf32> -> vector<8x32xf32>
    %304 = vector.broadcast %295 : vector<1x32xf32> to vector<8x32xf32>
    %305 = arith.addf %303, %304 : vector<8x32xf32>
    %cst_145 = arith.constant 0.000000e+00 : f32
    %306 = vector.broadcast %cst_145 : f32 to vector<8x32xf32>
    %307 = arith.maximumf %305, %306 : vector<8x32xf32>
    %c1272 = arith.constant 1272 : index
    %c0_146 = arith.constant 0 : index
    %308 = vector.load %arg2[%c1272, %c0_146] : memref<3424x128xf32, #tpu.memory_space<vmem>>, vector<96x32xf32>
    %c1368 = arith.constant 1368 : index
    %c0_147 = arith.constant 0 : index
    %309 = vector.load %arg2[%c1368, %c0_147] : memref<3424x128xf32, #tpu.memory_space<vmem>>, vector<1x32xf32>
    %c1_i32_148 = arith.constant 1 : i32
    %310 = tpu.dynamic_rotate %307 by %c1_i32_148 dim 0 : vector<8x32xf32>, i32 -> vector<8x32xf32>
    %cst_149 = arith.constant 0.000000e+00 : f32
    %311 = vector.broadcast %cst_149 : f32 to vector<8x32xf32>
    %312 = arith.select %158, %310, %311 : vector<8x32xi1>, vector<8x32xf32>
    %c7_i32_150 = arith.constant 7 : i32
    %313 = tpu.dynamic_rotate %307 by %c7_i32_150 dim 0 : vector<8x32xf32>, i32 -> vector<8x32xf32>
    %cst_151 = arith.constant 0.000000e+00 : f32
    %314 = vector.broadcast %cst_151 : f32 to vector<8x32xf32>
    %315 = arith.select %171, %313, %314 : vector<8x32xi1>, vector<8x32xf32>
    %316 = tpu.concatenate %312, %307, %315 in 1 : vector<8x32xf32>, vector<8x32xf32>, vector<8x32xf32> -> vector<8x96xf32>
    %cst_152 = arith.constant dense<0.000000e+00> : vector<8x32xf32>
    %317 = tpu.matmul %316, %308, %cst_152 {dimension_numbers = #tpu.dot_dimension_numbers<[1], [0], [0], [1], [0, 0, 1, 1], [], []>} : vector<8x96xf32>, vector<96x32xf32>, vector<8x32xf32> -> vector<8x32xf32>
    %318 = vector.broadcast %309 : vector<1x32xf32> to vector<8x32xf32>
    %319 = arith.addf %317, %318 : vector<8x32xf32>
    %c1376 = arith.constant 1376 : index
    %c0_153 = arith.constant 0 : index
    %320 = vector.load %arg2[%c1376, %c0_153] : memref<3424x128xf32, #tpu.memory_space<vmem>>, vector<96x32xf32>
    %c1472 = arith.constant 1472 : index
    %c0_154 = arith.constant 0 : index
    %321 = vector.load %arg2[%c1472, %c0_154] : memref<3424x128xf32, #tpu.memory_space<vmem>>, vector<1x32xf32>
    %c1_i32_155 = arith.constant 1 : i32
    %322 = tpu.dynamic_rotate %319 by %c1_i32_155 dim 0 : vector<8x32xf32>, i32 -> vector<8x32xf32>
    %cst_156 = arith.constant 0.000000e+00 : f32
    %323 = vector.broadcast %cst_156 : f32 to vector<8x32xf32>
    %324 = arith.select %158, %322, %323 : vector<8x32xi1>, vector<8x32xf32>
    %c7_i32_157 = arith.constant 7 : i32
    %325 = tpu.dynamic_rotate %319 by %c7_i32_157 dim 0 : vector<8x32xf32>, i32 -> vector<8x32xf32>
    %cst_158 = arith.constant 0.000000e+00 : f32
    %326 = vector.broadcast %cst_158 : f32 to vector<8x32xf32>
    %327 = arith.select %171, %325, %326 : vector<8x32xi1>, vector<8x32xf32>
    %328 = tpu.concatenate %324, %319, %327 in 1 : vector<8x32xf32>, vector<8x32xf32>, vector<8x32xf32> -> vector<8x96xf32>
    %cst_159 = arith.constant dense<0.000000e+00> : vector<8x32xf32>
    %329 = tpu.matmul %328, %320, %cst_159 {dimension_numbers = #tpu.dot_dimension_numbers<[1], [0], [0], [1], [0, 0, 1, 1], [], []>} : vector<8x96xf32>, vector<96x32xf32>, vector<8x32xf32> -> vector<8x32xf32>
    %330 = vector.broadcast %321 : vector<1x32xf32> to vector<8x32xf32>
    %331 = arith.addf %329, %330 : vector<8x32xf32>
    %cst_160 = arith.constant 0.000000e+00 : f32
    %332 = vector.broadcast %cst_160 : f32 to vector<8x32xf32>
    %333 = arith.maximumf %331, %332 : vector<8x32xf32>
    %c1480 = arith.constant 1480 : index
    %c0_161 = arith.constant 0 : index
    %334 = vector.load %arg2[%c1480, %c0_161] : memref<3424x128xf32, #tpu.memory_space<vmem>>, vector<96x32xf32>
    %c1576 = arith.constant 1576 : index
    %c0_162 = arith.constant 0 : index
    %335 = vector.load %arg2[%c1576, %c0_162] : memref<3424x128xf32, #tpu.memory_space<vmem>>, vector<1x32xf32>
    %c2_i32_163 = arith.constant 2 : i32
    %336 = tpu.dynamic_rotate %333 by %c2_i32_163 dim 0 : vector<8x32xf32>, i32 -> vector<8x32xf32>
    %cst_164 = arith.constant 0.000000e+00 : f32
    %337 = vector.broadcast %cst_164 : f32 to vector<8x32xf32>
    %338 = arith.select %218, %336, %337 : vector<8x32xi1>, vector<8x32xf32>
    %c6_i32_165 = arith.constant 6 : i32
    %339 = tpu.dynamic_rotate %333 by %c6_i32_165 dim 0 : vector<8x32xf32>, i32 -> vector<8x32xf32>
    %cst_166 = arith.constant 0.000000e+00 : f32
    %340 = vector.broadcast %cst_166 : f32 to vector<8x32xf32>
    %341 = arith.select %231, %339, %340 : vector<8x32xi1>, vector<8x32xf32>
    %342 = tpu.concatenate %338, %333, %341 in 1 : vector<8x32xf32>, vector<8x32xf32>, vector<8x32xf32> -> vector<8x96xf32>
    %cst_167 = arith.constant dense<0.000000e+00> : vector<8x32xf32>
    %343 = tpu.matmul %342, %334, %cst_167 {dimension_numbers = #tpu.dot_dimension_numbers<[1], [0], [0], [1], [0, 0, 1, 1], [], []>} : vector<8x96xf32>, vector<96x32xf32>, vector<8x32xf32> -> vector<8x32xf32>
    %344 = vector.broadcast %335 : vector<1x32xf32> to vector<8x32xf32>
    %345 = arith.addf %343, %344 : vector<8x32xf32>
    %cst_168 = arith.constant 0.000000e+00 : f32
    %346 = vector.broadcast %cst_168 : f32 to vector<8x32xf32>
    %347 = arith.maximumf %345, %346 : vector<8x32xf32>
    %c1584 = arith.constant 1584 : index
    %c0_169 = arith.constant 0 : index
    %348 = vector.load %arg2[%c1584, %c0_169] : memref<3424x128xf32, #tpu.memory_space<vmem>>, vector<96x32xf32>
    %c1680 = arith.constant 1680 : index
    %c0_170 = arith.constant 0 : index
    %349 = vector.load %arg2[%c1680, %c0_170] : memref<3424x128xf32, #tpu.memory_space<vmem>>, vector<1x32xf32>
    %c1_i32_171 = arith.constant 1 : i32
    %350 = tpu.dynamic_rotate %347 by %c1_i32_171 dim 0 : vector<8x32xf32>, i32 -> vector<8x32xf32>
    %cst_172 = arith.constant 0.000000e+00 : f32
    %351 = vector.broadcast %cst_172 : f32 to vector<8x32xf32>
    %352 = arith.select %158, %350, %351 : vector<8x32xi1>, vector<8x32xf32>
    %c7_i32_173 = arith.constant 7 : i32
    %353 = tpu.dynamic_rotate %347 by %c7_i32_173 dim 0 : vector<8x32xf32>, i32 -> vector<8x32xf32>
    %cst_174 = arith.constant 0.000000e+00 : f32
    %354 = vector.broadcast %cst_174 : f32 to vector<8x32xf32>
    %355 = arith.select %171, %353, %354 : vector<8x32xi1>, vector<8x32xf32>
    %356 = tpu.concatenate %352, %347, %355 in 1 : vector<8x32xf32>, vector<8x32xf32>, vector<8x32xf32> -> vector<8x96xf32>
    %cst_175 = arith.constant dense<0.000000e+00> : vector<8x32xf32>
    %357 = tpu.matmul %356, %348, %cst_175 {dimension_numbers = #tpu.dot_dimension_numbers<[1], [0], [0], [1], [0, 0, 1, 1], [], []>} : vector<8x96xf32>, vector<96x32xf32>, vector<8x32xf32> -> vector<8x32xf32>
    %358 = vector.broadcast %349 : vector<1x32xf32> to vector<8x32xf32>
    %359 = arith.addf %357, %358 : vector<8x32xf32>
    %cst_176 = arith.constant 0.000000e+00 : f32
    %360 = vector.broadcast %cst_176 : f32 to vector<8x32xf32>
    %361 = arith.maximumf %359, %360 : vector<8x32xf32>
    %c1688 = arith.constant 1688 : index
    %c0_177 = arith.constant 0 : index
    %362 = vector.load %arg2[%c1688, %c0_177] : memref<3424x128xf32, #tpu.memory_space<vmem>>, vector<96x32xf32>
    %c1784 = arith.constant 1784 : index
    %c0_178 = arith.constant 0 : index
    %363 = vector.load %arg2[%c1784, %c0_178] : memref<3424x128xf32, #tpu.memory_space<vmem>>, vector<1x32xf32>
    %c1_i32_179 = arith.constant 1 : i32
    %364 = tpu.dynamic_rotate %361 by %c1_i32_179 dim 0 : vector<8x32xf32>, i32 -> vector<8x32xf32>
    %cst_180 = arith.constant 0.000000e+00 : f32
    %365 = vector.broadcast %cst_180 : f32 to vector<8x32xf32>
    %366 = arith.select %158, %364, %365 : vector<8x32xi1>, vector<8x32xf32>
    %c7_i32_181 = arith.constant 7 : i32
    %367 = tpu.dynamic_rotate %361 by %c7_i32_181 dim 0 : vector<8x32xf32>, i32 -> vector<8x32xf32>
    %cst_182 = arith.constant 0.000000e+00 : f32
    %368 = vector.broadcast %cst_182 : f32 to vector<8x32xf32>
    %369 = arith.select %171, %367, %368 : vector<8x32xi1>, vector<8x32xf32>
    %370 = tpu.concatenate %366, %361, %369 in 1 : vector<8x32xf32>, vector<8x32xf32>, vector<8x32xf32> -> vector<8x96xf32>
    %cst_183 = arith.constant dense<0.000000e+00> : vector<8x32xf32>
    %371 = tpu.matmul %370, %362, %cst_183 {dimension_numbers = #tpu.dot_dimension_numbers<[1], [0], [0], [1], [0, 0, 1, 1], [], []>} : vector<8x96xf32>, vector<96x32xf32>, vector<8x32xf32> -> vector<8x32xf32>
    %372 = vector.broadcast %363 : vector<1x32xf32> to vector<8x32xf32>
    %373 = arith.addf %371, %372 : vector<8x32xf32>
    %c1792 = arith.constant 1792 : index
    %c0_184 = arith.constant 0 : index
    %374 = vector.load %arg2[%c1792, %c0_184] : memref<3424x128xf32, #tpu.memory_space<vmem>>, vector<96x32xf32>
    %c1888 = arith.constant 1888 : index
    %c0_185 = arith.constant 0 : index
    %375 = vector.load %arg2[%c1888, %c0_185] : memref<3424x128xf32, #tpu.memory_space<vmem>>, vector<1x32xf32>
    %c1_i32_186 = arith.constant 1 : i32
    %376 = tpu.dynamic_rotate %373 by %c1_i32_186 dim 0 : vector<8x32xf32>, i32 -> vector<8x32xf32>
    %cst_187 = arith.constant 0.000000e+00 : f32
    %377 = vector.broadcast %cst_187 : f32 to vector<8x32xf32>
    %378 = arith.select %158, %376, %377 : vector<8x32xi1>, vector<8x32xf32>
    %c7_i32_188 = arith.constant 7 : i32
    %379 = tpu.dynamic_rotate %373 by %c7_i32_188 dim 0 : vector<8x32xf32>, i32 -> vector<8x32xf32>
    %cst_189 = arith.constant 0.000000e+00 : f32
    %380 = vector.broadcast %cst_189 : f32 to vector<8x32xf32>
    %381 = arith.select %171, %379, %380 : vector<8x32xi1>, vector<8x32xf32>
    %382 = tpu.concatenate %378, %373, %381 in 1 : vector<8x32xf32>, vector<8x32xf32>, vector<8x32xf32> -> vector<8x96xf32>
    %cst_190 = arith.constant dense<0.000000e+00> : vector<8x32xf32>
    %383 = tpu.matmul %382, %374, %cst_190 {dimension_numbers = #tpu.dot_dimension_numbers<[1], [0], [0], [1], [0, 0, 1, 1], [], []>} : vector<8x96xf32>, vector<96x32xf32>, vector<8x32xf32> -> vector<8x32xf32>
    %384 = vector.broadcast %375 : vector<1x32xf32> to vector<8x32xf32>
    %385 = arith.addf %383, %384 : vector<8x32xf32>
    %cst_191 = arith.constant 0.000000e+00 : f32
    %386 = vector.broadcast %cst_191 : f32 to vector<8x32xf32>
    %387 = arith.maximumf %385, %386 : vector<8x32xf32>
    %c1896 = arith.constant 1896 : index
    %c0_192 = arith.constant 0 : index
    %388 = vector.load %arg2[%c1896, %c0_192] : memref<3424x128xf32, #tpu.memory_space<vmem>>, vector<96x32xf32>
    %c1992 = arith.constant 1992 : index
    %c0_193 = arith.constant 0 : index
    %389 = vector.load %arg2[%c1992, %c0_193] : memref<3424x128xf32, #tpu.memory_space<vmem>>, vector<1x32xf32>
    %c2_i32_194 = arith.constant 2 : i32
    %390 = tpu.dynamic_rotate %387 by %c2_i32_194 dim 0 : vector<8x32xf32>, i32 -> vector<8x32xf32>
    %cst_195 = arith.constant 0.000000e+00 : f32
    %391 = vector.broadcast %cst_195 : f32 to vector<8x32xf32>
    %392 = arith.select %218, %390, %391 : vector<8x32xi1>, vector<8x32xf32>
    %c6_i32_196 = arith.constant 6 : i32
    %393 = tpu.dynamic_rotate %387 by %c6_i32_196 dim 0 : vector<8x32xf32>, i32 -> vector<8x32xf32>
    %cst_197 = arith.constant 0.000000e+00 : f32
    %394 = vector.broadcast %cst_197 : f32 to vector<8x32xf32>
    %395 = arith.select %231, %393, %394 : vector<8x32xi1>, vector<8x32xf32>
    %396 = tpu.concatenate %392, %387, %395 in 1 : vector<8x32xf32>, vector<8x32xf32>, vector<8x32xf32> -> vector<8x96xf32>
    %cst_198 = arith.constant dense<0.000000e+00> : vector<8x32xf32>
    %397 = tpu.matmul %396, %388, %cst_198 {dimension_numbers = #tpu.dot_dimension_numbers<[1], [0], [0], [1], [0, 0, 1, 1], [], []>} : vector<8x96xf32>, vector<96x32xf32>, vector<8x32xf32> -> vector<8x32xf32>
    %398 = vector.broadcast %389 : vector<1x32xf32> to vector<8x32xf32>
    %399 = arith.addf %397, %398 : vector<8x32xf32>
    %cst_199 = arith.constant 0.000000e+00 : f32
    %400 = vector.broadcast %cst_199 : f32 to vector<8x32xf32>
    %401 = arith.maximumf %399, %400 : vector<8x32xf32>
    %c2000 = arith.constant 2000 : index
    %c0_200 = arith.constant 0 : index
    %402 = vector.load %arg2[%c2000, %c0_200] : memref<3424x128xf32, #tpu.memory_space<vmem>>, vector<192x32xf32>
    %c2192 = arith.constant 2192 : index
    %c0_201 = arith.constant 0 : index
    %403 = vector.load %arg2[%c2192, %c0_201] : memref<3424x128xf32, #tpu.memory_space<vmem>>, vector<1x32xf32>
    %404 = tpu.concatenate %401, %347 in 1 : vector<8x32xf32>, vector<8x32xf32> -> vector<8x64xf32>
    %c1_i32_202 = arith.constant 1 : i32
    %405 = tpu.dynamic_rotate %404 by %c1_i32_202 dim 0 : vector<8x64xf32>, i32 -> vector<8x64xf32>
    %406 = tpu.iota {dimensions = array<i32: 0>} : vector<8x64xi32>
    %c-1_i32_203 = arith.constant -1 : i32
    %407 = vector.broadcast %c-1_i32_203 : i32 to vector<8x64xi32>
    %408 = arith.addi %406, %407 : vector<8x64xi32>
    %c0_i32_204 = arith.constant 0 : i32
    %409 = vector.broadcast %c0_i32_204 : i32 to vector<8x64xi32>
    %410 = arith.cmpi sge, %408, %409 : vector<8x64xi32>
    %c-1_i32_205 = arith.constant -1 : i32
    %411 = vector.broadcast %c-1_i32_205 : i32 to vector<8x64xi32>
    %412 = arith.addi %406, %411 : vector<8x64xi32>
    %c8_i32_206 = arith.constant 8 : i32
    %413 = vector.broadcast %c8_i32_206 : i32 to vector<8x64xi32>
    %414 = arith.cmpi slt, %412, %413 : vector<8x64xi32>
    %415 = arith.andi %410, %414 : vector<8x64xi1>
    %cst_207 = arith.constant 0.000000e+00 : f32
    %416 = vector.broadcast %cst_207 : f32 to vector<8x64xf32>
    %417 = arith.select %415, %405, %416 : vector<8x64xi1>, vector<8x64xf32>
    %c7_i32_208 = arith.constant 7 : i32
    %418 = tpu.dynamic_rotate %404 by %c7_i32_208 dim 0 : vector<8x64xf32>, i32 -> vector<8x64xf32>
    %419 = tpu.iota {dimensions = array<i32: 0>} : vector<8x64xi32>
    %c1_i32_209 = arith.constant 1 : i32
    %420 = vector.broadcast %c1_i32_209 : i32 to vector<8x64xi32>
    %421 = arith.addi %419, %420 : vector<8x64xi32>
    %c0_i32_210 = arith.constant 0 : i32
    %422 = vector.broadcast %c0_i32_210 : i32 to vector<8x64xi32>
    %423 = arith.cmpi sge, %421, %422 : vector<8x64xi32>
    %c1_i32_211 = arith.constant 1 : i32
    %424 = vector.broadcast %c1_i32_211 : i32 to vector<8x64xi32>
    %425 = arith.addi %419, %424 : vector<8x64xi32>
    %c8_i32_212 = arith.constant 8 : i32
    %426 = vector.broadcast %c8_i32_212 : i32 to vector<8x64xi32>
    %427 = arith.cmpi slt, %425, %426 : vector<8x64xi32>
    %428 = arith.andi %423, %427 : vector<8x64xi1>
    %cst_213 = arith.constant 0.000000e+00 : f32
    %429 = vector.broadcast %cst_213 : f32 to vector<8x64xf32>
    %430 = arith.select %428, %418, %429 : vector<8x64xi1>, vector<8x64xf32>
    %431 = tpu.concatenate %417, %404, %430 in 1 : vector<8x64xf32>, vector<8x64xf32>, vector<8x64xf32> -> vector<8x192xf32>
    %cst_214 = arith.constant dense<0.000000e+00> : vector<8x32xf32>
    %432 = tpu.matmul %431, %402, %cst_214 {dimension_numbers = #tpu.dot_dimension_numbers<[1], [0], [0], [1], [0, 0, 1, 1], [], []>} : vector<8x192xf32>, vector<192x32xf32>, vector<8x32xf32> -> vector<8x32xf32>
    %433 = vector.broadcast %403 : vector<1x32xf32> to vector<8x32xf32>
    %434 = arith.addf %432, %433 : vector<8x32xf32>
    %cst_215 = arith.constant 0.000000e+00 : f32
    %435 = vector.broadcast %cst_215 : f32 to vector<8x32xf32>
    %436 = arith.maximumf %434, %435 : vector<8x32xf32>
    %c2200 = arith.constant 2200 : index
    %c0_216 = arith.constant 0 : index
    %437 = vector.load %arg2[%c2200, %c0_216] : memref<3424x128xf32, #tpu.memory_space<vmem>>, vector<96x32xf32>
    %c2296 = arith.constant 2296 : index
    %c0_217 = arith.constant 0 : index
    %438 = vector.load %arg2[%c2296, %c0_217] : memref<3424x128xf32, #tpu.memory_space<vmem>>, vector<1x32xf32>
    %c1_i32_218 = arith.constant 1 : i32
    %439 = tpu.dynamic_rotate %436 by %c1_i32_218 dim 0 : vector<8x32xf32>, i32 -> vector<8x32xf32>
    %cst_219 = arith.constant 0.000000e+00 : f32
    %440 = vector.broadcast %cst_219 : f32 to vector<8x32xf32>
    %441 = arith.select %158, %439, %440 : vector<8x32xi1>, vector<8x32xf32>
    %c7_i32_220 = arith.constant 7 : i32
    %442 = tpu.dynamic_rotate %436 by %c7_i32_220 dim 0 : vector<8x32xf32>, i32 -> vector<8x32xf32>
    %cst_221 = arith.constant 0.000000e+00 : f32
    %443 = vector.broadcast %cst_221 : f32 to vector<8x32xf32>
    %444 = arith.select %171, %442, %443 : vector<8x32xi1>, vector<8x32xf32>
    %445 = tpu.concatenate %441, %436, %444 in 1 : vector<8x32xf32>, vector<8x32xf32>, vector<8x32xf32> -> vector<8x96xf32>
    %cst_222 = arith.constant dense<0.000000e+00> : vector<8x32xf32>
    %446 = tpu.matmul %445, %437, %cst_222 {dimension_numbers = #tpu.dot_dimension_numbers<[1], [0], [0], [1], [0, 0, 1, 1], [], []>} : vector<8x96xf32>, vector<96x32xf32>, vector<8x32xf32> -> vector<8x32xf32>
    %447 = vector.broadcast %438 : vector<1x32xf32> to vector<8x32xf32>
    %448 = arith.addf %446, %447 : vector<8x32xf32>
    %c2304 = arith.constant 2304 : index
    %c0_223 = arith.constant 0 : index
    %449 = vector.load %arg2[%c2304, %c0_223] : memref<3424x128xf32, #tpu.memory_space<vmem>>, vector<192x32xf32>
    %c2496 = arith.constant 2496 : index
    %c0_224 = arith.constant 0 : index
    %450 = vector.load %arg2[%c2496, %c0_224] : memref<3424x128xf32, #tpu.memory_space<vmem>>, vector<1x32xf32>
    %451 = tpu.concatenate %448, %293 in 1 : vector<8x32xf32>, vector<8x32xf32> -> vector<8x64xf32>
    %c1_i32_225 = arith.constant 1 : i32
    %452 = tpu.dynamic_rotate %451 by %c1_i32_225 dim 0 : vector<8x64xf32>, i32 -> vector<8x64xf32>
    %cst_226 = arith.constant 0.000000e+00 : f32
    %453 = vector.broadcast %cst_226 : f32 to vector<8x64xf32>
    %454 = arith.select %415, %452, %453 : vector<8x64xi1>, vector<8x64xf32>
    %c7_i32_227 = arith.constant 7 : i32
    %455 = tpu.dynamic_rotate %451 by %c7_i32_227 dim 0 : vector<8x64xf32>, i32 -> vector<8x64xf32>
    %cst_228 = arith.constant 0.000000e+00 : f32
    %456 = vector.broadcast %cst_228 : f32 to vector<8x64xf32>
    %457 = arith.select %428, %455, %456 : vector<8x64xi1>, vector<8x64xf32>
    %458 = tpu.concatenate %454, %451, %457 in 1 : vector<8x64xf32>, vector<8x64xf32>, vector<8x64xf32> -> vector<8x192xf32>
    %cst_229 = arith.constant dense<0.000000e+00> : vector<8x32xf32>
    %459 = tpu.matmul %458, %449, %cst_229 {dimension_numbers = #tpu.dot_dimension_numbers<[1], [0], [0], [1], [0, 0, 1, 1], [], []>} : vector<8x192xf32>, vector<192x32xf32>, vector<8x32xf32> -> vector<8x32xf32>
    %460 = vector.broadcast %450 : vector<1x32xf32> to vector<8x32xf32>
    %461 = arith.addf %459, %460 : vector<8x32xf32>
    %cst_230 = arith.constant 0.000000e+00 : f32
    %462 = vector.broadcast %cst_230 : f32 to vector<8x32xf32>
    %463 = arith.maximumf %461, %462 : vector<8x32xf32>
    %c2504 = arith.constant 2504 : index
    %c0_231 = arith.constant 0 : index
    %464 = vector.load %arg2[%c2504, %c0_231] : memref<3424x128xf32, #tpu.memory_space<vmem>>, vector<96x32xf32>
    %c2600 = arith.constant 2600 : index
    %c0_232 = arith.constant 0 : index
    %465 = vector.load %arg2[%c2600, %c0_232] : memref<3424x128xf32, #tpu.memory_space<vmem>>, vector<1x32xf32>
    %c1_i32_233 = arith.constant 1 : i32
    %466 = tpu.dynamic_rotate %463 by %c1_i32_233 dim 0 : vector<8x32xf32>, i32 -> vector<8x32xf32>
    %cst_234 = arith.constant 0.000000e+00 : f32
    %467 = vector.broadcast %cst_234 : f32 to vector<8x32xf32>
    %468 = arith.select %158, %466, %467 : vector<8x32xi1>, vector<8x32xf32>
    %c7_i32_235 = arith.constant 7 : i32
    %469 = tpu.dynamic_rotate %463 by %c7_i32_235 dim 0 : vector<8x32xf32>, i32 -> vector<8x32xf32>
    %cst_236 = arith.constant 0.000000e+00 : f32
    %470 = vector.broadcast %cst_236 : f32 to vector<8x32xf32>
    %471 = arith.select %171, %469, %470 : vector<8x32xi1>, vector<8x32xf32>
    %472 = tpu.concatenate %468, %463, %471 in 1 : vector<8x32xf32>, vector<8x32xf32>, vector<8x32xf32> -> vector<8x96xf32>
    %cst_237 = arith.constant dense<0.000000e+00> : vector<8x32xf32>
    %473 = tpu.matmul %472, %464, %cst_237 {dimension_numbers = #tpu.dot_dimension_numbers<[1], [0], [0], [1], [0, 0, 1, 1], [], []>} : vector<8x96xf32>, vector<96x32xf32>, vector<8x32xf32> -> vector<8x32xf32>
    %474 = vector.broadcast %465 : vector<1x32xf32> to vector<8x32xf32>
    %475 = arith.addf %473, %474 : vector<8x32xf32>
    %c2608 = arith.constant 2608 : index
    %c0_238 = arith.constant 0 : index
    %476 = vector.load %arg2[%c2608, %c0_238] : memref<3424x128xf32, #tpu.memory_space<vmem>>, vector<192x32xf32>
    %c2800 = arith.constant 2800 : index
    %c0_239 = arith.constant 0 : index
    %477 = vector.load %arg2[%c2800, %c0_239] : memref<3424x128xf32, #tpu.memory_space<vmem>>, vector<1x32xf32>
    %478 = tpu.concatenate %475, %239 in 1 : vector<8x32xf32>, vector<8x32xf32> -> vector<8x64xf32>
    %c1_i32_240 = arith.constant 1 : i32
    %479 = tpu.dynamic_rotate %478 by %c1_i32_240 dim 0 : vector<8x64xf32>, i32 -> vector<8x64xf32>
    %cst_241 = arith.constant 0.000000e+00 : f32
    %480 = vector.broadcast %cst_241 : f32 to vector<8x64xf32>
    %481 = arith.select %415, %479, %480 : vector<8x64xi1>, vector<8x64xf32>
    %c7_i32_242 = arith.constant 7 : i32
    %482 = tpu.dynamic_rotate %478 by %c7_i32_242 dim 0 : vector<8x64xf32>, i32 -> vector<8x64xf32>
    %cst_243 = arith.constant 0.000000e+00 : f32
    %483 = vector.broadcast %cst_243 : f32 to vector<8x64xf32>
    %484 = arith.select %428, %482, %483 : vector<8x64xi1>, vector<8x64xf32>
    %485 = tpu.concatenate %481, %478, %484 in 1 : vector<8x64xf32>, vector<8x64xf32>, vector<8x64xf32> -> vector<8x192xf32>
    %cst_244 = arith.constant dense<0.000000e+00> : vector<8x32xf32>
    %486 = tpu.matmul %485, %476, %cst_244 {dimension_numbers = #tpu.dot_dimension_numbers<[1], [0], [0], [1], [0, 0, 1, 1], [], []>} : vector<8x192xf32>, vector<192x32xf32>, vector<8x32xf32> -> vector<8x32xf32>
    %487 = vector.broadcast %477 : vector<1x32xf32> to vector<8x32xf32>
    %488 = arith.addf %486, %487 : vector<8x32xf32>
    %cst_245 = arith.constant 0.000000e+00 : f32
    %489 = vector.broadcast %cst_245 : f32 to vector<8x32xf32>
    %490 = arith.maximumf %488, %489 : vector<8x32xf32>
    %c2808 = arith.constant 2808 : index
    %c0_246 = arith.constant 0 : index
    %491 = vector.load %arg2[%c2808, %c0_246] : memref<3424x128xf32, #tpu.memory_space<vmem>>, vector<96x32xf32>
    %c2904 = arith.constant 2904 : index
    %c0_247 = arith.constant 0 : index
    %492 = vector.load %arg2[%c2904, %c0_247] : memref<3424x128xf32, #tpu.memory_space<vmem>>, vector<1x32xf32>
    %c1_i32_248 = arith.constant 1 : i32
    %493 = tpu.dynamic_rotate %490 by %c1_i32_248 dim 0 : vector<8x32xf32>, i32 -> vector<8x32xf32>
    %cst_249 = arith.constant 0.000000e+00 : f32
    %494 = vector.broadcast %cst_249 : f32 to vector<8x32xf32>
    %495 = arith.select %158, %493, %494 : vector<8x32xi1>, vector<8x32xf32>
    %c7_i32_250 = arith.constant 7 : i32
    %496 = tpu.dynamic_rotate %490 by %c7_i32_250 dim 0 : vector<8x32xf32>, i32 -> vector<8x32xf32>
    %cst_251 = arith.constant 0.000000e+00 : f32
    %497 = vector.broadcast %cst_251 : f32 to vector<8x32xf32>
    %498 = arith.select %171, %496, %497 : vector<8x32xi1>, vector<8x32xf32>
    %499 = tpu.concatenate %495, %490, %498 in 1 : vector<8x32xf32>, vector<8x32xf32>, vector<8x32xf32> -> vector<8x96xf32>
    %cst_252 = arith.constant dense<0.000000e+00> : vector<8x32xf32>
    %500 = tpu.matmul %499, %491, %cst_252 {dimension_numbers = #tpu.dot_dimension_numbers<[1], [0], [0], [1], [0, 0, 1, 1], [], []>} : vector<8x96xf32>, vector<96x32xf32>, vector<8x32xf32> -> vector<8x32xf32>
    %501 = vector.broadcast %492 : vector<1x32xf32> to vector<8x32xf32>
    %502 = arith.addf %500, %501 : vector<8x32xf32>
    %c3336 = arith.constant 3336 : index
    %c0_253 = arith.constant 0 : index
    %503 = vector.load %arg2[%c3336, %c0_253] : memref<3424x128xf32, #tpu.memory_space<vmem>>, vector<16x8xf32>
    %cst_254 = arith.constant dense<0.000000e+00> : vector<16x32xf32>
    %504 = tpu.matmul %503, %502, %cst_254 {dimension_numbers = #tpu.dot_dimension_numbers<[1], [0], [0], [1], [0, 0, 1, 1], [], []>} : vector<16x8xf32>, vector<8x32xf32>, vector<16x32xf32> -> vector<16x32xf32>
    %c2912 = arith.constant 2912 : index
    %c0_255 = arith.constant 0 : index
    %505 = vector.load %arg2[%c2912, %c0_255] : memref<3424x128xf32, #tpu.memory_space<vmem>>, vector<192x32xf32>
    %c3104 = arith.constant 3104 : index
    %c0_256 = arith.constant 0 : index
    %506 = vector.load %arg2[%c3104, %c0_256] : memref<3424x128xf32, #tpu.memory_space<vmem>>, vector<1x32xf32>
    %507 = tpu.concatenate %504, %140 in 1 : vector<16x32xf32>, vector<16x32xf32> -> vector<16x64xf32>
    %c1_i32_257 = arith.constant 1 : i32
    %508 = tpu.dynamic_rotate %507 by %c1_i32_257 dim 0 : vector<16x64xf32>, i32 -> vector<16x64xf32>
    %509 = tpu.iota {dimensions = array<i32: 0>} : vector<16x64xi32>
    %c-1_i32_258 = arith.constant -1 : i32
    %510 = vector.broadcast %c-1_i32_258 : i32 to vector<16x64xi32>
    %511 = arith.addi %509, %510 : vector<16x64xi32>
    %c0_i32_259 = arith.constant 0 : i32
    %512 = vector.broadcast %c0_i32_259 : i32 to vector<16x64xi32>
    %513 = arith.cmpi sge, %511, %512 : vector<16x64xi32>
    %c-1_i32_260 = arith.constant -1 : i32
    %514 = vector.broadcast %c-1_i32_260 : i32 to vector<16x64xi32>
    %515 = arith.addi %509, %514 : vector<16x64xi32>
    %c16_i32_261 = arith.constant 16 : i32
    %516 = vector.broadcast %c16_i32_261 : i32 to vector<16x64xi32>
    %517 = arith.cmpi slt, %515, %516 : vector<16x64xi32>
    %518 = arith.andi %513, %517 : vector<16x64xi1>
    %cst_262 = arith.constant 0.000000e+00 : f32
    %519 = vector.broadcast %cst_262 : f32 to vector<16x64xf32>
    %520 = arith.select %518, %508, %519 : vector<16x64xi1>, vector<16x64xf32>
    %c15_i32_263 = arith.constant 15 : i32
    %521 = tpu.dynamic_rotate %507 by %c15_i32_263 dim 0 : vector<16x64xf32>, i32 -> vector<16x64xf32>
    %522 = tpu.iota {dimensions = array<i32: 0>} : vector<16x64xi32>
    %c1_i32_264 = arith.constant 1 : i32
    %523 = vector.broadcast %c1_i32_264 : i32 to vector<16x64xi32>
    %524 = arith.addi %522, %523 : vector<16x64xi32>
    %c0_i32_265 = arith.constant 0 : i32
    %525 = vector.broadcast %c0_i32_265 : i32 to vector<16x64xi32>
    %526 = arith.cmpi sge, %524, %525 : vector<16x64xi32>
    %c1_i32_266 = arith.constant 1 : i32
    %527 = vector.broadcast %c1_i32_266 : i32 to vector<16x64xi32>
    %528 = arith.addi %522, %527 : vector<16x64xi32>
    %c16_i32_267 = arith.constant 16 : i32
    %529 = vector.broadcast %c16_i32_267 : i32 to vector<16x64xi32>
    %530 = arith.cmpi slt, %528, %529 : vector<16x64xi32>
    %531 = arith.andi %526, %530 : vector<16x64xi1>
    %cst_268 = arith.constant 0.000000e+00 : f32
    %532 = vector.broadcast %cst_268 : f32 to vector<16x64xf32>
    %533 = arith.select %531, %521, %532 : vector<16x64xi1>, vector<16x64xf32>
    %534 = tpu.concatenate %520, %507, %533 in 1 : vector<16x64xf32>, vector<16x64xf32>, vector<16x64xf32> -> vector<16x192xf32>
    %cst_269 = arith.constant dense<0.000000e+00> : vector<16x32xf32>
    %535 = tpu.matmul %534, %505, %cst_269 {dimension_numbers = #tpu.dot_dimension_numbers<[1], [0], [0], [1], [0, 0, 1, 1], [], []>} : vector<16x192xf32>, vector<192x32xf32>, vector<16x32xf32> -> vector<16x32xf32>
    %536 = vector.broadcast %506 : vector<1x32xf32> to vector<16x32xf32>
    %537 = arith.addf %535, %536 : vector<16x32xf32>
    %cst_270 = arith.constant 0.000000e+00 : f32
    %538 = vector.broadcast %cst_270 : f32 to vector<16x32xf32>
    %539 = arith.maximumf %537, %538 : vector<16x32xf32>
    %c3112 = arith.constant 3112 : index
    %c0_271 = arith.constant 0 : index
    %540 = vector.load %arg2[%c3112, %c0_271] : memref<3424x128xf32, #tpu.memory_space<vmem>>, vector<96x32xf32>
    %c3208 = arith.constant 3208 : index
    %c0_272 = arith.constant 0 : index
    %541 = vector.load %arg2[%c3208, %c0_272] : memref<3424x128xf32, #tpu.memory_space<vmem>>, vector<1x32xf32>
    %c1_i32_273 = arith.constant 1 : i32
    %542 = tpu.dynamic_rotate %539 by %c1_i32_273 dim 0 : vector<16x32xf32>, i32 -> vector<16x32xf32>
    %cst_274 = arith.constant 0.000000e+00 : f32
    %543 = vector.broadcast %cst_274 : f32 to vector<16x32xf32>
    %544 = arith.select %85, %542, %543 : vector<16x32xi1>, vector<16x32xf32>
    %c15_i32_275 = arith.constant 15 : i32
    %545 = tpu.dynamic_rotate %539 by %c15_i32_275 dim 0 : vector<16x32xf32>, i32 -> vector<16x32xf32>
    %cst_276 = arith.constant 0.000000e+00 : f32
    %546 = vector.broadcast %cst_276 : f32 to vector<16x32xf32>
    %547 = arith.select %98, %545, %546 : vector<16x32xi1>, vector<16x32xf32>
    %548 = tpu.concatenate %544, %539, %547 in 1 : vector<16x32xf32>, vector<16x32xf32>, vector<16x32xf32> -> vector<16x96xf32>
    %cst_277 = arith.constant dense<0.000000e+00> : vector<16x32xf32>
    %549 = tpu.matmul %548, %540, %cst_277 {dimension_numbers = #tpu.dot_dimension_numbers<[1], [0], [0], [1], [0, 0, 1, 1], [], []>} : vector<16x96xf32>, vector<96x32xf32>, vector<16x32xf32> -> vector<16x32xf32>
    %550 = vector.broadcast %541 : vector<1x32xf32> to vector<16x32xf32>
    %551 = arith.addf %549, %550 : vector<16x32xf32>
    %cst_278 = arith.constant dense<0.000000e+00> : vector<8x32xf32>
    %552 = tpu.matmul %141, %551, %cst_278 {dimension_numbers = #tpu.dot_dimension_numbers<[1], [0], [0], [1], [0, 0, 1, 1], [], []>} : vector<8x16xf32>, vector<16x32xf32>, vector<8x32xf32> -> vector<8x32xf32>
    %cst_279 = arith.constant dense<0.000000e+00> : vector<8x32xf32>
    %553 = tpu.matmul %143, %551, %cst_279 {dimension_numbers = #tpu.dot_dimension_numbers<[1], [0], [0], [1], [0, 0, 1, 1], [], []>} : vector<8x16xf32>, vector<16x32xf32>, vector<8x32xf32> -> vector<8x32xf32>
    %554 = arith.maximumf %552, %553 : vector<8x32xf32>
    %c3352 = arith.constant 3352 : index
    %c0_280 = arith.constant 0 : index
    %555 = vector.load %arg2[%c3352, %c0_280] : memref<3424x128xf32, #tpu.memory_space<vmem>>, vector<40x8xf32>
    %cst_281 = arith.constant dense<0.000000e+00> : vector<40x32xf32>
    %556 = tpu.matmul %555, %554, %cst_281 {dimension_numbers = #tpu.dot_dimension_numbers<[1], [0], [0], [1], [0, 0, 1, 1], [], []>} : vector<40x8xf32>, vector<8x32xf32>, vector<40x32xf32> -> vector<40x32xf32>
    %c3216 = arith.constant 3216 : index
    %c0_282 = arith.constant 0 : index
    %557 = vector.load %arg2[%c3216, %c0_282] : memref<3424x128xf32, #tpu.memory_space<vmem>>, vector<32x32xf32>
    %c3248 = arith.constant 3248 : index
    %c0_283 = arith.constant 0 : index
    %558 = vector.load %arg2[%c3248, %c0_283] : memref<3424x128xf32, #tpu.memory_space<vmem>>, vector<1x32xf32>
    %cst_284 = arith.constant dense<0.000000e+00> : vector<40x32xf32>
    %559 = tpu.matmul %556, %557, %cst_284 {dimension_numbers = #tpu.dot_dimension_numbers<[1], [0], [0], [1], [0, 0, 1, 1], [], []>} : vector<40x32xf32>, vector<32x32xf32>, vector<40x32xf32> -> vector<40x32xf32>
    %560 = vector.broadcast %558 : vector<1x32xf32> to vector<40x32xf32>
    %561 = arith.addf %559, %560 : vector<40x32xf32>
    %c3392 = arith.constant 3392 : index
    %c0_285 = arith.constant 0 : index
    %562 = vector.load %arg2[%c3392, %c0_285] : memref<3424x128xf32, #tpu.memory_space<vmem>>, vector<32x8xf32>
    %cst_286 = arith.constant dense<0.000000e+00> : vector<40x8xf32>
    %563 = tpu.matmul %561, %562, %cst_286 {dimension_numbers = #tpu.dot_dimension_numbers<[1], [0], [0], [1], [0, 0, 1, 1], [], []>} : vector<40x32xf32>, vector<32x8xf32>, vector<40x8xf32> -> vector<40x8xf32>
    %c3256 = arith.constant 3256 : index
    %c0_287 = arith.constant 0 : index
    %564 = vector.load %arg2[%c3256, %c0_287] : memref<3424x128xf32, #tpu.memory_space<vmem>>, vector<24x128xf32>
    %c3280 = arith.constant 3280 : index
    %c0_288 = arith.constant 0 : index
    %565 = vector.load %arg2[%c3280, %c0_288] : memref<3424x128xf32, #tpu.memory_space<vmem>>, vector<1x128xf32>
    %c1_i32_289 = arith.constant 1 : i32
    %566 = tpu.dynamic_rotate %563 by %c1_i32_289 dim 0 : vector<40x8xf32>, i32 -> vector<40x8xf32>
    %567 = tpu.iota {dimensions = array<i32: 0>} : vector<40x8xi32>
    %c-1_i32_290 = arith.constant -1 : i32
    %568 = vector.broadcast %c-1_i32_290 : i32 to vector<40x8xi32>
    %569 = arith.addi %567, %568 : vector<40x8xi32>
    %c0_i32_291 = arith.constant 0 : i32
    %570 = vector.broadcast %c0_i32_291 : i32 to vector<40x8xi32>
    %571 = arith.cmpi sge, %569, %570 : vector<40x8xi32>
    %c-1_i32_292 = arith.constant -1 : i32
    %572 = vector.broadcast %c-1_i32_292 : i32 to vector<40x8xi32>
    %573 = arith.addi %567, %572 : vector<40x8xi32>
    %c40_i32 = arith.constant 40 : i32
    %574 = vector.broadcast %c40_i32 : i32 to vector<40x8xi32>
    %575 = arith.cmpi slt, %573, %574 : vector<40x8xi32>
    %576 = arith.andi %571, %575 : vector<40x8xi1>
    %cst_293 = arith.constant 0.000000e+00 : f32
    %577 = vector.broadcast %cst_293 : f32 to vector<40x8xf32>
    %578 = arith.select %576, %566, %577 : vector<40x8xi1>, vector<40x8xf32>
    %c39_i32 = arith.constant 39 : i32
    %579 = tpu.dynamic_rotate %563 by %c39_i32 dim 0 : vector<40x8xf32>, i32 -> vector<40x8xf32>
    %580 = tpu.iota {dimensions = array<i32: 0>} : vector<40x8xi32>
    %c1_i32_294 = arith.constant 1 : i32
    %581 = vector.broadcast %c1_i32_294 : i32 to vector<40x8xi32>
    %582 = arith.addi %580, %581 : vector<40x8xi32>
    %c0_i32_295 = arith.constant 0 : i32
    %583 = vector.broadcast %c0_i32_295 : i32 to vector<40x8xi32>
    %584 = arith.cmpi sge, %582, %583 : vector<40x8xi32>
    %c1_i32_296 = arith.constant 1 : i32
    %585 = vector.broadcast %c1_i32_296 : i32 to vector<40x8xi32>
    %586 = arith.addi %580, %585 : vector<40x8xi32>
    %c40_i32_297 = arith.constant 40 : i32
    %587 = vector.broadcast %c40_i32_297 : i32 to vector<40x8xi32>
    %588 = arith.cmpi slt, %586, %587 : vector<40x8xi32>
    %589 = arith.andi %584, %588 : vector<40x8xi1>
    %cst_298 = arith.constant 0.000000e+00 : f32
    %590 = vector.broadcast %cst_298 : f32 to vector<40x8xf32>
    %591 = arith.select %589, %579, %590 : vector<40x8xi1>, vector<40x8xf32>
    %592 = tpu.concatenate %578, %563, %591 in 1 : vector<40x8xf32>, vector<40x8xf32>, vector<40x8xf32> -> vector<40x24xf32>
    %cst_299 = arith.constant dense<0.000000e+00> : vector<40x128xf32>
    %593 = tpu.matmul %592, %564, %cst_299 {dimension_numbers = #tpu.dot_dimension_numbers<[1], [0], [0], [1], [0, 0, 1, 1], [], []>} : vector<40x24xf32>, vector<24x128xf32>, vector<40x128xf32> -> vector<40x128xf32>
    %594 = vector.broadcast %565 : vector<1x128xf32> to vector<40x128xf32>
    %595 = arith.addf %593, %594 : vector<40x128xf32>
    %cst_300 = arith.constant dense<0xFF800000> : vector<40xf32>
    %596 = vector.multi_reduction <maximumf>, %595, %cst_300 [1] : vector<40x128xf32> to vector<40xf32>
    %597 = vector.shape_cast %596 : vector<40xf32> to vector<40x1xf32>
    %598 = vector.broadcast %597 : vector<40x1xf32> to vector<40x128xf32>
    %599 = arith.subf %595, %598 : vector<40x128xf32>
    %600 = math.exp %599 : vector<40x128xf32>
    %cst_301 = arith.constant dense<0.000000e+00> : vector<40xf32>
    %601 = vector.multi_reduction <add>, %600, %cst_301 [1] : vector<40x128xf32> to vector<40xf32>
    %602 = vector.shape_cast %601 : vector<40xf32> to vector<40x1xf32>
    %603 = vector.broadcast %602 : vector<40x1xf32> to vector<40x128xf32>
    %604 = arith.divf %600, %603 : vector<40x128xf32>
    %c0_302 = arith.constant 0 : index
    %c0_303 = arith.constant 0 : index
    %c0_304 = arith.constant 0 : index
    %605 = vector.load %arg3[%c0_302, %c0_303, %c0_304] : memref<1x40x128xf32, #tpu.memory_space<vmem>>, vector<1x40x128xf32>
    %606 = vector.shape_cast %605 : vector<1x40x128xf32> to vector<40x128xf32>
    %607 = vector.shape_cast %604 : vector<40x128xf32> to vector<1x40x128xf32>
    tpu.vector_store %arg3[%c0_302, %c0_303, %c0_304], %607 {strides = array<i32>} : memref<1x40x128xf32, #tpu.memory_space<vmem>>, vector<1x40x128xf32>,
    return
  }
  func.func @transform_0(%arg0: i32) -> (i32, i32, i32) {
    %c0_i32 = arith.constant 0 : i32
    %c0_i32_0 = arith.constant 0 : i32
    %c0_i32_1 = arith.constant 0 : i32
    return %arg0, %c0_i32, %c0_i32_0 : i32, i32, i32
  }
  func.func @transform_1(%arg0: i32) -> (i32, i32) {
    %c0_i32 = arith.constant 0 : i32
    %c0_i32_0 = arith.constant 0 : i32
    %c0_i32_1 = arith.constant 0 : i32
    return %c0_i32, %c0_i32_0 : i32, i32
  }
  func.func @transform_2(%arg0: i32) -> (i32, i32, i32) {
    %c0_i32 = arith.constant 0 : i32
    %c0_i32_0 = arith.constant 0 : i32
    %c0_i32_1 = arith.constant 0 : i32
    return %arg0, %c0_i32, %c0_i32_0 : i32, i32, i32
  }
}

</mosaic_0001>

<llo_original>
// kernel: forward.1
$region0: #{forward.1}
  #allocation0 [shape = 'u32[]', space=smem, size = 0x4, offset = 0x4, fixed_abs, tag = 'smem constant byte address 0x4 - core index']
  #allocation1 [shape = 'u32[144,128]{1,0:T(1,128)}', space=vmem, size = 0x12000, scoped, tag = 'internal scratch']
  %s0 = inlined_call_operand.vmem [shape: f32[2,32,4], index: 0, kind: input, shape index: {}]
  %s1 = inlined_call_operand.hbm [shape: f32[3424,128], index: 1, kind: input, shape index: {}]
  %s2 = inlined_call_operand.vmem [shape: f32[2,40,128], index: 2, kind: output, shape index: {}]
  %s3 = sld [smem:[#allocation0]]
  $region45: #{forward.1} parent=0
    _
  %s5 = ssub.s32 1, %s3
  %s6 = scalar_select 0, %s5, %s3
  $region1: #{forward.1} parent=0
    #allocation2 [shape = 'u8[1753088]{0}', space=vmem, size = 0x1ac000, scoped, tag = 'input window, operand 1, single buffered']
    #allocation3 [shape = 's32[2]{0}', space=sflag, size = 0x8, scoped, tag = 'scoped memory for forward.1']
    %7 = vsyncpa [#allocation3], 0
    loop: start=0, step=1, limit=4
    $region2: #{forward.1} parent=1 // loop_pre_header
      _
    $region3: #{forward.1} parent=1 // loop_header
      %s9 = sphi 0, %s13
      %p10 = scmp.ge.s32.totalorder %s9, 4
      %s19 = sphi 0, %s21
      %s22 = sphi 0, %s19
      %s23 = sphi 0, %s22
      %s39 = sphi 0, %s23
      %s43 = sphi 0, %s43
      %s45 = sphi 0, %s43
      %s46 = sphi 0, %s45
      %s60 = sphi 0, %s46
      %s66 = sphi 0, %s68
      %s69 = sphi 0, %s66
      %s70 = sphi 0, %s69
      %s86 = sphi 0, %s70
    $region4: #{forward.1} parent=1 // loop_header_branch
      %12 = sbr.rel (%p10) target = $region8
    $region5: #{forward.1} parent=1 // loop_body
      %s14 = ssub.s32 %s9, 1
      %s15 = ssub.s32 %s9, 2
      %s16 = sadd.s32 %s9, 1
      %s17 = ssub.s32 %s9, %s16
      %p18 = scmp.eq.s32.totalorder %s17, 0
      %s20 = sadd.s32 %s19, 1
      %s21 = scalar_select %p18, %s19, %s20
      %p24 = pneg %p18
      %p25 = scmp.eq.s32.totalorder %s9, 1
      %p26 = por %p24, %p25
      %p27 = scmp.ne.s32.totalorder %s19, %s22
      %p28 = scmp.eq.s32.totalorder %s9, 0
      %p29 = por %p27, %p28
      %p30 = scmp.ne.s32.totalorder %s19, %s22
      %p31 = scmp.eq.s32.totalorder %s14, 1
      %p32 = por %p30, %p31
      %p33 = scmp.ne.s32.totalorder %s22, %s23
      %p34 = scmp.eq.s32.totalorder %s14, 0
      %p35 = por %p33, %p34
      %p36 = scmp.ne.s32.totalorder %s22, %s23
      %p37 = scmp.eq.s32.totalorder %s15, 1
      %p38 = por %p36, %p37
      %p40 = scmp.ne.s32.totalorder %s23, %s39
      %p41 = scmp.eq.s32.totalorder %s15, 0
      %p42 = por %p40, %p41
      %s44 = sadd.s32 %s43, 1
      %p47 = scmp.eq.s32.totalorder %s9, 1
      %p48 = scmp.ne.s32.totalorder %s43, %s45
      %p49 = scmp.eq.s32.totalorder %s9, 0
      %p50 = por %p48, %p49
      %p51 = scmp.ne.s32.totalorder %s43, %s45
      %p52 = scmp.eq.s32.totalorder %s14, 1
      %p53 = por %p51, %p52
      %p54 = scmp.ne.s32.totalorder %s45, %s46
      %p55 = scmp.eq.s32.totalorder %s14, 0
      %p56 = por %p54, %p55
      %p57 = scmp.ne.s32.totalorder %s45, %s46
      %p58 = scmp.eq.s32.totalorder %s15, 1
      %p59 = por %p57, %p58
      %p61 = scmp.ne.s32.totalorder %s46, %s60
      %p62 = scmp.eq.s32.totalorder %s15, 0
      %p63 = por %p61, %p62
      %s64 = ssub.s32 %s9, %s16
      %p65 = scmp.eq.s32.totalorder %s64, 0
      %s67 = sadd.s32 %s66, 1
      %s68 = scalar_select %p65, %s66, %s67
      %p71 = pneg %p65
      %p72 = scmp.eq.s32.totalorder %s9, 1
      %p73 = por %p71, %p72
      %p74 = scmp.ne.s32.totalorder %s66, %s69
      %p75 = scmp.eq.s32.totalorder %s9, 0
      %p76 = por %p74, %p75
      %p77 = scmp.ne.s32.totalorder %s66, %s69
      %p78 = scmp.eq.s32.totalorder %s14, 1
      %p79 = por %p77, %p78
      %p80 = scmp.ne.s32.totalorder %s69, %s70
      %p81 = scmp.eq.s32.totalorder %s14, 0
      %p82 = por %p80, %p81
      %p83 = scmp.ne.s32.totalorder %s69, %s70
      %p84 = scmp.eq.s32.totalorder %s15, 1
      %p85 = por %p83, %p84
      %p87 = scmp.ne.s32.totalorder %s70, %s86
      %p88 = scmp.eq.s32.totalorder %s15, 0
      %p89 = por %p87, %p88
      %p90 = scmp.le.s32.totalorder 1, %s9
      %p91 = scmp.lt.s32.totalorder %s9, 3
      %p92 = pnand %p90, %p91
      %p93 = pneg %p92
      // Predicated region
      $region9: #{forward.1} parent=5 // pred_check
        _
      $region10: #{forward.1} parent=5 // pred_check_branch
        %95 = sbr.rel (%p92) target = $region12
      $region11: #{forward.1} parent=5 // pred_region
        %s96 = ssub.s32 %s9, 1
        // Predicated region
        $region13: #{forward.1} parent=11 // pred_check
          %p97 = pneg %p56
        $region14: #{forward.1} parent=11 // pred_check_branch
          %99 = sbr.rel (%p97) target = $region16
        $region15: #{forward.1} parent=11 // pred_region
          %s101 = ssub.s32 54784, 54784
          %102 = vsyncadd [#allocation3], %s101
          %s103 = sshll.u32 [#allocation2], 4
          %s104 = int_to_ptr.vmem [resolvable:$true] %s103
          %109 = dma.hbm_to_vmem [thread:$0]  %s1, 54784, %s104, [#allocation3], 128, 128, 8
        $region16: #{forward.1} parent=11 // pred_fallthru
          _
      $region12: #{forward.1} parent=5 // pred_fallthru
        _
      %p110 = scmp.lt.s32.totalorder %s9, 2
      // Predicated region
      $region17: #{forward.1} parent=5 // pred_check
        %p111 = pneg %p110
      $region18: #{forward.1} parent=5 // pred_check_branch
        %113 = sbr.rel (%p111) target = $region20
      $region19: #{forward.1} parent=5 // pred_region
        // Predicated region
        $region21: #{forward.1} parent=19 // pred_check
          %p114 = pneg %p29
        $region22: #{forward.1} parent=19 // pred_check_branch
          %116 = sbr.rel (%p114) target = $region24
        $region23: #{forward.1} parent=19 // pred_region
          %p117 = scmp.lt.s32.totalorder %s9, 1
          %s118 = scalar_select %p117, %s9, 1
          %s119 = smul.addr %s118, 4
          %s120 = smul.addr %s119, 8
          %s121 = scalar_lea.vmem %s0, %s120
        $region24: #{forward.1} parent=19 // pred_fallthru
          _
      $region20: #{forward.1} parent=5 // pred_fallthru
        _
      %p122 = scmp.le.s32.totalorder 1, %s9
      %p123 = scmp.lt.s32.totalorder %s9, 3
      %p124 = pnand %p122, %p123
      %p125 = pneg %p124
      // Predicated region
      $region25: #{forward.1} parent=5 // pred_check
        _
      $region26: #{forward.1} parent=5 // pred_check_branch
        %127 = sbr.rel (%p124) target = $region28
      $region27: #{forward.1} parent=5 // pred_region
        %s128 = ssub.s32 %s9, 1
        // Predicated region
        $region29: #{forward.1} parent=27 // pred_check
          %p129 = pneg %p56
        $region30: #{forward.1} parent=27 // pred_check_branch
          %131 = sbr.rel (%p129) target = $region32
        $region31: #{forward.1} parent=27 // pred_region
          %132 = dma.done [#allocation3], 54784
        $region32: #{forward.1} parent=27 // pred_fallthru
          _
        %p133 = scmp.lt.s32.totalorder %s14, 1
        %s134 = scalar_select %p133, %s14, 1
        %s135 = smul.addr %s134, 4
        %s136 = smul.addr %s135, 8
        %s137 = scalar_lea.vmem %s0, %s136
        %p138 = pneg %p35
        %p139 = pneg %p32
        %p140 = pneg %p56
        %p141 = pneg %p53
        %p142 = pneg %p82
        %p143 = pneg %p79
        %p144 = scmp.lt.s32.totalorder %s14, 1
        %s145 = scalar_select %p144, %s14, 1
        %s146 = smul.addr %s145, 5
        %s147 = smul.addr %s146, 8
        %s148 = scalar_lea.vmem %s2, %s147
        %p149 = scmp.lt.s32.totalorder %s14, 1
        %s150 = scalar_select %p149, %s14, 1
        %s151 = smul.addr %s150, 4
        %s152 = smul.addr %s151, 8
        %s153 = scalar_lea.vmem %s0, %s152
        %p154 = scmp.lt.s32.totalorder %s14, 1
        %s155 = scalar_select %p154, %s14, 1
        %s156 = smul.addr %s155, 5
        %s157 = smul.addr %s156, 8
        %s158 = scalar_lea.vmem %s2, %s157
        %v159 = vld [vmem:[%s153] sm:$0xff]
        %v160 = vld [vmem:[%s153 + $0x8] sm:$0xff]
        %v161 = vld [vmem:[%s153 + $0x10] sm:$0xff]
        %v162 = vld [vmem:[%s153 + $0x18] sm:$0xff]
        %v163 = vld [vmem:[#allocation2] sm:$0xff]
        %v164 = vld [vmem:[#allocation2 + $0x8] sm:$0xf]
        %v165 = vld [vmem:[#allocation2 + $0x10] sm:$0x1]
        %v166 = vrot.slane %v159, 7
        %v167 = vrot.slane %v160, 7
        %v168 = vrot.slane %v161, 7
        %v169 = vrot.slane %v162, 7
        %v170 = vlaneseq
        %v171 = vshrl.u32 %v170, 7
        %vm172 = vcmp.lt.s32.totalorder %v171, 1
        %v173 = vsel %vm172, %v168, %v169
        %v174 = vsel %vm172, %v167, %v168
        %v175 = vsel %vm172, %v166, %v167
        %v176 = vsel %vm172, %v169, %v166
        %v177 = vadd.s32 %v171, 8
        %v178 = vadd.s32 %v171, 16
        %v179 = vadd.s32 %v171, 24
        %v180 = vadd.s32 %v171, 4294967295
        %v181 = vadd.s32 %v177, 4294967295
        %v182 = vadd.s32 %v178, 4294967295
        %v183 = vadd.s32 %v179, 4294967295
        %vm184 = vcmp.ge.s32.totalorder %v180, 0
        %vm185 = vcmp.ge.s32.totalorder %v181, 0
        %vm186 = vcmp.ge.s32.totalorder %v182, 0
        %vm187 = vcmp.ge.s32.totalorder %v183, 0
        %vm188 = vcmp.lt.s32.totalorder %v180, 32
        %vm189 = vcmp.lt.s32.totalorder %v181, 32
        %vm190 = vcmp.lt.s32.totalorder %v182, 32
        %vm191 = vcmp.lt.s32.totalorder %v183, 32
        %vm192 = vmand %vm184, %vm188
        %vm193 = vmand %vm185, %vm189
        %vm194 = vmand %vm186, %vm190
        %vm195 = vmand %vm187, %vm191
        %v196 = vsel %vm192, %v176, 0.0
        %v197 = vsel %vm193, %v175, 0.0
        %v198 = vsel %vm194, %v174, 0.0
        %v199 = vsel %vm195, %v173, 0.0
        %v200 = vrot.slane %v159, 1
        %v201 = vrot.slane %v160, 1
        %v202 = vrot.slane %v161, 1
        %v203 = vrot.slane %v162, 1
        %vm204 = vcmp.lt.s32.totalorder %v171, 7
        %v205 = vsel %vm204, %v202, %v203
        %v206 = vsel %vm204, %v201, %v202
        %v207 = vsel %vm204, %v200, %v201
        %v208 = vsel %vm204, %v203, %v200
        %v209 = vadd.s32 %v171, 1
        %v210 = vadd.s32 %v177, 1
        %v211 = vadd.s32 %v178, 1
        %v212 = vadd.s32 %v179, 1
        %vm213 = vcmp.ge.s32.totalorder %v209, 0
        %vm214 = vcmp.ge.s32.totalorder %v210, 0
        %vm215 = vcmp.ge.s32.totalorder %v211, 0
        %vm216 = vcmp.ge.s32.totalorder %v212, 0
        %vm217 = vcmp.lt.s32.totalorder %v209, 32
        %vm218 = vcmp.lt.s32.totalorder %v210, 32
        %vm219 = vcmp.lt.s32.totalorder %v211, 32
        %vm220 = vcmp.lt.s32.totalorder %v212, 32
        %vm221 = vmand %vm213, %vm217
        %vm222 = vmand %vm214, %vm218
        %vm223 = vmand %vm215, %vm219
        %vm224 = vmand %vm216, %vm220
        %v225 = vsel %vm221, %v207, 0.0
        %v226 = vsel %vm222, %v206, 0.0
        %v227 = vsel %vm223, %v205, 0.0
        %v228 = vsel %vm224, %v208, 0.0
        %233 = vrot.lane.b32.xlu0 %v159, 4
        %v234 = vpop.permute.xlu0 %233
        %235 = vrot.lane.b32.xlu0 %v160, 4
        %v236 = vpop.permute.xlu0 %235
        %237 = vrot.lane.b32.xlu0 %v161, 4
        %v238 = vpop.permute.xlu0 %237
        %239 = vrot.lane.b32.xlu0 %v162, 4
        %v240 = vpop.permute.xlu0 %239
        %249 = vrot.lane.b32.xlu0 %v225, 8
        %v250 = vpop.permute.xlu0 %249
        %251 = vrot.lane.b32.xlu0 %v226, 8
        %v252 = vpop.permute.xlu0 %251
        %253 = vrot.lane.b32.xlu0 %v227, 8
        %v254 = vpop.permute.xlu0 %253
        %255 = vrot.lane.b32.xlu0 %v228, 8
        %v256 = vpop.permute.xlu0 %255
        %vm261 = vcmask 31744
        %v262 = vsel %vm261, %v196, %v234
        %v263 = vsel %vm261, %v197, %v236
        %v264 = vsel %vm261, %v198, %v238
        %v265 = vsel %vm261, %v199, %v240
        %vm266 = vcmask 64512
        %v267 = vsel %vm266, %v262, %v250
        %v268 = vsel %vm266, %v263, %v252
        %v269 = vsel %vm266, %v264, %v254
        %v270 = vsel %vm266, %v265, %v256
        %v271 = vlaneseq
        %v272 = vshrl.u32 %v271, 7
        %v273 = vsub.s32 0, %v272
        %v274 = vrot.slane %v165, %v273
        %vm275 = vcmask 97280
        %v277 = vsel %vm275, %v267, 0
        %v280 = vsel %vm275, %v268, 0
        %v283 = vsel %vm275, %v269, 0
        %v286 = vsel %vm275, %v270, 0
        %vm288 = vcmask 1043456
        %v290 = vsel %vm288, %v164, 0
        %292 = vmatprep.subr.mxu0 0.0
        %293 = vmatpush1.msra.mxu0 %v163
        %294 = vmatprep.subr.mxu0 0.0
        %295 = vmatpush1.msra.mxu0 %v290
        %296 = vmatprep.subr.mxu0 0.0
        %297 = vmatpush1.msra.mxu0 0.0
        %298 = vmatprep.subr.mxu0 0.0
        %299 = vmatpush1.msra.mxu0 0.0
        %300 = vmatprep.subr.mxu0 0.0
        %301 = vmatpush1.msra.mxu0 0.0
        %302 = vmatprep.subr.mxu0 0.0
        %303 = vmatpush1.msra.mxu0 0.0
        %304 = vmatprep.subr.mxu0 0.0
        %305 = vmatpush1.msra.mxu0 0.0
        %306 = vmatprep.subr.mxu0 0.0
        %307 = vmatpush1.msra.mxu0 0.0
        %308 = vmatprep.subr.mxu0 0.0
        %309 = vmatpush1.msra.mxu0 0.0
        %310 = vmatprep.subr.mxu0 0.0
        %311 = vmatpush1.msra.mxu0 0.0
        %312 = vmatprep.subr.mxu0 0.0
        %313 = vmatpush1.msra.mxu0 0.0
        %314 = vmatprep.subr.mxu0 0.0
        %315 = vmatpush1.msra.mxu0 0.0
        %316 = vmatprep.subr.mxu0 0.0
        %317 = vmatpush1.msra.mxu0 0.0
        %318 = vmatprep.subr.mxu0 0.0
        %319 = vmatpush1.msra.mxu0 0.0
        %320 = vmatprep.subr.mxu0 0.0
        %321 = vmatpush1.msra.mxu0 0.0
        %322 = vmatprep.subr.mxu0 0.0
        %323 = vmatpush1.msra.mxu0 0.0
        %324 = vmatprep.subr.mxu0 0.0
        %325 = vmatpush1.msra.mxu0 0.0
        %326 = vmatprep.subr.mxu0 0.0
        %327 = vmatpush1.msra.mxu0 0.0
        %328 = vmatprep.subr.mxu0 0.0
        %329 = vmatpush1.msra.mxu0 0.0
        %330 = vmatprep.subr.mxu0 0.0
        %331 = vmatpush1.msra.mxu0 0.0
        %332 = vmatprep.subr.mxu0 0.0
        %333 = vmatpush1.msra.mxu0 0.0
        %334 = vmatprep.subr.mxu0 0.0
        %335 = vmatpush1.msra.mxu0 0.0
        %336 = vmatprep.subr.mxu0 0.0
        %337 = vmatpush1.msra.mxu0 0.0
        %338 = vmatprep.subr.mxu0 0.0
        %339 = vmatpush1.msra.mxu0 0.0
        %340 = vmatprep.subr.mxu0 0.0
        %341 = vmatpush1.msra.mxu0 0.0
        %342 = vmatprep.subr.mxu0 0.0
        %343 = vmatpush1.msra.mxu0 0.0
        %344 = vmatprep.subr.mxu0 0.0
        %345 = vmatpush1.msra.mxu0 0.0
        %346 = vmatprep.subr.mxu0 0.0
        %347 = vmatpush1.msra.mxu0 0.0
        %348 = vmatprep.subr.mxu0 0.0
        %349 = vmatpush1.msra.mxu0 0.0
        %350 = vmatprep.subr.mxu0 0.0
        %351 = vmatpush1.msra.mxu0 0.0
        %352 = vmatprep.subr.mxu0 0.0
        %353 = vmatpush1.msra.mxu0 0.0
        %354 = vmatprep.subr.mxu0 0.0
        %355 = vmatpush1.msra.mxu0 0.0
        %356 = vmatprep.mubr.f32.mxu0 0.0
        %357 = vmatmul.mubr.f32.gmra.mrb[0].mxu0 %v277
        %v358 = vpop.f32.mrb[0].mxu0
        %v359 = vadd.f32 %v274, %v358
        %v360 = vpop.f32.mrb[0].mxu0
        %361 = vmatprep.mubr.f32.mxu0 0.0
        %362 = vmatmul.mubr.f32.gmra.mrb[0].mxu0 %v280
        %v363 = vpop.f32.mrb[0].mxu0
        %v364 = vadd.f32 %v274, %v363
        %v365 = vpop.f32.mrb[0].mxu0
        %366 = vmatprep.mubr.f32.mxu0 0.0
        %367 = vmatmul.mubr.f32.gmra.mrb[0].mxu0 %v283
        %v368 = vpop.f32.mrb[0].mxu0
        %v369 = vadd.f32 %v274, %v368
        %v370 = vpop.f32.mrb[0].mxu0
        %371 = vmatprep.mubr.f32.mxu0 0.0
        %372 = vmatmul.mubr.f32.gmra.mrb[0].mxu0 %v286
        %v373 = vpop.f32.mrb[0].mxu0
        %v374 = vadd.f32 %v274, %v373
        %v375 = vpop.f32.mrb[0].mxu0
        %376 = vdwg.mxu0
        %v377 = vmax.f32 %v359, 0.0
        %v378 = vmax.f32 %v364, 0.0
        %v379 = vmax.f32 %v369, 0.0
        %v380 = vmax.f32 %v374, 0.0
        %v381 = vld [vmem:[#allocation2 + $0x18] sm:$0xff]
        %v382 = vld [vmem:[#allocation2 + $0x20] sm:$0xff]
        %v383 = vld [vmem:[#allocation2 + $0x28] sm:$0xff]
        %v384 = vld [vmem:[#allocation2 + $0x30] sm:$0xff]
        %v385 = vld [vmem:[#allocation2 + $0x38] sm:$0xff]
        %v386 = vld [vmem:[#allocation2 + $0x40] sm:$0xff]
        %v387 = vld [vmem:[#allocation2 + $0x48] sm:$0xff]
        %v388 = vld [vmem:[#allocation2 + $0x50] sm:$0xff]
        %v389 = vld [vmem:[#allocation2 + $0x58] sm:$0xff]
        %v390 = vld [vmem:[#allocation2 + $0x60] sm:$0xff]
        %v391 = vld [vmem:[#allocation2 + $0x68] sm:$0xff]
        %v392 = vld [vmem:[#allocation2 + $0x70] sm:$0xff]
        %v393 = vld [vmem:[#allocation2 + $0x78] sm:$0x1]
        %v394 = vrot.slane %v377, 7
        %v395 = vrot.slane %v378, 7
        %v396 = vrot.slane %v379, 7
        %v397 = vrot.slane %v380, 7
        %v398 = vsel %vm172, %v396, %v397
        %v399 = vsel %vm172, %v395, %v396
        %v400 = vsel %vm172, %v394, %v395
        %v401 = vsel %vm172, %v397, %v394
        %v402 = vsel %vm192, %v401, 0.0
        %v403 = vsel %vm193, %v400, 0.0
        %v404 = vsel %vm194, %v399, 0.0
        %v405 = vsel %vm195, %v398, 0.0
        %v406 = vrot.slane %v377, 1
        %v407 = vrot.slane %v378, 1
        %v408 = vrot.slane %v379, 1
        %v409 = vrot.slane %v380, 1
        %v410 = vsel %vm204, %v408, %v409
        %v411 = vsel %vm204, %v407, %v408
        %v412 = vsel %vm204, %v406, %v407
        %v413 = vsel %vm204, %v409, %v406
        %v414 = vsel %vm221, %v412, 0.0
        %v415 = vsel %vm222, %v411, 0.0
        %v416 = vsel %vm223, %v410, 0.0
        %v417 = vsel %vm224, %v413, 0.0
        %422 = vrot.lane.b32.xlu0 %v377, 32
        %v423 = vpop.permute.xlu0 %422
        %424 = vrot.lane.b32.xlu0 %v378, 32
        %v425 = vpop.permute.xlu0 %424
        %426 = vrot.lane.b32.xlu0 %v379, 32
        %v427 = vpop.permute.xlu0 %426
        %428 = vrot.lane.b32.xlu0 %v380, 32
        %v429 = vpop.permute.xlu0 %428
        %438 = vrot.lane.b32.xlu0 %v414, 64
        %v439 = vpop.permute.xlu0 %438
        %440 = vrot.lane.b32.xlu0 %v415, 64
        %v441 = vpop.permute.xlu0 %440
        %442 = vrot.lane.b32.xlu0 %v416, 64
        %v443 = vpop.permute.xlu0 %442
        %444 = vrot.lane.b32.xlu0 %v417, 64
        %v445 = vpop.permute.xlu0 %444
        %vm450 = vcmask 261120
        %v451 = vsel %vm450, %v402, %v423
        %v452 = vsel %vm450, %v403, %v425
        %v453 = vsel %vm450, %v404, %v427
        %v454 = vsel %vm450, %v405, %v429
        %vm455 = vcmask 523264
        %v456 = vsel %vm455, %v451, %v439
        %v457 = vsel %vm455, %v452, %v441
        %v458 = vsel %vm455, %v453, %v443
        %v459 = vsel %vm455, %v454, %v445
        %v460 = vlaneseq
        %v461 = vshrl.u32 %v460, 7
        %v462 = vsub.s32 0, %v461
        %v463 = vrot.slane %v393, %v462
        %vm464 = vcmask 785408
        %v466 = vsel %vm464, %v456, 0
        %v469 = vsel %vm464, %v457, 0
        %v472 = vsel %vm464, %v458, 0
        %v475 = vsel %vm464, %v459, 0
        %477 = vmatprep.subr.mxu0 0.0
        %478 = vmatpush1.msra.mxu0 %v381
        %479 = vmatprep.subr.mxu0 0.0
        %480 = vmatpush1.msra.mxu0 %v382
        %481 = vmatprep.subr.mxu0 0.0
        %482 = vmatpush1.msra.mxu0 %v383
        %483 = vmatprep.subr.mxu0 0.0
        %484 = vmatpush1.msra.mxu0 %v384
        %485 = vmatprep.subr.mxu0 0.0
        %486 = vmatpush1.msra.mxu0 %v385
        %487 = vmatprep.subr.mxu0 0.0
        %488 = vmatpush1.msra.mxu0 %v386
        %489 = vmatprep.subr.mxu0 0.0
        %490 = vmatpush1.msra.mxu0 %v387
        %491 = vmatprep.subr.mxu0 0.0
        %492 = vmatpush1.msra.mxu0 %v388
        %493 = vmatprep.subr.mxu0 0.0
        %494 = vmatpush1.msra.mxu0 %v389
        %495 = vmatprep.subr.mxu0 0.0
        %496 = vmatpush1.msra.mxu0 %v390
        %497 = vmatprep.subr.mxu0 0.0
        %498 = vmatpush1.msra.mxu0 %v391
        %499 = vmatprep.subr.mxu0 0.0
        %500 = vmatpush1.msra.mxu0 %v392
        %501 = vmatprep.subr.mxu0 0.0
        %502 = vmatpush1.msra.mxu0 0.0
        %503 = vmatprep.subr.mxu0 0.0
        %504 = vmatpush1.msra.mxu0 0.0
        %505 = vmatprep.subr.mxu0 0.0
        %506 = vmatpush1.msra.mxu0 0.0
        %507 = vmatprep.subr.mxu0 0.0
        %508 = vmatpush1.msra.mxu0 0.0
        %509 = vmatprep.subr.mxu0 0.0
        %510 = vmatpush1.msra.mxu0 0.0
        %511 = vmatprep.subr.mxu0 0.0
        %512 = vmatpush1.msra.mxu0 0.0
        %513 = vmatprep.subr.mxu0 0.0
        %514 = vmatpush1.msra.mxu0 0.0
        %515 = vmatprep.subr.mxu0 0.0
        %516 = vmatpush1.msra.mxu0 0.0
        %517 = vmatprep.subr.mxu0 0.0
        %518 = vmatpush1.msra.mxu0 0.0
        %519 = vmatprep.subr.mxu0 0.0
        %520 = vmatpush1.msra.mxu0 0.0
        %521 = vmatprep.subr.mxu0 0.0
        %522 = vmatpush1.msra.mxu0 0.0
        %523 = vmatprep.subr.mxu0 0.0
        %524 = vmatpush1.msra.mxu0 0.0
        %525 = vmatprep.subr.mxu0 0.0
        %526 = vmatpush1.msra.mxu0 0.0
        %527 = vmatprep.subr.mxu0 0.0
        %528 = vmatpush1.msra.mxu0 0.0
        %529 = vmatprep.subr.mxu0 0.0
        %530 = vmatpush1.msra.mxu0 0.0
        %531 = vmatprep.subr.mxu0 0.0
        %532 = vmatpush1.msra.mxu0 0.0
        %533 = vmatprep.subr.mxu0 0.0
        %534 = vmatpush1.msra.mxu0 0.0
        %535 = vmatprep.subr.mxu0 0.0
        %536 = vmatpush1.msra.mxu0 0.0
        %537 = vmatprep.subr.mxu0 0.0
        %538 = vmatpush1.msra.mxu0 0.0
        %539 = vmatprep.subr.mxu0 0.0
        %540 = vmatpush1.msra.mxu0 0.0
        %541 = vmatprep.mubr.f32.mxu0 0.0
        %542 = vmatmul.mubr.f32.gmra.mrb[0].mxu0 %v466
        %v543 = vpop.f32.mrb[0].mxu0
        %v544 = vadd.f32 %v463, %v543
        %v545 = vpop.f32.mrb[0].mxu0
        %546 = vmatprep.mubr.f32.mxu0 0.0
        %547 = vmatmul.mubr.f32.gmra.mrb[0].mxu0 %v469
        %v548 = vpop.f32.mrb[0].mxu0
        %v549 = vadd.f32 %v463, %v548
        %v550 = vpop.f32.mrb[0].mxu0
        %551 = vmatprep.mubr.f32.mxu0 0.0
        %552 = vmatmul.mubr.f32.gmra.mrb[0].mxu0 %v472
        %v553 = vpop.f32.mrb[0].mxu0
        %v554 = vadd.f32 %v463, %v553
        %v555 = vpop.f32.mrb[0].mxu0
        %556 = vmatprep.mubr.f32.mxu0 0.0
        %557 = vmatmul.mubr.f32.gmra.mrb[0].mxu0 %v475
        %v558 = vpop.f32.mrb[0].mxu0
        %v559 = vadd.f32 %v463, %v558
        %v560 = vpop.f32.mrb[0].mxu0
        %561 = vdwg.mxu0
        %v562 = vld [vmem:[#allocation2 + $0xce8] sm:$0xff]
        %v563 = vld [vmem:[#allocation2 + $0xcf0] sm:$0xff]
        %v565 = vsel %vm450, %v562, 0
        %v568 = vsel %vm450, %v563, 0
        %570 = vmatprep.subr.mxu0 0.0
        %571 = vmatpush1.msra.mxu0 %v544
        %572 = vmatprep.subr.mxu0 0.0
        %573 = vmatpush1.msra.mxu0 %v549
        %574 = vmatprep.subr.mxu0 0.0
        %575 = vmatpush1.msra.mxu0 %v554
        %576 = vmatprep.subr.mxu0 0.0
        %577 = vmatpush1.msra.mxu0 %v559
        %578 = vmatprep.subr.mxu0 0.0
        %579 = vmatpush1.msra.mxu0 0.0
        %580 = vmatprep.subr.mxu0 0.0
        %581 = vmatpush1.msra.mxu0 0.0
        %582 = vmatprep.subr.mxu0 0.0
        %583 = vmatpush1.msra.mxu0 0.0
        %584 = vmatprep.subr.mxu0 0.0
        %585 = vmatpush1.msra.mxu0 0.0
        %586 = vmatprep.subr.mxu0 0.0
        %587 = vmatpush1.msra.mxu0 0.0
        %588 = vmatprep.subr.mxu0 0.0
        %589 = vmatpush1.msra.mxu0 0.0
        %590 = vmatprep.subr.mxu0 0.0
        %591 = vmatpush1.msra.mxu0 0.0
        %592 = vmatprep.subr.mxu0 0.0
        %593 = vmatpush1.msra.mxu0 0.0
        %594 = vmatprep.subr.mxu0 0.0
        %595 = vmatpush1.msra.mxu0 0.0
        %596 = vmatprep.subr.mxu0 0.0
        %597 = vmatpush1.msra.mxu0 0.0
        %598 = vmatprep.subr.mxu0 0.0
        %599 = vmatpush1.msra.mxu0 0.0
        %600 = vmatprep.subr.mxu0 0.0
        %601 = vmatpush1.msra.mxu0 0.0
        %602 = vmatprep.subr.mxu0 0.0
        %603 = vmatpush1.msra.mxu0 0.0
        %604 = vmatprep.subr.mxu0 0.0
        %605 = vmatpush1.msra.mxu0 0.0
        %606 = vmatprep.subr.mxu0 0.0
        %607 = vmatpush1.msra.mxu0 0.0
        %608 = vmatprep.subr.mxu0 0.0
        %609 = vmatpush1.msra.mxu0 0.0
        %610 = vmatprep.subr.mxu0 0.0
        %611 = vmatpush1.msra.mxu0 0.0
        %612 = vmatprep.subr.mxu0 0.0
        %613 = vmatpush1.msra.mxu0 0.0
        %614 = vmatprep.subr.mxu0 0.0
        %615 = vmatpush1.msra.mxu0 0.0
        %616 = vmatprep.subr.mxu0 0.0
        %617 = vmatpush1.msra.mxu0 0.0
        %618 = vmatprep.subr.mxu0 0.0
        %619 = vmatpush1.msra.mxu0 0.0
        %620 = vmatprep.subr.mxu0 0.0
        %621 = vmatpush1.msra.mxu0 0.0
        %622 = vmatprep.subr.mxu0 0.0
        %623 = vmatpush1.msra.mxu0 0.0
        %624 = vmatprep.subr.mxu0 0.0
        %625 = vmatpush1.msra.mxu0 0.0
        %626 = vmatprep.subr.mxu0 0.0
        %627 = vmatpush1.msra.mxu0 0.0
        %628 = vmatprep.subr.mxu0 0.0
        %629 = vmatpush1.msra.mxu0 0.0
        %630 = vmatprep.subr.mxu0 0.0
        %631 = vmatpush1.msra.mxu0 0.0
        %632 = vmatprep.subr.mxu0 0.0
        %633 = vmatpush1.msra.mxu0 0.0
        %634 = vmatprep.mubr.f32.mxu0 0.0
        %635 = vmatmul.mubr.f32.gmra.mrb[0].mxu0 %v565
        %v636 = vpop.f32.mrb[0].mxu0
        %v637 = vadd.f32 0.0, %v636
        %v638 = vpop.f32.mrb[0].mxu0
        %639 = vmatprep.mubr.f32.mxu0 0.0
        %640 = vmatmul.mubr.f32.gmra.mrb[0].mxu0 %v568
        %v641 = vpop.f32.mrb[0].mxu0
        %v642 = vadd.f32 0.0, %v641
        %v643 = vpop.f32.mrb[0].mxu0
        %644 = vdwg.mxu0
        %v645 = vld [vmem:[#allocation2 + $0xcf8] sm:$0xff]
        %v646 = vld [vmem:[#allocation2 + $0xd00] sm:$0xff]
        %v648 = vsel %vm450, %v645, 0
        %v651 = vsel %vm450, %v646, 0
        %653 = vmatprep.subr.mxu0 0.0
        %654 = vmatpush1.msra.mxu0 %v544
        %655 = vmatprep.subr.mxu0 0.0
        %656 = vmatpush1.msra.mxu0 %v549
        %657 = vmatprep.subr.mxu0 0.0
        %658 = vmatpush1.msra.mxu0 %v554
        %659 = vmatprep.subr.mxu0 0.0
        %660 = vmatpush1.msra.mxu0 %v559
        %661 = vmatprep.subr.mxu0 0.0
        %662 = vmatpush1.msra.mxu0 0.0
        %663 = vmatprep.subr.mxu0 0.0
        %664 = vmatpush1.msra.mxu0 0.0
        %665 = vmatprep.subr.mxu0 0.0
        %666 = vmatpush1.msra.mxu0 0.0
        %667 = vmatprep.subr.mxu0 0.0
        %668 = vmatpush1.msra.mxu0 0.0
        %669 = vmatprep.subr.mxu0 0.0
        %670 = vmatpush1.msra.mxu0 0.0
        %671 = vmatprep.subr.mxu0 0.0
        %672 = vmatpush1.msra.mxu0 0.0
        %673 = vmatprep.subr.mxu0 0.0
        %674 = vmatpush1.msra.mxu0 0.0
        %675 = vmatprep.subr.mxu0 0.0
        %676 = vmatpush1.msra.mxu0 0.0
        %677 = vmatprep.subr.mxu0 0.0
        %678 = vmatpush1.msra.mxu0 0.0
        %679 = vmatprep.subr.mxu0 0.0
        %680 = vmatpush1.msra.mxu0 0.0
        %681 = vmatprep.subr.mxu0 0.0
        %682 = vmatpush1.msra.mxu0 0.0
        %683 = vmatprep.subr.mxu0 0.0
        %684 = vmatpush1.msra.mxu0 0.0
        %685 = vmatprep.subr.mxu0 0.0
        %686 = vmatpush1.msra.mxu0 0.0
        %687 = vmatprep.subr.mxu0 0.0
        %688 = vmatpush1.msra.mxu0 0.0
        %689 = vmatprep.subr.mxu0 0.0
        %690 = vmatpush1.msra.mxu0 0.0
        %691 = vmatprep.subr.mxu0 0.0
        %692 = vmatpush1.msra.mxu0 0.0
        %693 = vmatprep.subr.mxu0 0.0
        %694 = vmatpush1.msra.mxu0 0.0
        %695 = vmatprep.subr.mxu0 0.0
        %696 = vmatpush1.msra.mxu0 0.0
        %697 = vmatprep.subr.mxu0 0.0
        %698 = vmatpush1.msra.mxu0 0.0
        %699 = vmatprep.subr.mxu0 0.0
        %700 = vmatpush1.msra.mxu0 0.0
        %701 = vmatprep.subr.mxu0 0.0
        %702 = vmatpush1.msra.mxu0 0.0
        %703 = vmatprep.subr.mxu0 0.0
        %704 = vmatpush1.msra.mxu0 0.0
        %705 = vmatprep.subr.mxu0 0.0
        %706 = vmatpush1.msra.mxu0 0.0
        %707 = vmatprep.subr.mxu0 0.0
        %708 = vmatpush1.msra.mxu0 0.0
        %709 = vmatprep.subr.mxu0 0.0
        %710 = vmatpush1.msra.mxu0 0.0
        %711 = vmatprep.subr.mxu0 0.0
        %712 = vmatpush1.msra.mxu0 0.0
        %713 = vmatprep.subr.mxu0 0.0
        %714 = vmatpush1.msra.mxu0 0.0
        %715 = vmatprep.subr.mxu0 0.0
        %716 = vmatpush1.msra.mxu0 0.0
        %717 = vmatprep.mubr.f32.mxu0 0.0
        %718 = vmatmul.mubr.f32.gmra.mrb[0].mxu0 %v648
        %v719 = vpop.f32.mrb[0].mxu0
        %v720 = vadd.f32 0.0, %v719
        %v721 = vpop.f32.mrb[0].mxu0
        %722 = vmatprep.mubr.f32.mxu0 0.0
        %723 = vmatmul.mubr.f32.gmra.mrb[0].mxu0 %v651
        %v724 = vpop.f32.mrb[0].mxu0
        %v725 = vadd.f32 0.0, %v724
        %v726 = vpop.f32.mrb[0].mxu0
        %727 = vdwg.mxu0
        %v728 = vmax.f32 %v637, %v720
        %v729 = vmax.f32 %v642, %v725
        %v730 = vld [vmem:[#allocation2 + $0x80] sm:$0xff]
        %v731 = vld [vmem:[#allocation2 + $0x88] sm:$0xff]
        %v732 = vld [vmem:[#allocation2 + $0x90] sm:$0xff]
        %v733 = vld [vmem:[#allocation2 + $0x98] sm:$0xff]
        %v734 = vld [vmem:[#allocation2 + $0xa0] sm:$0xff]
        %v735 = vld [vmem:[#allocation2 + $0xa8] sm:$0xff]
        %v736 = vld [vmem:[#allocation2 + $0xb0] sm:$0xff]
        %v737 = vld [vmem:[#allocation2 + $0xb8] sm:$0xff]
        %v738 = vld [vmem:[#allocation2 + $0xc0] sm:$0xff]
        %v739 = vld [vmem:[#allocation2 + $0xc8] sm:$0xff]
        %v740 = vld [vmem:[#allocation2 + $0xd0] sm:$0xff]
        %v741 = vld [vmem:[#allocation2 + $0xd8] sm:$0xff]
        %v742 = vld [vmem:[#allocation2 + $0xe0] sm:$0x1]
        %v743 = vrot.slane %v728, 7
        %v744 = vrot.slane %v729, 7
        %v745 = vsel %vm172, %v743, %v744
        %v746 = vsel %vm172, %v744, %v743
        %vm747 = vcmp.lt.s32.totalorder %v180, 16
        %vm748 = vcmp.lt.s32.totalorder %v181, 16
        %vm749 = vmand %vm184, %vm747
        %vm750 = vmand %vm185, %vm748
        %v751 = vsel %vm749, %v746, 0.0
        %v752 = vsel %vm750, %v745, 0.0
        %v753 = vrot.slane %v728, 1
        %v754 = vrot.slane %v729, 1
        %v755 = vsel %vm204, %v753, %v754
        %v756 = vsel %vm204, %v754, %v753
        %vm757 = vcmp.lt.s32.totalorder %v209, 16
        %vm758 = vcmp.lt.s32.totalorder %v210, 16
        %vm759 = vmand %vm213, %vm757
        %vm760 = vmand %vm214, %vm758
        %v761 = vsel %vm759, %v755, 0.0
        %v762 = vsel %vm760, %v756, 0.0
        %765 = vrot.lane.b32.xlu0 %v728, 32
        %v766 = vpop.permute.xlu0 %765
        %767 = vrot.lane.b32.xlu0 %v729, 32
        %v768 = vpop.permute.xlu0 %767
        %773 = vrot.lane.b32.xlu0 %v761, 64
        %v774 = vpop.permute.xlu0 %773
        %775 = vrot.lane.b32.xlu0 %v762, 64
        %v776 = vpop.permute.xlu0 %775
        %v779 = vsel %vm450, %v751, %v766
        %v780 = vsel %vm450, %v752, %v768
        %v781 = vsel %vm455, %v779, %v774
        %v782 = vsel %vm455, %v780, %v776
        %v783 = vlaneseq
        %v784 = vshrl.u32 %v783, 7
        %v785 = vsub.s32 0, %v784
        %v786 = vrot.slane %v742, %v785
        %v788 = vsel %vm464, %v781, 0
        %v791 = vsel %vm464, %v782, 0
        %793 = vmatprep.subr.mxu0 0.0
        %794 = vmatpush1.msra.mxu0 %v730
        %795 = vmatprep.subr.mxu0 0.0
        %796 = vmatpush1.msra.mxu0 %v731
        %797 = vmatprep.subr.mxu0 0.0
        %798 = vmatpush1.msra.mxu0 %v732
        %799 = vmatprep.subr.mxu0 0.0
        %800 = vmatpush1.msra.mxu0 %v733
        %801 = vmatprep.subr.mxu0 0.0
        %802 = vmatpush1.msra.mxu0 %v734
        %803 = vmatprep.subr.mxu0 0.0
        %804 = vmatpush1.msra.mxu0 %v735
        %805 = vmatprep.subr.mxu0 0.0
        %806 = vmatpush1.msra.mxu0 %v736
        %807 = vmatprep.subr.mxu0 0.0
        %808 = vmatpush1.msra.mxu0 %v737
        %809 = vmatprep.subr.mxu0 0.0
        %810 = vmatpush1.msra.mxu0 %v738
        %811 = vmatprep.subr.mxu0 0.0
        %812 = vmatpush1.msra.mxu0 %v739
        %813 = vmatprep.subr.mxu0 0.0
        %814 = vmatpush1.msra.mxu0 %v740
        %815 = vmatprep.subr.mxu0 0.0
        %816 = vmatpush1.msra.mxu0 %v741
        %817 = vmatprep.subr.mxu0 0.0
        %818 = vmatpush1.msra.mxu0 0.0
        %819 = vmatprep.subr.mxu0 0.0
        %820 = vmatpush1.msra.mxu0 0.0
        %821 = vmatprep.subr.mxu0 0.0
        %822 = vmatpush1.msra.mxu0 0.0
        %823 = vmatprep.subr.mxu0 0.0
        %824 = vmatpush1.msra.mxu0 0.0
        %825 = vmatprep.subr.mxu0 0.0
        %826 = vmatpush1.msra.mxu0 0.0
        %827 = vmatprep.subr.mxu0 0.0
        %828 = vmatpush1.msra.mxu0 0.0
        %829 = vmatprep.subr.mxu0 0.0
        %830 = vmatpush1.msra.mxu0 0.0
        %831 = vmatprep.subr.mxu0 0.0
        %832 = vmatpush1.msra.mxu0 0.0
        %833 = vmatprep.subr.mxu0 0.0
        %834 = vmatpush1.msra.mxu0 0.0
        %835 = vmatprep.subr.mxu0 0.0
        %836 = vmatpush1.msra.mxu0 0.0
        %837 = vmatprep.subr.mxu0 0.0
        %838 = vmatpush1.msra.mxu0 0.0
        %839 = vmatprep.subr.mxu0 0.0
        %840 = vmatpush1.msra.mxu0 0.0
        %841 = vmatprep.subr.mxu0 0.0
        %842 = vmatpush1.msra.mxu0 0.0
        %843 = vmatprep.subr.mxu0 0.0
        %844 = vmatpush1.msra.mxu0 0.0
        %845 = vmatprep.subr.mxu0 0.0
        %846 = vmatpush1.msra.mxu0 0.0
        %847 = vmatprep.subr.mxu0 0.0
        %848 = vmatpush1.msra.mxu0 0.0
        %849 = vmatprep.subr.mxu0 0.0
        %850 = vmatpush1.msra.mxu0 0.0
        %851 = vmatprep.subr.mxu0 0.0
        %852 = vmatpush1.msra.mxu0 0.0
        %853 = vmatprep.subr.mxu0 0.0
        %854 = vmatpush1.msra.mxu0 0.0
        %855 = vmatprep.subr.mxu0 0.0
        %856 = vmatpush1.msra.mxu0 0.0
        %857 = vmatprep.mubr.f32.mxu0 0.0
        %858 = vmatmul.mubr.f32.gmra.mrb[0].mxu0 %v788
        %v859 = vpop.f32.mrb[0].mxu0
        %v860 = vadd.f32 %v786, %v859
        %v861 = vpop.f32.mrb[0].mxu0
        %862 = vmatprep.mubr.f32.mxu0 0.0
        %863 = vmatmul.mubr.f32.gmra.mrb[0].mxu0 %v791
        %v864 = vpop.f32.mrb[0].mxu0
        %v865 = vadd.f32 %v786, %v864
        %v866 = vpop.f32.mrb[0].mxu0
        %867 = vdwg.mxu0
        %v868 = vmax.f32 %v860, 0.0
        %v869 = vmax.f32 %v865, 0.0
        %v870 = vld [vmem:[#allocation2 + $0xe8] sm:$0xff]
        %v871 = vld [vmem:[#allocation2 + $0xf0] sm:$0xff]
        %v872 = vld [vmem:[#allocation2 + $0xf8] sm:$0xff]
        %v873 = vld [vmem:[#allocation2 + $0x100] sm:$0xff]
        %v874 = vld [vmem:[#allocation2 + $0x108] sm:$0xff]
        %v875 = vld [vmem:[#allocation2 + $0x110] sm:$0xff]
        %v876 = vld [vmem:[#allocation2 + $0x118] sm:$0xff]
        %v877 = vld [vmem:[#allocation2 + $0x120] sm:$0xff]
        %v878 = vld [vmem:[#allocation2 + $0x128] sm:$0xff]
        %v879 = vld [vmem:[#allocation2 + $0x130] sm:$0xff]
        %v880 = vld [vmem:[#allocation2 + $0x138] sm:$0xff]
        %v881 = vld [vmem:[#allocation2 + $0x140] sm:$0xff]
        %v882 = vld [vmem:[#allocation2 + $0x148] sm:$0x1]
        %v883 = vrot.slane %v868, 6
        %v884 = vrot.slane %v869, 6
        %vm885 = vcmp.lt.s32.totalorder %v171, 2
        %v886 = vsel %vm885, %v883, %v884
        %v887 = vsel %vm885, %v884, %v883
        %v888 = vadd.s32 %v171, 4294967294
        %v889 = vadd.s32 %v177, 4294967294
        %vm890 = vcmp.ge.s32.totalorder %v888, 0
        %vm891 = vcmp.ge.s32.totalorder %v889, 0
        %vm892 = vcmp.lt.s32.totalorder %v888, 16
        %vm893 = vcmp.lt.s32.totalorder %v889, 16
        %vm894 = vmand %vm890, %vm892
        %vm895 = vmand %vm891, %vm893
        %v896 = vsel %vm894, %v887, 0.0
        %v897 = vsel %vm895, %v886, 0.0
        %v898 = vrot.slane %v868, 2
        %v899 = vrot.slane %v869, 2
        %vm900 = vcmp.lt.s32.totalorder %v171, 6
        %v901 = vsel %vm900, %v898, %v899
        %v902 = vsel %vm900, %v899, %v898
        %v903 = vadd.s32 %v171, 2
        %v904 = vadd.s32 %v177, 2
        %vm905 = vcmp.ge.s32.totalorder %v903, 0
        %vm906 = vcmp.ge.s32.totalorder %v904, 0
        %vm907 = vcmp.lt.s32.totalorder %v903, 16
        %vm908 = vcmp.lt.s32.totalorder %v904, 16
        %vm909 = vmand %vm905, %vm907
        %vm910 = vmand %vm906, %vm908
        %v911 = vsel %vm909, %v901, 0.0
        %v912 = vsel %vm910, %v902, 0.0
        %915 = vrot.lane.b32.xlu0 %v868, 32
        %v916 = vpop.permute.xlu0 %915
        %917 = vrot.lane.b32.xlu0 %v869, 32
        %v918 = vpop.permute.xlu0 %917
        %923 = vrot.lane.b32.xlu0 %v911, 64
        %v924 = vpop.permute.xlu0 %923
        %925 = vrot.lane.b32.xlu0 %v912, 64
        %v926 = vpop.permute.xlu0 %925
        %v929 = vsel %vm450, %v896, %v916
        %v930 = vsel %vm450, %v897, %v918
        %v931 = vsel %vm455, %v929, %v924
        %v932 = vsel %vm455, %v930, %v926
        %v933 = vlaneseq
        %v934 = vshrl.u32 %v933, 7
        %v935 = vsub.s32 0, %v934
        %v936 = vrot.slane %v882, %v935
        %v938 = vsel %vm464, %v931, 0
        %v941 = vsel %vm464, %v932, 0
        %943 = vmatprep.subr.mxu0 0.0
        %944 = vmatpush1.msra.mxu0 %v870
        %945 = vmatprep.subr.mxu0 0.0
        %946 = vmatpush1.msra.mxu0 %v871
        %947 = vmatprep.subr.mxu0 0.0
        %948 = vmatpush1.msra.mxu0 %v872
        %949 = vmatprep.subr.mxu0 0.0
        %950 = vmatpush1.msra.mxu0 %v873
        %951 = vmatprep.subr.mxu0 0.0
        %952 = vmatpush1.msra.mxu0 %v874
        %953 = vmatprep.subr.mxu0 0.0
        %954 = vmatpush1.msra.mxu0 %v875
        %955 = vmatprep.subr.mxu0 0.0
        %956 = vmatpush1.msra.mxu0 %v876
        %957 = vmatprep.subr.mxu0 0.0
        %958 = vmatpush1.msra.mxu0 %v877
        %959 = vmatprep.subr.mxu0 0.0
        %960 = vmatpush1.msra.mxu0 %v878
        %961 = vmatprep.subr.mxu0 0.0
        %962 = vmatpush1.msra.mxu0 %v879
        %963 = vmatprep.subr.mxu0 0.0
        %964 = vmatpush1.msra.mxu0 %v880
        %965 = vmatprep.subr.mxu0 0.0
        %966 = vmatpush1.msra.mxu0 %v881
        %967 = vmatprep.subr.mxu0 0.0
        %968 = vmatpush1.msra.mxu0 0.0
        %969 = vmatprep.subr.mxu0 0.0
        %970 = vmatpush1.msra.mxu0 0.0
        %971 = vmatprep.subr.mxu0 0.0
        %972 = vmatpush1.msra.mxu0 0.0
        %973 = vmatprep.subr.mxu0 0.0
        %974 = vmatpush1.msra.mxu0 0.0
        %975 = vmatprep.subr.mxu0 0.0
        %976 = vmatpush1.msra.mxu0 0.0
        %977 = vmatprep.subr.mxu0 0.0
        %978 = vmatpush1.msra.mxu0 0.0
        %979 = vmatprep.subr.mxu0 0.0
        %980 = vmatpush1.msra.mxu0 0.0
        %981 = vmatprep.subr.mxu0 0.0
        %982 = vmatpush1.msra.mxu0 0.0
        %983 = vmatprep.subr.mxu0 0.0
        %984 = vmatpush1.msra.mxu0 0.0
        %985 = vmatprep.subr.mxu0 0.0
        %986 = vmatpush1.msra.mxu0 0.0
        %987 = vmatprep.subr.mxu0 0.0
        %988 = vmatpush1.msra.mxu0 0.0
        %989 = vmatprep.subr.mxu0 0.0
        %990 = vmatpush1.msra.mxu0 0.0
        %991 = vmatprep.subr.mxu0 0.0
        %992 = vmatpush1.msra.mxu0 0.0
        %993 = vmatprep.subr.mxu0 0.0
        %994 = vmatpush1.msra.mxu0 0.0
        %995 = vmatprep.subr.mxu0 0.0
        %996 = vmatpush1.msra.mxu0 0.0
        %997 = vmatprep.subr.mxu0 0.0
        %998 = vmatpush1.msra.mxu0 0.0
        %999 = vmatprep.subr.mxu0 0.0
        %1000 = vmatpush1.msra.mxu0 0.0
        %1001 = vmatprep.subr.mxu0 0.0
        %1002 = vmatpush1.msra.mxu0 0.0
        %1003 = vmatprep.subr.mxu0 0.0
        %1004 = vmatpush1.msra.mxu0 0.0
        %1005 = vmatprep.subr.mxu0 0.0
        %1006 = vmatpush1.msra.mxu0 0.0
        %1007 = vmatprep.mubr.f32.mxu0 0.0
        %1008 = vmatmul.mubr.f32.gmra.mrb[0].mxu0 %v938
        %v1009 = vpop.f32.mrb[0].mxu0
        %v1010 = vadd.f32 %v936, %v1009
        %v1011 = vpop.f32.mrb[0].mxu0
        %1012 = vmatprep.mubr.f32.mxu0 0.0
        %1013 = vmatmul.mubr.f32.gmra.mrb[0].mxu0 %v941
        %v1014 = vpop.f32.mrb[0].mxu0
        %v1015 = vadd.f32 %v936, %v1014
        %v1016 = vpop.f32.mrb[0].mxu0
        %1017 = vdwg.mxu0
        %v1018 = vmax.f32 %v1010, 0.0
        %v1019 = vmax.f32 %v1015, 0.0
        %v1020 = vld [vmem:[#allocation2 + $0xcd8] sm:$0xff]
        %vm1021 = vcmask 130048
        %v1023 = vsel %vm1021, %v1020, 0
        %1025 = vmatprep.subr.mxu0 0.0
        %1026 = vmatpush1.msra.mxu0 %v1018
        %1027 = vmatprep.subr.mxu0 0.0
        %1028 = vmatpush1.msra.mxu0 %v1019
        %1029 = vmatprep.subr.mxu0 0.0
        %1030 = vmatpush1.msra.mxu0 0.0
        %1031 = vmatprep.subr.mxu0 0.0
        %1032 = vmatpush1.msra.mxu0 0.0
        %1033 = vmatprep.subr.mxu0 0.0
        %1034 = vmatpush1.msra.mxu0 0.0
        %1035 = vmatprep.subr.mxu0 0.0
        %1036 = vmatpush1.msra.mxu0 0.0
        %1037 = vmatprep.subr.mxu0 0.0
        %1038 = vmatpush1.msra.mxu0 0.0
        %1039 = vmatprep.subr.mxu0 0.0
        %1040 = vmatpush1.msra.mxu0 0.0
        %1041 = vmatprep.subr.mxu0 0.0
        %1042 = vmatpush1.msra.mxu0 0.0
        %1043 = vmatprep.subr.mxu0 0.0
        %1044 = vmatpush1.msra.mxu0 0.0
        %1045 = vmatprep.subr.mxu0 0.0
        %1046 = vmatpush1.msra.mxu0 0.0
        %1047 = vmatprep.subr.mxu0 0.0
        %1048 = vmatpush1.msra.mxu0 0.0
        %1049 = vmatprep.subr.mxu0 0.0
        %1050 = vmatpush1.msra.mxu0 0.0
        %1051 = vmatprep.subr.mxu0 0.0
        %1052 = vmatpush1.msra.mxu0 0.0
        %1053 = vmatprep.subr.mxu0 0.0
        %1054 = vmatpush1.msra.mxu0 0.0
        %1055 = vmatprep.subr.mxu0 0.0
        %1056 = vmatpush1.msra.mxu0 0.0
        %1057 = vmatprep.subr.mxu0 0.0
        %1058 = vmatpush1.msra.mxu0 0.0
        %1059 = vmatprep.subr.mxu0 0.0
        %1060 = vmatpush1.msra.mxu0 0.0
        %1061 = vmatprep.subr.mxu0 0.0
        %1062 = vmatpush1.msra.mxu0 0.0
        %1063 = vmatprep.subr.mxu0 0.0
        %1064 = vmatpush1.msra.mxu0 0.0
        %1065 = vmatprep.subr.mxu0 0.0
        %1066 = vmatpush1.msra.mxu0 0.0
        %1067 = vmatprep.subr.mxu0 0.0
        %1068 = vmatpush1.msra.mxu0 0.0
        %1069 = vmatprep.subr.mxu0 0.0
        %1070 = vmatpush1.msra.mxu0 0.0
        %1071 = vmatprep.subr.mxu0 0.0
        %1072 = vmatpush1.msra.mxu0 0.0
        %1073 = vmatprep.subr.mxu0 0.0
        %1074 = vmatpush1.msra.mxu0 0.0
        %1075 = vmatprep.subr.mxu0 0.0
        %1076 = vmatpush1.msra.mxu0 0.0
        %1077 = vmatprep.subr.mxu0 0.0
        %1078 = vmatpush1.msra.mxu0 0.0
        %1079 = vmatprep.subr.mxu0 0.0
        %1080 = vmatpush1.msra.mxu0 0.0
        %1081 = vmatprep.subr.mxu0 0.0
        %1082 = vmatpush1.msra.mxu0 0.0
        %1083 = vmatprep.subr.mxu0 0.0
        %1084 = vmatpush1.msra.mxu0 0.0
        %1085 = vmatprep.subr.mxu0 0.0
        %1086 = vmatpush1.msra.mxu0 0.0
        %1087 = vmatprep.subr.mxu0 0.0
        %1088 = vmatpush1.msra.mxu0 0.0
        %1089 = vmatprep.mubr.f32.mxu0 0.0
        %1090 = vmatmul.mubr.f32.gmra.mrb[0].mxu0 %v1023
        %v1091 = vpop.f32.mrb[0].mxu0
        %v1092 = vadd.f32 0.0, %v1091
        %v1093 = vpop.f32.mrb[0].mxu0
        %1094 = vdwg.mxu0
        %v1095 = vld [vmem:[#allocation2 + $0xce0] sm:$0xff]
        %v1097 = vsel %vm1021, %v1095, 0
        %1099 = vmatprep.subr.mxu0 0.0
        %1100 = vmatpush1.msra.mxu0 %v1018
        %1101 = vmatprep.subr.mxu0 0.0
        %1102 = vmatpush1.msra.mxu0 %v1019
        %1103 = vmatprep.subr.mxu0 0.0
        %1104 = vmatpush1.msra.mxu0 0.0
        %1105 = vmatprep.subr.mxu0 0.0
        %1106 = vmatpush1.msra.mxu0 0.0
        %1107 = vmatprep.subr.mxu0 0.0
        %1108 = vmatpush1.msra.mxu0 0.0
        %1109 = vmatprep.subr.mxu0 0.0
        %1110 = vmatpush1.msra.mxu0 0.0
        %1111 = vmatprep.subr.mxu0 0.0
        %1112 = vmatpush1.msra.mxu0 0.0
        %1113 = vmatprep.subr.mxu0 0.0
        %1114 = vmatpush1.msra.mxu0 0.0
        %1115 = vmatprep.subr.mxu0 0.0
        %1116 = vmatpush1.msra.mxu0 0.0
        %1117 = vmatprep.subr.mxu0 0.0
        %1118 = vmatpush1.msra.mxu0 0.0
        %1119 = vmatprep.subr.mxu0 0.0
        %1120 = vmatpush1.msra.mxu0 0.0
        %1121 = vmatprep.subr.mxu0 0.0
        %1122 = vmatpush1.msra.mxu0 0.0
        %1123 = vmatprep.subr.mxu0 0.0
        %1124 = vmatpush1.msra.mxu0 0.0
        %1125 = vmatprep.subr.mxu0 0.0
        %1126 = vmatpush1.msra.mxu0 0.0
        %1127 = vmatprep.subr.mxu0 0.0
        %1128 = vmatpush1.msra.mxu0 0.0
        %1129 = vmatprep.subr.mxu0 0.0
        %1130 = vmatpush1.msra.mxu0 0.0
        %1131 = vmatprep.subr.mxu0 0.0
        %1132 = vmatpush1.msra.mxu0 0.0
        %1133 = vmatprep.subr.mxu0 0.0
        %1134 = vmatpush1.msra.mxu0 0.0
        %1135 = vmatprep.subr.mxu0 0.0
        %1136 = vmatpush1.msra.mxu0 0.0
        %1137 = vmatprep.subr.mxu0 0.0
        %1138 = vmatpush1.msra.mxu0 0.0
        %1139 = vmatprep.subr.mxu0 0.0
        %1140 = vmatpush1.msra.mxu0 0.0
        %1141 = vmatprep.subr.mxu0 0.0
        %1142 = vmatpush1.msra.mxu0 0.0
        %1143 = vmatprep.subr.mxu0 0.0
        %1144 = vmatpush1.msra.mxu0 0.0
        %1145 = vmatprep.subr.mxu0 0.0
        %1146 = vmatpush1.msra.mxu0 0.0
        %1147 = vmatprep.subr.mxu0 0.0
        %1148 = vmatpush1.msra.mxu0 0.0
        %1149 = vmatprep.subr.mxu0 0.0
        %1150 = vmatpush1.msra.mxu0 0.0
        %1151 = vmatprep.subr.mxu0 0.0
        %1152 = vmatpush1.msra.mxu0 0.0
        %1153 = vmatprep.subr.mxu0 0.0
        %1154 = vmatpush1.msra.mxu0 0.0
        %1155 = vmatprep.subr.mxu0 0.0
        %1156 = vmatpush1.msra.mxu0 0.0
        %1157 = vmatprep.subr.mxu0 0.0
        %1158 = vmatpush1.msra.mxu0 0.0
        %1159 = vmatprep.subr.mxu0 0.0
        %1160 = vmatpush1.msra.mxu0 0.0
        %1161 = vmatprep.subr.mxu0 0.0
        %1162 = vmatpush1.msra.mxu0 0.0
        %1163 = vmatprep.mubr.f32.mxu0 0.0
        %1164 = vmatmul.mubr.f32.gmra.mrb[0].mxu0 %v1097
        %v1165 = vpop.f32.mrb[0].mxu0
        %v1166 = vadd.f32 0.0, %v1165
        %v1167 = vpop.f32.mrb[0].mxu0
        %1168 = vdwg.mxu0
        %v1169 = vmax.f32 %v1092, %v1166
        %v1170 = vld [vmem:[#allocation2 + $0x150] sm:$0xff]
        %v1171 = vld [vmem:[#allocation2 + $0x158] sm:$0xff]
        %v1172 = vld [vmem:[#allocation2 + $0x160] sm:$0xff]
        %v1173 = vld [vmem:[#allocation2 + $0x168] sm:$0xff]
        %v1174 = vld [vmem:[#allocation2 + $0x170] sm:$0xff]
        %v1175 = vld [vmem:[#allocation2 + $0x178] sm:$0xff]
        %v1176 = vld [vmem:[#allocation2 + $0x180] sm:$0xff]
        %v1177 = vld [vmem:[#allocation2 + $0x188] sm:$0xff]
        %v1178 = vld [vmem:[#allocation2 + $0x190] sm:$0xff]
        %v1179 = vld [vmem:[#allocation2 + $0x198] sm:$0xff]
        %v1180 = vld [vmem:[#allocation2 + $0x1a0] sm:$0xff]
        %v1181 = vld [vmem:[#allocation2 + $0x1a8] sm:$0xff]
        %v1182 = vld [vmem:[#allocation2 + $0x1b0] sm:$0x1]
        %v1183 = vrot.slane %v1169, 7
        %vm1184 = vcmp.lt.s32.totalorder %v180, 8
        %vm1185 = vmand %vm184, %vm1184
        %v1186 = vsel %vm1185, %v1183, 0.0
        %v1187 = vrot.slane %v1169, 1
        %vm1188 = vcmp.lt.s32.totalorder %v209, 8
        %vm1189 = vmand %vm213, %vm1188
        %v1190 = vsel %vm1189, %v1187, 0.0
        %1192 = vrot.lane.b32.xlu0 %v1169, 32
        %v1193 = vpop.permute.xlu0 %1192
        %1196 = vrot.lane.b32.xlu0 %v1190, 64
        %v1197 = vpop.permute.xlu0 %1196
        %v1199 = vsel %vm450, %v1186, %v1193
        %v1200 = vsel %vm455, %v1199, %v1197
        %v1201 = vlaneseq
        %v1202 = vshrl.u32 %v1201, 7
        %v1203 = vsub.s32 0, %v1202
        %v1204 = vrot.slane %v1182, %v1203
        %v1206 = vsel %vm464, %v1200, 0
        %1208 = vmatprep.subr.mxu0 0.0
        %1209 = vmatpush1.msra.mxu0 %v1170
        %1210 = vmatprep.subr.mxu0 0.0
        %1211 = vmatpush1.msra.mxu0 %v1171
        %1212 = vmatprep.subr.mxu0 0.0
        %1213 = vmatpush1.msra.mxu0 %v1172
        %1214 = vmatprep.subr.mxu0 0.0
        %1215 = vmatpush1.msra.mxu0 %v1173
        %1216 = vmatprep.subr.mxu0 0.0
        %1217 = vmatpush1.msra.mxu0 %v1174
        %1218 = vmatprep.subr.mxu0 0.0
        %1219 = vmatpush1.msra.mxu0 %v1175
        %1220 = vmatprep.subr.mxu0 0.0
        %1221 = vmatpush1.msra.mxu0 %v1176
        %1222 = vmatprep.subr.mxu0 0.0
        %1223 = vmatpush1.msra.mxu0 %v1177
        %1224 = vmatprep.subr.mxu0 0.0
        %1225 = vmatpush1.msra.mxu0 %v1178
        %1226 = vmatprep.subr.mxu0 0.0
        %1227 = vmatpush1.msra.mxu0 %v1179
        %1228 = vmatprep.subr.mxu0 0.0
        %1229 = vmatpush1.msra.mxu0 %v1180
        %1230 = vmatprep.subr.mxu0 0.0
        %1231 = vmatpush1.msra.mxu0 %v1181
        %1232 = vmatprep.subr.mxu0 0.0
        %1233 = vmatpush1.msra.mxu0 0.0
        %1234 = vmatprep.subr.mxu0 0.0
        %1235 = vmatpush1.msra.mxu0 0.0
        %1236 = vmatprep.subr.mxu0 0.0
        %1237 = vmatpush1.msra.mxu0 0.0
        %1238 = vmatprep.subr.mxu0 0.0
        %1239 = vmatpush1.msra.mxu0 0.0
        %1240 = vmatprep.subr.mxu0 0.0
        %1241 = vmatpush1.msra.mxu0 0.0
        %1242 = vmatprep.subr.mxu0 0.0
        %1243 = vmatpush1.msra.mxu0 0.0
        %1244 = vmatprep.subr.mxu0 0.0
        %1245 = vmatpush1.msra.mxu0 0.0
        %1246 = vmatprep.subr.mxu0 0.0
        %1247 = vmatpush1.msra.mxu0 0.0
        %1248 = vmatprep.subr.mxu0 0.0
        %1249 = vmatpush1.msra.mxu0 0.0
        %1250 = vmatprep.subr.mxu0 0.0
        %1251 = vmatpush1.msra.mxu0 0.0
        %1252 = vmatprep.subr.mxu0 0.0
        %1253 = vmatpush1.msra.mxu0 0.0
        %1254 = vmatprep.subr.mxu0 0.0
        %1255 = vmatpush1.msra.mxu0 0.0
        %1256 = vmatprep.subr.mxu0 0.0
        %1257 = vmatpush1.msra.mxu0 0.0
        %1258 = vmatprep.subr.mxu0 0.0
        %1259 = vmatpush1.msra.mxu0 0.0
        %1260 = vmatprep.subr.mxu0 0.0
        %1261 = vmatpush1.msra.mxu0 0.0
        %1262 = vmatprep.subr.mxu0 0.0
        %1263 = vmatpush1.msra.mxu0 0.0
        %1264 = vmatprep.subr.mxu0 0.0
        %1265 = vmatpush1.msra.mxu0 0.0
        %1266 = vmatprep.subr.mxu0 0.0
        %1267 = vmatpush1.msra.mxu0 0.0
        %1268 = vmatprep.subr.mxu0 0.0
        %1269 = vmatpush1.msra.mxu0 0.0
        %1270 = vmatprep.subr.mxu0 0.0
        %1271 = vmatpush1.msra.mxu0 0.0
        %1272 = vmatprep.mubr.f32.mxu0 0.0
        %1273 = vmatmul.mubr.f32.gmra.mrb[0].mxu0 %v1206
        %v1274 = vpop.f32.mrb[0].mxu0
        %v1275 = vadd.f32 %v1204, %v1274
        %v1276 = vpop.f32.mrb[0].mxu0
        %1277 = vdwg.mxu0
        %v1278 = vmax.f32 %v1275, 0.0
        %v1279 = vld [vmem:[#allocation2 + $0x1b8] sm:$0xff]
        %v1280 = vld [vmem:[#allocation2 + $0x1c0] sm:$0xff]
        %v1281 = vld [vmem:[#allocation2 + $0x1c8] sm:$0xff]
        %v1282 = vld [vmem:[#allocation2 + $0x1d0] sm:$0xff]
        %v1283 = vld [vmem:[#allocation2 + $0x1d8] sm:$0xff]
        %v1284 = vld [vmem:[#allocation2 + $0x1e0] sm:$0xff]
        %v1285 = vld [vmem:[#allocation2 + $0x1e8] sm:$0xff]
        %v1286 = vld [vmem:[#allocation2 + $0x1f0] sm:$0xff]
        %v1287 = vld [vmem:[#allocation2 + $0x1f8] sm:$0xff]
        %v1288 = vld [vmem:[#allocation2 + $0x200] sm:$0xff]
        %v1289 = vld [vmem:[#allocation2 + $0x208] sm:$0xff]
        %v1290 = vld [vmem:[#allocation2 + $0x210] sm:$0xff]
        %v1291 = vld [vmem:[#allocation2 + $0x218] sm:$0x1]
        %v1292 = vrot.slane %v1278, 7
        %v1293 = vsel %vm1185, %v1292, 0.0
        %v1294 = vrot.slane %v1278, 1
        %v1295 = vsel %vm1189, %v1294, 0.0
        %1297 = vrot.lane.b32.xlu0 %v1278, 32
        %v1298 = vpop.permute.xlu0 %1297
        %1301 = vrot.lane.b32.xlu0 %v1295, 64
        %v1302 = vpop.permute.xlu0 %1301
        %v1304 = vsel %vm450, %v1293, %v1298
        %v1305 = vsel %vm455, %v1304, %v1302
        %v1306 = vlaneseq
        %v1307 = vshrl.u32 %v1306, 7
        %v1308 = vsub.s32 0, %v1307
        %v1309 = vrot.slane %v1291, %v1308
        %v1311 = vsel %vm464, %v1305, 0
        %1313 = vmatprep.subr.mxu0 0.0
        %1314 = vmatpush1.msra.mxu0 %v1279
        %1315 = vmatprep.subr.mxu0 0.0
        %1316 = vmatpush1.msra.mxu0 %v1280
        %1317 = vmatprep.subr.mxu0 0.0
        %1318 = vmatpush1.msra.mxu0 %v1281
        %1319 = vmatprep.subr.mxu0 0.0
        %1320 = vmatpush1.msra.mxu0 %v1282
        %1321 = vmatprep.subr.mxu0 0.0
        %1322 = vmatpush1.msra.mxu0 %v1283
        %1323 = vmatprep.subr.mxu0 0.0
        %1324 = vmatpush1.msra.mxu0 %v1284
        %1325 = vmatprep.subr.mxu0 0.0
        %1326 = vmatpush1.msra.mxu0 %v1285
        %1327 = vmatprep.subr.mxu0 0.0
        %1328 = vmatpush1.msra.mxu0 %v1286
        %1329 = vmatprep.subr.mxu0 0.0
        %1330 = vmatpush1.msra.mxu0 %v1287
        %1331 = vmatprep.subr.mxu0 0.0
        %1332 = vmatpush1.msra.mxu0 %v1288
        %1333 = vmatprep.subr.mxu0 0.0
        %1334 = vmatpush1.msra.mxu0 %v1289
        %1335 = vmatprep.subr.mxu0 0.0
        %1336 = vmatpush1.msra.mxu0 %v1290
        %1337 = vmatprep.subr.mxu0 0.0
        %1338 = vmatpush1.msra.mxu0 0.0
        %1339 = vmatprep.subr.mxu0 0.0
        %1340 = vmatpush1.msra.mxu0 0.0
        %1341 = vmatprep.subr.mxu0 0.0
        %1342 = vmatpush1.msra.mxu0 0.0
        %1343 = vmatprep.subr.mxu0 0.0
        %1344 = vmatpush1.msra.mxu0 0.0
        %1345 = vmatprep.subr.mxu0 0.0
        %1346 = vmatpush1.msra.mxu0 0.0
        %1347 = vmatprep.subr.mxu0 0.0
        %1348 = vmatpush1.msra.mxu0 0.0
        %1349 = vmatprep.subr.mxu0 0.0
        %1350 = vmatpush1.msra.mxu0 0.0
        %1351 = vmatprep.subr.mxu0 0.0
        %1352 = vmatpush1.msra.mxu0 0.0
        %1353 = vmatprep.subr.mxu0 0.0
        %1354 = vmatpush1.msra.mxu0 0.0
        %1355 = vmatprep.subr.mxu0 0.0
        %1356 = vmatpush1.msra.mxu0 0.0
        %1357 = vmatprep.subr.mxu0 0.0
        %1358 = vmatpush1.msra.mxu0 0.0
        %1359 = vmatprep.subr.mxu0 0.0
        %1360 = vmatpush1.msra.mxu0 0.0
        %1361 = vmatprep.subr.mxu0 0.0
        %1362 = vmatpush1.msra.mxu0 0.0
        %1363 = vmatprep.subr.mxu0 0.0
        %1364 = vmatpush1.msra.mxu0 0.0
        %1365 = vmatprep.subr.mxu0 0.0
        %1366 = vmatpush1.msra.mxu0 0.0
        %1367 = vmatprep.subr.mxu0 0.0
        %1368 = vmatpush1.msra.mxu0 0.0
        %1369 = vmatprep.subr.mxu0 0.0
        %1370 = vmatpush1.msra.mxu0 0.0
        %1371 = vmatprep.subr.mxu0 0.0
        %1372 = vmatpush1.msra.mxu0 0.0
        %1373 = vmatprep.subr.mxu0 0.0
        %1374 = vmatpush1.msra.mxu0 0.0
        %1375 = vmatprep.subr.mxu0 0.0
        %1376 = vmatpush1.msra.mxu0 0.0
        %1377 = vmatprep.mubr.f32.mxu0 0.0
        %1378 = vmatmul.mubr.f32.gmra.mrb[0].mxu0 %v1311
        %v1379 = vpop.f32.mrb[0].mxu0
        %v1380 = vadd.f32 %v1309, %v1379
        %v1381 = vpop.f32.mrb[0].mxu0
        %1382 = vdwg.mxu0
        %v1383 = vld [vmem:[#allocation2 + $0x220] sm:$0xff]
        %v1384 = vld [vmem:[#allocation2 + $0x228] sm:$0xff]
        %v1385 = vld [vmem:[#allocation2 + $0x230] sm:$0xff]
        %v1386 = vld [vmem:[#allocation2 + $0x238] sm:$0xff]
        %v1387 = vld [vmem:[#allocation2 + $0x240] sm:$0xff]
        %v1388 = vld [vmem:[#allocation2 + $0x248] sm:$0xff]
        %v1389 = vld [vmem:[#allocation2 + $0x250] sm:$0xff]
        %v1390 = vld [vmem:[#allocation2 + $0x258] sm:$0xff]
        %v1391 = vld [vmem:[#allocation2 + $0x260] sm:$0xff]
        %v1392 = vld [vmem:[#allocation2 + $0x268] sm:$0xff]
        %v1393 = vld [vmem:[#allocation2 + $0x270] sm:$0xff]
        %v1394 = vld [vmem:[#allocation2 + $0x278] sm:$0xff]
        %v1395 = vld [vmem:[#allocation2 + $0x280] sm:$0x1]
        %v1396 = vrot.slane %v1380, 7
        %v1397 = vsel %vm1185, %v1396, 0.0
        %v1398 = vrot.slane %v1380, 1
        %v1399 = vsel %vm1189, %v1398, 0.0
        %1401 = vrot.lane.b32.xlu0 %v1380, 32
        %v1402 = vpop.permute.xlu0 %1401
        %1405 = vrot.lane.b32.xlu0 %v1399, 64
        %v1406 = vpop.permute.xlu0 %1405
        %v1408 = vsel %vm450, %v1397, %v1402
        %v1409 = vsel %vm455, %v1408, %v1406
        %v1410 = vlaneseq
        %v1411 = vshrl.u32 %v1410, 7
        %v1412 = vsub.s32 0, %v1411
        %v1413 = vrot.slane %v1395, %v1412
        %v1415 = vsel %vm464, %v1409, 0
        %1417 = vmatprep.subr.mxu0 0.0
        %1418 = vmatpush1.msra.mxu0 %v1383
        %1419 = vmatprep.subr.mxu0 0.0
        %1420 = vmatpush1.msra.mxu0 %v1384
        %1421 = vmatprep.subr.mxu0 0.0
        %1422 = vmatpush1.msra.mxu0 %v1385
        %1423 = vmatprep.subr.mxu0 0.0
        %1424 = vmatpush1.msra.mxu0 %v1386
        %1425 = vmatprep.subr.mxu0 0.0
        %1426 = vmatpush1.msra.mxu0 %v1387
        %1427 = vmatprep.subr.mxu0 0.0
        %1428 = vmatpush1.msra.mxu0 %v1388
        %1429 = vmatprep.subr.mxu0 0.0
        %1430 = vmatpush1.msra.mxu0 %v1389
        %1431 = vmatprep.subr.mxu0 0.0
        %1432 = vmatpush1.msra.mxu0 %v1390
        %1433 = vmatprep.subr.mxu0 0.0
        %1434 = vmatpush1.msra.mxu0 %v1391
        %1435 = vmatprep.subr.mxu0 0.0
        %1436 = vmatpush1.msra.mxu0 %v1392
        %1437 = vmatprep.subr.mxu0 0.0
        %1438 = vmatpush1.msra.mxu0 %v1393
        %1439 = vmatprep.subr.mxu0 0.0
        %1440 = vmatpush1.msra.mxu0 %v1394
        %1441 = vmatprep.subr.mxu0 0.0
        %1442 = vmatpush1.msra.mxu0 0.0
        %1443 = vmatprep.subr.mxu0 0.0
        %1444 = vmatpush1.msra.mxu0 0.0
        %1445 = vmatprep.subr.mxu0 0.0
        %1446 = vmatpush1.msra.mxu0 0.0
        %1447 = vmatprep.subr.mxu0 0.0
        %1448 = vmatpush1.msra.mxu0 0.0
        %1449 = vmatprep.subr.mxu0 0.0
        %1450 = vmatpush1.msra.mxu0 0.0
        %1451 = vmatprep.subr.mxu0 0.0
        %1452 = vmatpush1.msra.mxu0 0.0
        %1453 = vmatprep.subr.mxu0 0.0
        %1454 = vmatpush1.msra.mxu0 0.0
        %1455 = vmatprep.subr.mxu0 0.0
        %1456 = vmatpush1.msra.mxu0 0.0
        %1457 = vmatprep.subr.mxu0 0.0
        %1458 = vmatpush1.msra.mxu0 0.0
        %1459 = vmatprep.subr.mxu0 0.0
        %1460 = vmatpush1.msra.mxu0 0.0
        %1461 = vmatprep.subr.mxu0 0.0
        %1462 = vmatpush1.msra.mxu0 0.0
        %1463 = vmatprep.subr.mxu0 0.0
        %1464 = vmatpush1.msra.mxu0 0.0
        %1465 = vmatprep.subr.mxu0 0.0
        %1466 = vmatpush1.msra.mxu0 0.0
        %1467 = vmatprep.subr.mxu0 0.0
        %1468 = vmatpush1.msra.mxu0 0.0
        %1469 = vmatprep.subr.mxu0 0.0
        %1470 = vmatpush1.msra.mxu0 0.0
        %1471 = vmatprep.subr.mxu0 0.0
        %1472 = vmatpush1.msra.mxu0 0.0
        %1473 = vmatprep.subr.mxu0 0.0
        %1474 = vmatpush1.msra.mxu0 0.0
        %1475 = vmatprep.subr.mxu0 0.0
        %1476 = vmatpush1.msra.mxu0 0.0
        %1477 = vmatprep.subr.mxu0 0.0
        %1478 = vmatpush1.msra.mxu0 0.0
        %1479 = vmatprep.subr.mxu0 0.0
        %1480 = vmatpush1.msra.mxu0 0.0
        %1481 = vmatprep.mubr.f32.mxu0 0.0
        %1482 = vmatmul.mubr.f32.gmra.mrb[0].mxu0 %v1415
        %v1483 = vpop.f32.mrb[0].mxu0
        %v1484 = vadd.f32 %v1413, %v1483
        %v1485 = vpop.f32.mrb[0].mxu0
        %1486 = vdwg.mxu0
        %v1487 = vmax.f32 %v1484, 0.0
        %v1488 = vld [vmem:[#allocation2 + $0x288] sm:$0xff]
        %v1489 = vld [vmem:[#allocation2 + $0x290] sm:$0xff]
        %v1490 = vld [vmem:[#allocation2 + $0x298] sm:$0xff]
        %v1491 = vld [vmem:[#allocation2 + $0x2a0] sm:$0xff]
        %v1492 = vld [vmem:[#allocation2 + $0x2a8] sm:$0xff]
        %v1493 = vld [vmem:[#allocation2 + $0x2b0] sm:$0xff]
        %v1494 = vld [vmem:[#allocation2 + $0x2b8] sm:$0xff]
        %v1495 = vld [vmem:[#allocation2 + $0x2c0] sm:$0xff]
        %v1496 = vld [vmem:[#allocation2 + $0x2c8] sm:$0xff]
        %v1497 = vld [vmem:[#allocation2 + $0x2d0] sm:$0xff]
        %v1498 = vld [vmem:[#allocation2 + $0x2d8] sm:$0xff]
        %v1499 = vld [vmem:[#allocation2 + $0x2e0] sm:$0xff]
        %v1500 = vld [vmem:[#allocation2 + $0x2e8] sm:$0x1]
        %v1501 = vrot.slane %v1487, 6
        %vm1502 = vcmp.lt.s32.totalorder %v888, 8
        %vm1503 = vmand %vm890, %vm1502
        %v1504 = vsel %vm1503, %v1501, 0.0
        %v1505 = vrot.slane %v1487, 2
        %vm1506 = vcmp.lt.s32.totalorder %v903, 8
        %vm1507 = vmand %vm905, %vm1506
        %v1508 = vsel %vm1507, %v1505, 0.0
        %1510 = vrot.lane.b32.xlu0 %v1487, 32
        %v1511 = vpop.permute.xlu0 %1510
        %1514 = vrot.lane.b32.xlu0 %v1508, 64
        %v1515 = vpop.permute.xlu0 %1514
        %v1517 = vsel %vm450, %v1504, %v1511
        %v1518 = vsel %vm455, %v1517, %v1515
        %v1519 = vlaneseq
        %v1520 = vshrl.u32 %v1519, 7
        %v1521 = vsub.s32 0, %v1520
        %v1522 = vrot.slane %v1500, %v1521
        %v1524 = vsel %vm464, %v1518, 0
        %1526 = vmatprep.subr.mxu0 0.0
        %1527 = vmatpush1.msra.mxu0 %v1488
        %1528 = vmatprep.subr.mxu0 0.0
        %1529 = vmatpush1.msra.mxu0 %v1489
        %1530 = vmatprep.subr.mxu0 0.0
        %1531 = vmatpush1.msra.mxu0 %v1490
        %1532 = vmatprep.subr.mxu0 0.0
        %1533 = vmatpush1.msra.mxu0 %v1491
        %1534 = vmatprep.subr.mxu0 0.0
        %1535 = vmatpush1.msra.mxu0 %v1492
        %1536 = vmatprep.subr.mxu0 0.0
        %1537 = vmatpush1.msra.mxu0 %v1493
        %1538 = vmatprep.subr.mxu0 0.0
        %1539 = vmatpush1.msra.mxu0 %v1494
        %1540 = vmatprep.subr.mxu0 0.0
        %1541 = vmatpush1.msra.mxu0 %v1495
        %1542 = vmatprep.subr.mxu0 0.0
        %1543 = vmatpush1.msra.mxu0 %v1496
        %1544 = vmatprep.subr.mxu0 0.0
        %1545 = vmatpush1.msra.mxu0 %v1497
        %1546 = vmatprep.subr.mxu0 0.0
        %1547 = vmatpush1.msra.mxu0 %v1498
        %1548 = vmatprep.subr.mxu0 0.0
        %1549 = vmatpush1.msra.mxu0 %v1499
        %1550 = vmatprep.subr.mxu0 0.0
        %1551 = vmatpush1.msra.mxu0 0.0
        %1552 = vmatprep.subr.mxu0 0.0
        %1553 = vmatpush1.msra.mxu0 0.0
        %1554 = vmatprep.subr.mxu0 0.0
        %1555 = vmatpush1.msra.mxu0 0.0
        %1556 = vmatprep.subr.mxu0 0.0
        %1557 = vmatpush1.msra.mxu0 0.0
        %1558 = vmatprep.subr.mxu0 0.0
        %1559 = vmatpush1.msra.mxu0 0.0
        %1560 = vmatprep.subr.mxu0 0.0
        %1561 = vmatpush1.msra.mxu0 0.0
        %1562 = vmatprep.subr.mxu0 0.0
        %1563 = vmatpush1.msra.mxu0 0.0
        %1564 = vmatprep.subr.mxu0 0.0
        %1565 = vmatpush1.msra.mxu0 0.0
        %1566 = vmatprep.subr.mxu0 0.0
        %1567 = vmatpush1.msra.mxu0 0.0
        %1568 = vmatprep.subr.mxu0 0.0
        %1569 = vmatpush1.msra.mxu0 0.0
        %1570 = vmatprep.subr.mxu0 0.0
        %1571 = vmatpush1.msra.mxu0 0.0
        %1572 = vmatprep.subr.mxu0 0.0
        %1573 = vmatpush1.msra.mxu0 0.0
        %1574 = vmatprep.subr.mxu0 0.0
        %1575 = vmatpush1.msra.mxu0 0.0
        %1576 = vmatprep.subr.mxu0 0.0
        %1577 = vmatpush1.msra.mxu0 0.0
        %1578 = vmatprep.subr.mxu0 0.0
        %1579 = vmatpush1.msra.mxu0 0.0
        %1580 = vmatprep.subr.mxu0 0.0
        %1581 = vmatpush1.msra.mxu0 0.0
        %1582 = vmatprep.subr.mxu0 0.0
        %1583 = vmatpush1.msra.mxu0 0.0
        %1584 = vmatprep.subr.mxu0 0.0
        %1585 = vmatpush1.msra.mxu0 0.0
        %1586 = vmatprep.subr.mxu0 0.0
        %1587 = vmatpush1.msra.mxu0 0.0
        %1588 = vmatprep.subr.mxu0 0.0
        %1589 = vmatpush1.msra.mxu0 0.0
        %1590 = vmatprep.mubr.f32.mxu0 0.0
        %1591 = vmatmul.mubr.f32.gmra.mrb[0].mxu0 %v1524
        %v1592 = vpop.f32.mrb[0].mxu0
        %v1593 = vadd.f32 %v1522, %v1592
        %v1594 = vpop.f32.mrb[0].mxu0
        %1595 = vdwg.mxu0
        %v1596 = vmax.f32 %v1593, 0.0
        %v1597 = vld [vmem:[#allocation2 + $0x2f0] sm:$0xff]
        %v1598 = vld [vmem:[#allocation2 + $0x2f8] sm:$0xff]
        %v1599 = vld [vmem:[#allocation2 + $0x300] sm:$0xff]
        %v1600 = vld [vmem:[#allocation2 + $0x308] sm:$0xff]
        %v1601 = vld [vmem:[#allocation2 + $0x310] sm:$0xff]
        %v1602 = vld [vmem:[#allocation2 + $0x318] sm:$0xff]
        %v1603 = vld [vmem:[#allocation2 + $0x320] sm:$0xff]
        %v1604 = vld [vmem:[#allocation2 + $0x328] sm:$0xff]
        %v1605 = vld [vmem:[#allocation2 + $0x330] sm:$0xff]
        %v1606 = vld [vmem:[#allocation2 + $0x338] sm:$0xff]
        %v1607 = vld [vmem:[#allocation2 + $0x340] sm:$0xff]
        %v1608 = vld [vmem:[#allocation2 + $0x348] sm:$0xff]
        %v1609 = vld [vmem:[#allocation2 + $0x350] sm:$0x1]
        %v1610 = vrot.slane %v1596, 7
        %v1611 = vsel %vm1185, %v1610, 0.0
        %v1612 = vrot.slane %v1596, 1
        %v1613 = vsel %vm1189, %v1612, 0.0
        %1615 = vrot.lane.b32.xlu0 %v1596, 32
        %v1616 = vpop.permute.xlu0 %1615
        %1619 = vrot.lane.b32.xlu0 %v1613, 64
        %v1620 = vpop.permute.xlu0 %1619
        %v1622 = vsel %vm450, %v1611, %v1616
        %v1623 = vsel %vm455, %v1622, %v1620
        %v1624 = vlaneseq
        %v1625 = vshrl.u32 %v1624, 7
        %v1626 = vsub.s32 0, %v1625
        %v1627 = vrot.slane %v1609, %v1626
        %v1629 = vsel %vm464, %v1623, 0
        %1631 = vmatprep.subr.mxu0 0.0
        %1632 = vmatpush1.msra.mxu0 %v1597
        %1633 = vmatprep.subr.mxu0 0.0
        %1634 = vmatpush1.msra.mxu0 %v1598
        %1635 = vmatprep.subr.mxu0 0.0
        %1636 = vmatpush1.msra.mxu0 %v1599
        %1637 = vmatprep.subr.mxu0 0.0
        %1638 = vmatpush1.msra.mxu0 %v1600
        %1639 = vmatprep.subr.mxu0 0.0
        %1640 = vmatpush1.msra.mxu0 %v1601
        %1641 = vmatprep.subr.mxu0 0.0
        %1642 = vmatpush1.msra.mxu0 %v1602
        %1643 = vmatprep.subr.mxu0 0.0
        %1644 = vmatpush1.msra.mxu0 %v1603
        %1645 = vmatprep.subr.mxu0 0.0
        %1646 = vmatpush1.msra.mxu0 %v1604
        %1647 = vmatprep.subr.mxu0 0.0
        %1648 = vmatpush1.msra.mxu0 %v1605
        %1649 = vmatprep.subr.mxu0 0.0
        %1650 = vmatpush1.msra.mxu0 %v1606
        %1651 = vmatprep.subr.mxu0 0.0
        %1652 = vmatpush1.msra.mxu0 %v1607
        %1653 = vmatprep.subr.mxu0 0.0
        %1654 = vmatpush1.msra.mxu0 %v1608
        %1655 = vmatprep.subr.mxu0 0.0
        %1656 = vmatpush1.msra.mxu0 0.0
        %1657 = vmatprep.subr.mxu0 0.0
        %1658 = vmatpush1.msra.mxu0 0.0
        %1659 = vmatprep.subr.mxu0 0.0
        %1660 = vmatpush1.msra.mxu0 0.0
        %1661 = vmatprep.subr.mxu0 0.0
        %1662 = vmatpush1.msra.mxu0 0.0
        %1663 = vmatprep.subr.mxu0 0.0
        %1664 = vmatpush1.msra.mxu0 0.0
        %1665 = vmatprep.subr.mxu0 0.0
        %1666 = vmatpush1.msra.mxu0 0.0
        %1667 = vmatprep.subr.mxu0 0.0
        %1668 = vmatpush1.msra.mxu0 0.0
        %1669 = vmatprep.subr.mxu0 0.0
        %1670 = vmatpush1.msra.mxu0 0.0
        %1671 = vmatprep.subr.mxu0 0.0
        %1672 = vmatpush1.msra.mxu0 0.0
        %1673 = vmatprep.subr.mxu0 0.0
        %1674 = vmatpush1.msra.mxu0 0.0
        %1675 = vmatprep.subr.mxu0 0.0
        %1676 = vmatpush1.msra.mxu0 0.0
        %1677 = vmatprep.subr.mxu0 0.0
        %1678 = vmatpush1.msra.mxu0 0.0
        %1679 = vmatprep.subr.mxu0 0.0
        %1680 = vmatpush1.msra.mxu0 0.0
        %1681 = vmatprep.subr.mxu0 0.0
        %1682 = vmatpush1.msra.mxu0 0.0
        %1683 = vmatprep.subr.mxu0 0.0
        %1684 = vmatpush1.msra.mxu0 0.0
        %1685 = vmatprep.subr.mxu0 0.0
        %1686 = vmatpush1.msra.mxu0 0.0
        %1687 = vmatprep.subr.mxu0 0.0
        %1688 = vmatpush1.msra.mxu0 0.0
        %1689 = vmatprep.subr.mxu0 0.0
        %1690 = vmatpush1.msra.mxu0 0.0
        %1691 = vmatprep.subr.mxu0 0.0
        %1692 = vmatpush1.msra.mxu0 0.0
        %1693 = vmatprep.subr.mxu0 0.0
        %1694 = vmatpush1.msra.mxu0 0.0
        %1695 = vmatprep.mubr.f32.mxu0 0.0
        %1696 = vmatmul.mubr.f32.gmra.mrb[0].mxu0 %v1629
        %v1697 = vpop.f32.mrb[0].mxu0
        %v1698 = vadd.f32 %v1627, %v1697
        %v1699 = vpop.f32.mrb[0].mxu0
        %1700 = vdwg.mxu0
        %v1701 = vmax.f32 %v1698, 0.0
        %v1702 = vld [vmem:[#allocation2 + $0x358] sm:$0xff]
        %v1703 = vld [vmem:[#allocation2 + $0x360] sm:$0xff]
        %v1704 = vld [vmem:[#allocation2 + $0x368] sm:$0xff]
        %v1705 = vld [vmem:[#allocation2 + $0x370] sm:$0xff]
        %v1706 = vld [vmem:[#allocation2 + $0x378] sm:$0xff]
        %v1707 = vld [vmem:[#allocation2 + $0x380] sm:$0xff]
        %v1708 = vld [vmem:[#allocation2 + $0x388] sm:$0xff]
        %v1709 = vld [vmem:[#allocation2 + $0x390] sm:$0xff]
        %v1710 = vld [vmem:[#allocation2 + $0x398] sm:$0xff]
        %v1711 = vld [vmem:[#allocation2 + $0x3a0] sm:$0xff]
        %v1712 = vld [vmem:[#allocation2 + $0x3a8] sm:$0xff]
        %v1713 = vld [vmem:[#allocation2 + $0x3b0] sm:$0xff]
        %v1714 = vld [vmem:[#allocation2 + $0x3b8] sm:$0x1]
        %v1715 = vrot.slane %v1701, 7
        %v1716 = vsel %vm1185, %v1715, 0.0
        %v1717 = vrot.slane %v1701, 1
        %v1718 = vsel %vm1189, %v1717, 0.0
        %1720 = vrot.lane.b32.xlu0 %v1701, 32
        %v1721 = vpop.permute.xlu0 %1720
        %1724 = vrot.lane.b32.xlu0 %v1718, 64
        %v1725 = vpop.permute.xlu0 %1724
        %v1727 = vsel %vm450, %v1716, %v1721
        %v1728 = vsel %vm455, %v1727, %v1725
        %v1729 = vlaneseq
        %v1730 = vshrl.u32 %v1729, 7
        %v1731 = vsub.s32 0, %v1730
        %v1732 = vrot.slane %v1714, %v1731
        %v1734 = vsel %vm464, %v1728, 0
        %1736 = vmatprep.subr.mxu0 0.0
        %1737 = vmatpush1.msra.mxu0 %v1702
        %1738 = vmatprep.subr.mxu0 0.0
        %1739 = vmatpush1.msra.mxu0 %v1703
        %1740 = vmatprep.subr.mxu0 0.0
        %1741 = vmatpush1.msra.mxu0 %v1704
        %1742 = vmatprep.subr.mxu0 0.0
        %1743 = vmatpush1.msra.mxu0 %v1705
        %1744 = vmatprep.subr.mxu0 0.0
        %1745 = vmatpush1.msra.mxu0 %v1706
        %1746 = vmatprep.subr.mxu0 0.0
        %1747 = vmatpush1.msra.mxu0 %v1707
        %1748 = vmatprep.subr.mxu0 0.0
        %1749 = vmatpush1.msra.mxu0 %v1708
        %1750 = vmatprep.subr.mxu0 0.0
        %1751 = vmatpush1.msra.mxu0 %v1709
        %1752 = vmatprep.subr.mxu0 0.0
        %1753 = vmatpush1.msra.mxu0 %v1710
        %1754 = vmatprep.subr.mxu0 0.0
        %1755 = vmatpush1.msra.mxu0 %v1711
        %1756 = vmatprep.subr.mxu0 0.0
        %1757 = vmatpush1.msra.mxu0 %v1712
        %1758 = vmatprep.subr.mxu0 0.0
        %1759 = vmatpush1.msra.mxu0 %v1713
        %1760 = vmatprep.subr.mxu0 0.0
        %1761 = vmatpush1.msra.mxu0 0.0
        %1762 = vmatprep.subr.mxu0 0.0
        %1763 = vmatpush1.msra.mxu0 0.0
        %1764 = vmatprep.subr.mxu0 0.0
        %1765 = vmatpush1.msra.mxu0 0.0
        %1766 = vmatprep.subr.mxu0 0.0
        %1767 = vmatpush1.msra.mxu0 0.0
        %1768 = vmatprep.subr.mxu0 0.0
        %1769 = vmatpush1.msra.mxu0 0.0
        %1770 = vmatprep.subr.mxu0 0.0
        %1771 = vmatpush1.msra.mxu0 0.0
        %1772 = vmatprep.subr.mxu0 0.0
        %1773 = vmatpush1.msra.mxu0 0.0
        %1774 = vmatprep.subr.mxu0 0.0
        %1775 = vmatpush1.msra.mxu0 0.0
        %1776 = vmatprep.subr.mxu0 0.0
        %1777 = vmatpush1.msra.mxu0 0.0
        %1778 = vmatprep.subr.mxu0 0.0
        %1779 = vmatpush1.msra.mxu0 0.0
        %1780 = vmatprep.subr.mxu0 0.0
        %1781 = vmatpush1.msra.mxu0 0.0
        %1782 = vmatprep.subr.mxu0 0.0
        %1783 = vmatpush1.msra.mxu0 0.0
        %1784 = vmatprep.subr.mxu0 0.0
        %1785 = vmatpush1.msra.mxu0 0.0
        %1786 = vmatprep.subr.mxu0 0.0
        %1787 = vmatpush1.msra.mxu0 0.0
        %1788 = vmatprep.subr.mxu0 0.0
        %1789 = vmatpush1.msra.mxu0 0.0
        %1790 = vmatprep.subr.mxu0 0.0
        %1791 = vmatpush1.msra.mxu0 0.0
        %1792 = vmatprep.subr.mxu0 0.0
        %1793 = vmatpush1.msra.mxu0 0.0
        %1794 = vmatprep.subr.mxu0 0.0
        %1795 = vmatpush1.msra.mxu0 0.0
        %1796 = vmatprep.subr.mxu0 0.0
        %1797 = vmatpush1.msra.mxu0 0.0
        %1798 = vmatprep.subr.mxu0 0.0
        %1799 = vmatpush1.msra.mxu0 0.0
        %1800 = vmatprep.mubr.f32.mxu0 0.0
        %1801 = vmatmul.mubr.f32.gmra.mrb[0].mxu0 %v1734
        %v1802 = vpop.f32.mrb[0].mxu0
        %v1803 = vadd.f32 %v1732, %v1802
        %v1804 = vpop.f32.mrb[0].mxu0
        %1805 = vdwg.mxu0
        %v1806 = vld [vmem:[#allocation2 + $0x3c0] sm:$0xff]
        %v1807 = vld [vmem:[#allocation2 + $0x3c8] sm:$0xff]
        %v1808 = vld [vmem:[#allocation2 + $0x3d0] sm:$0xff]
        %v1809 = vld [vmem:[#allocation2 + $0x3d8] sm:$0xff]
        %v1810 = vld [vmem:[#allocation2 + $0x3e0] sm:$0xff]
        %v1811 = vld [vmem:[#allocation2 + $0x3e8] sm:$0xff]
        %v1812 = vld [vmem:[#allocation2 + $0x3f0] sm:$0xff]
        %v1813 = vld [vmem:[#allocation2 + $0x3f8] sm:$0xff]
        %v1814 = vld [vmem:[#allocation2 + $0x400] sm:$0xff]
        %v1815 = vld [vmem:[#allocation2 + $0x408] sm:$0xff]
        %v1816 = vld [vmem:[#allocation2 + $0x410] sm:$0xff]
        %v1817 = vld [vmem:[#allocation2 + $0x418] sm:$0xff]
        %v1818 = vld [vmem:[#allocation2 + $0x420] sm:$0x1]
        %v1819 = vrot.slane %v1803, 7
        %v1820 = vsel %vm1185, %v1819, 0.0
        %v1821 = vrot.slane %v1803, 1
        %v1822 = vsel %vm1189, %v1821, 0.0
        %1824 = vrot.lane.b32.xlu0 %v1803, 32
        %v1825 = vpop.permute.xlu0 %1824
        %1828 = vrot.lane.b32.xlu0 %v1822, 64
        %v1829 = vpop.permute.xlu0 %1828
        %v1831 = vsel %vm450, %v1820, %v1825
        %v1832 = vsel %vm455, %v1831, %v1829
        %v1833 = vlaneseq
        %v1834 = vshrl.u32 %v1833, 7
        %v1835 = vsub.s32 0, %v1834
        %v1836 = vrot.slane %v1818, %v1835
        %v1838 = vsel %vm464, %v1832, 0
        %1840 = vmatprep.subr.mxu0 0.0
        %1841 = vmatpush1.msra.mxu0 %v1806
        %1842 = vmatprep.subr.mxu0 0.0
        %1843 = vmatpush1.msra.mxu0 %v1807
        %1844 = vmatprep.subr.mxu0 0.0
        %1845 = vmatpush1.msra.mxu0 %v1808
        %1846 = vmatprep.subr.mxu0 0.0
        %1847 = vmatpush1.msra.mxu0 %v1809
        %1848 = vmatprep.subr.mxu0 0.0
        %1849 = vmatpush1.msra.mxu0 %v1810
        %1850 = vmatprep.subr.mxu0 0.0
        %1851 = vmatpush1.msra.mxu0 %v1811
        %1852 = vmatprep.subr.mxu0 0.0
        %1853 = vmatpush1.msra.mxu0 %v1812
        %1854 = vmatprep.subr.mxu0 0.0
        %1855 = vmatpush1.msra.mxu0 %v1813
        %1856 = vmatprep.subr.mxu0 0.0
        %1857 = vmatpush1.msra.mxu0 %v1814
        %1858 = vmatprep.subr.mxu0 0.0
        %1859 = vmatpush1.msra.mxu0 %v1815
        %1860 = vmatprep.subr.mxu0 0.0
        %1861 = vmatpush1.msra.mxu0 %v1816
        %1862 = vmatprep.subr.mxu0 0.0
        %1863 = vmatpush1.msra.mxu0 %v1817
        %1864 = vmatprep.subr.mxu0 0.0
        %1865 = vmatpush1.msra.mxu0 0.0
        %1866 = vmatprep.subr.mxu0 0.0
        %1867 = vmatpush1.msra.mxu0 0.0
        %1868 = vmatprep.subr.mxu0 0.0
        %1869 = vmatpush1.msra.mxu0 0.0
        %1870 = vmatprep.subr.mxu0 0.0
        %1871 = vmatpush1.msra.mxu0 0.0
        %1872 = vmatprep.subr.mxu0 0.0
        %1873 = vmatpush1.msra.mxu0 0.0
        %1874 = vmatprep.subr.mxu0 0.0
        %1875 = vmatpush1.msra.mxu0 0.0
        %1876 = vmatprep.subr.mxu0 0.0
        %1877 = vmatpush1.msra.mxu0 0.0
        %1878 = vmatprep.subr.mxu0 0.0
        %1879 = vmatpush1.msra.mxu0 0.0
        %1880 = vmatprep.subr.mxu0 0.0
        %1881 = vmatpush1.msra.mxu0 0.0
        %1882 = vmatprep.subr.mxu0 0.0
        %1883 = vmatpush1.msra.mxu0 0.0
        %1884 = vmatprep.subr.mxu0 0.0
        %1885 = vmatpush1.msra.mxu0 0.0
        %1886 = vmatprep.subr.mxu0 0.0
        %1887 = vmatpush1.msra.mxu0 0.0
        %1888 = vmatprep.subr.mxu0 0.0
        %1889 = vmatpush1.msra.mxu0 0.0
        %1890 = vmatprep.subr.mxu0 0.0
        %1891 = vmatpush1.msra.mxu0 0.0
        %1892 = vmatprep.subr.mxu0 0.0
        %1893 = vmatpush1.msra.mxu0 0.0
        %1894 = vmatprep.subr.mxu0 0.0
        %1895 = vmatpush1.msra.mxu0 0.0
        %1896 = vmatprep.subr.mxu0 0.0
        %1897 = vmatpush1.msra.mxu0 0.0
        %1898 = vmatprep.subr.mxu0 0.0
        %1899 = vmatpush1.msra.mxu0 0.0
        %1900 = vmatprep.subr.mxu0 0.0
        %1901 = vmatpush1.msra.mxu0 0.0
        %1902 = vmatprep.subr.mxu0 0.0
        %1903 = vmatpush1.msra.mxu0 0.0
        %1904 = vmatprep.mubr.f32.mxu0 0.0
        %1905 = vmatmul.mubr.f32.gmra.mrb[0].mxu0 %v1838
        %v1906 = vpop.f32.mrb[0].mxu0
        %v1907 = vadd.f32 %v1836, %v1906
        %v1908 = vpop.f32.mrb[0].mxu0
        %1909 = vdwg.mxu0
        %v1910 = vmax.f32 %v1907, 0.0
        %v1911 = vld [vmem:[#allocation2 + $0x428] sm:$0xff]
        %v1912 = vld [vmem:[#allocation2 + $0x430] sm:$0xff]
        %v1913 = vld [vmem:[#allocation2 + $0x438] sm:$0xff]
        %v1914 = vld [vmem:[#allocation2 + $0x440] sm:$0xff]
        %v1915 = vld [vmem:[#allocation2 + $0x448] sm:$0xff]
        %v1916 = vld [vmem:[#allocation2 + $0x450] sm:$0xff]
        %v1917 = vld [vmem:[#allocation2 + $0x458] sm:$0xff]
        %v1918 = vld [vmem:[#allocation2 + $0x460] sm:$0xff]
        %v1919 = vld [vmem:[#allocation2 + $0x468] sm:$0xff]
        %v1920 = vld [vmem:[#allocation2 + $0x470] sm:$0xff]
        %v1921 = vld [vmem:[#allocation2 + $0x478] sm:$0xff]
        %v1922 = vld [vmem:[#allocation2 + $0x480] sm:$0xff]
        %v1923 = vld [vmem:[#allocation2 + $0x488] sm:$0x1]
        %v1924 = vrot.slane %v1910, 6
        %v1925 = vsel %vm1503, %v1924, 0.0
        %v1926 = vrot.slane %v1910, 2
        %v1927 = vsel %vm1507, %v1926, 0.0
        %1929 = vrot.lane.b32.xlu0 %v1910, 32
        %v1930 = vpop.permute.xlu0 %1929
        %1933 = vrot.lane.b32.xlu0 %v1927, 64
        %v1934 = vpop.permute.xlu0 %1933
        %v1936 = vsel %vm450, %v1925, %v1930
        %v1937 = vsel %vm455, %v1936, %v1934
        %v1938 = vlaneseq
        %v1939 = vshrl.u32 %v1938, 7
        %v1940 = vsub.s32 0, %v1939
        %v1941 = vrot.slane %v1923, %v1940
        %v1943 = vsel %vm464, %v1937, 0
        %1945 = vmatprep.subr.mxu0 0.0
        %1946 = vmatpush1.msra.mxu0 %v1911
        %1947 = vmatprep.subr.mxu0 0.0
        %1948 = vmatpush1.msra.mxu0 %v1912
        %1949 = vmatprep.subr.mxu0 0.0
        %1950 = vmatpush1.msra.mxu0 %v1913
        %1951 = vmatprep.subr.mxu0 0.0
        %1952 = vmatpush1.msra.mxu0 %v1914
        %1953 = vmatprep.subr.mxu0 0.0
        %1954 = vmatpush1.msra.mxu0 %v1915
        %1955 = vmatprep.subr.mxu0 0.0
        %1956 = vmatpush1.msra.mxu0 %v1916
        %1957 = vmatprep.subr.mxu0 0.0
        %1958 = vmatpush1.msra.mxu0 %v1917
        %1959 = vmatprep.subr.mxu0 0.0
        %1960 = vmatpush1.msra.mxu0 %v1918
        %1961 = vmatprep.subr.mxu0 0.0
        %1962 = vmatpush1.msra.mxu0 %v1919
        %1963 = vmatprep.subr.mxu0 0.0
        %1964 = vmatpush1.msra.mxu0 %v1920
        %1965 = vmatprep.subr.mxu0 0.0
        %1966 = vmatpush1.msra.mxu0 %v1921
        %1967 = vmatprep.subr.mxu0 0.0
        %1968 = vmatpush1.msra.mxu0 %v1922
        %1969 = vmatprep.subr.mxu0 0.0
        %1970 = vmatpush1.msra.mxu0 0.0
        %1971 = vmatprep.subr.mxu0 0.0
        %1972 = vmatpush1.msra.mxu0 0.0
        %1973 = vmatprep.subr.mxu0 0.0
        %1974 = vmatpush1.msra.mxu0 0.0
        %1975 = vmatprep.subr.mxu0 0.0
        %1976 = vmatpush1.msra.mxu0 0.0
        %1977 = vmatprep.subr.mxu0 0.0
        %1978 = vmatpush1.msra.mxu0 0.0
        %1979 = vmatprep.subr.mxu0 0.0
        %1980 = vmatpush1.msra.mxu0 0.0
        %1981 = vmatprep.subr.mxu0 0.0
        %1982 = vmatpush1.msra.mxu0 0.0
        %1983 = vmatprep.subr.mxu0 0.0
        %1984 = vmatpush1.msra.mxu0 0.0
        %1985 = vmatprep.subr.mxu0 0.0
        %1986 = vmatpush1.msra.mxu0 0.0
        %1987 = vmatprep.subr.mxu0 0.0
        %1988 = vmatpush1.msra.mxu0 0.0
        %1989 = vmatprep.subr.mxu0 0.0
        %1990 = vmatpush1.msra.mxu0 0.0
        %1991 = vmatprep.subr.mxu0 0.0
        %1992 = vmatpush1.msra.mxu0 0.0
        %1993 = vmatprep.subr.mxu0 0.0
        %1994 = vmatpush1.msra.mxu0 0.0
        %1995 = vmatprep.subr.mxu0 0.0
        %1996 = vmatpush1.msra.mxu0 0.0
        %1997 = vmatprep.subr.mxu0 0.0
        %1998 = vmatpush1.msra.mxu0 0.0
        %1999 = vmatprep.subr.mxu0 0.0
        %2000 = vmatpush1.msra.mxu0 0.0
        %2001 = vmatprep.subr.mxu0 0.0
        %2002 = vmatpush1.msra.mxu0 0.0
        %2003 = vmatprep.subr.mxu0 0.0
        %2004 = vmatpush1.msra.mxu0 0.0
        %2005 = vmatprep.subr.mxu0 0.0
        %2006 = vmatpush1.msra.mxu0 0.0
        %2007 = vmatprep.subr.mxu0 0.0
        %2008 = vmatpush1.msra.mxu0 0.0
        %2009 = vmatprep.mubr.f32.mxu0 0.0
        %2010 = vmatmul.mubr.f32.gmra.mrb[0].mxu0 %v1943
        %v2011 = vpop.f32.mrb[0].mxu0
        %v2012 = vadd.f32 %v1941, %v2011
        %v2013 = vpop.f32.mrb[0].mxu0
        %2014 = vdwg.mxu0
        %v2015 = vmax.f32 %v2012, 0.0
        %v2016 = vld [vmem:[#allocation2 + $0x490] sm:$0xff]
        %v2017 = vld [vmem:[#allocation2 + $0x498] sm:$0xff]
        %v2018 = vld [vmem:[#allocation2 + $0x4a0] sm:$0xff]
        %v2019 = vld [vmem:[#allocation2 + $0x4a8] sm:$0xff]
        %v2020 = vld [vmem:[#allocation2 + $0x4b0] sm:$0xff]
        %v2021 = vld [vmem:[#allocation2 + $0x4b8] sm:$0xff]
        %v2022 = vld [vmem:[#allocation2 + $0x4c0] sm:$0xff]
        %v2023 = vld [vmem:[#allocation2 + $0x4c8] sm:$0xff]
        %v2024 = vld [vmem:[#allocation2 + $0x4d0] sm:$0xff]
        %v2025 = vld [vmem:[#allocation2 + $0x4d8] sm:$0xff]
        %v2026 = vld [vmem:[#allocation2 + $0x4e0] sm:$0xff]
        %v2027 = vld [vmem:[#allocation2 + $0x4e8] sm:$0xff]
        %v2028 = vld [vmem:[#allocation2 + $0x4f0] sm:$0x1]
        %v2029 = vrot.slane %v2015, 7
        %v2030 = vsel %vm1185, %v2029, 0.0
        %v2031 = vrot.slane %v2015, 1
        %v2032 = vsel %vm1189, %v2031, 0.0
        %2034 = vrot.lane.b32.xlu0 %v2015, 32
        %v2035 = vpop.permute.xlu0 %2034
        %2038 = vrot.lane.b32.xlu0 %v2032, 64
        %v2039 = vpop.permute.xlu0 %2038
        %v2041 = vsel %vm450, %v2030, %v2035
        %v2042 = vsel %vm455, %v2041, %v2039
        %v2043 = vlaneseq
        %v2044 = vshrl.u32 %v2043, 7
        %v2045 = vsub.s32 0, %v2044
        %v2046 = vrot.slane %v2028, %v2045
        %v2048 = vsel %vm464, %v2042, 0
        %2050 = vmatprep.subr.mxu0 0.0
        %2051 = vmatpush1.msra.mxu0 %v2016
        %2052 = vmatprep.subr.mxu0 0.0
        %2053 = vmatpush1.msra.mxu0 %v2017
        %2054 = vmatprep.subr.mxu0 0.0
        %2055 = vmatpush1.msra.mxu0 %v2018
        %2056 = vmatprep.subr.mxu0 0.0
        %2057 = vmatpush1.msra.mxu0 %v2019
        %2058 = vmatprep.subr.mxu0 0.0
        %2059 = vmatpush1.msra.mxu0 %v2020
        %2060 = vmatprep.subr.mxu0 0.0
        %2061 = vmatpush1.msra.mxu0 %v2021
        %2062 = vmatprep.subr.mxu0 0.0
        %2063 = vmatpush1.msra.mxu0 %v2022
        %2064 = vmatprep.subr.mxu0 0.0
        %2065 = vmatpush1.msra.mxu0 %v2023
        %2066 = vmatprep.subr.mxu0 0.0
        %2067 = vmatpush1.msra.mxu0 %v2024
        %2068 = vmatprep.subr.mxu0 0.0
        %2069 = vmatpush1.msra.mxu0 %v2025
        %2070 = vmatprep.subr.mxu0 0.0
        %2071 = vmatpush1.msra.mxu0 %v2026
        %2072 = vmatprep.subr.mxu0 0.0
        %2073 = vmatpush1.msra.mxu0 %v2027
        %2074 = vmatprep.subr.mxu0 0.0
        %2075 = vmatpush1.msra.mxu0 0.0
        %2076 = vmatprep.subr.mxu0 0.0
        %2077 = vmatpush1.msra.mxu0 0.0
        %2078 = vmatprep.subr.mxu0 0.0
        %2079 = vmatpush1.msra.mxu0 0.0
        %2080 = vmatprep.subr.mxu0 0.0
        %2081 = vmatpush1.msra.mxu0 0.0
        %2082 = vmatprep.subr.mxu0 0.0
        %2083 = vmatpush1.msra.mxu0 0.0
        %2084 = vmatprep.subr.mxu0 0.0
        %2085 = vmatpush1.msra.mxu0 0.0
        %2086 = vmatprep.subr.mxu0 0.0
        %2087 = vmatpush1.msra.mxu0 0.0
        %2088 = vmatprep.subr.mxu0 0.0
        %2089 = vmatpush1.msra.mxu0 0.0
        %2090 = vmatprep.subr.mxu0 0.0
        %2091 = vmatpush1.msra.mxu0 0.0
        %2092 = vmatprep.subr.mxu0 0.0
        %2093 = vmatpush1.msra.mxu0 0.0
        %2094 = vmatprep.subr.mxu0 0.0
        %2095 = vmatpush1.msra.mxu0 0.0
        %2096 = vmatprep.subr.mxu0 0.0
        %2097 = vmatpush1.msra.mxu0 0.0
        %2098 = vmatprep.subr.mxu0 0.0
        %2099 = vmatpush1.msra.mxu0 0.0
        %2100 = vmatprep.subr.mxu0 0.0
        %2101 = vmatpush1.msra.mxu0 0.0
        %2102 = vmatprep.subr.mxu0 0.0
        %2103 = vmatpush1.msra.mxu0 0.0
        %2104 = vmatprep.subr.mxu0 0.0
        %2105 = vmatpush1.msra.mxu0 0.0
        %2106 = vmatprep.subr.mxu0 0.0
        %2107 = vmatpush1.msra.mxu0 0.0
        %2108 = vmatprep.subr.mxu0 0.0
        %2109 = vmatpush1.msra.mxu0 0.0
        %2110 = vmatprep.subr.mxu0 0.0
        %2111 = vmatpush1.msra.mxu0 0.0
        %2112 = vmatprep.subr.mxu0 0.0
        %2113 = vmatpush1.msra.mxu0 0.0
        %2114 = vmatprep.mubr.f32.mxu0 0.0
        %2115 = vmatmul.mubr.f32.gmra.mrb[0].mxu0 %v2048
        %v2116 = vpop.f32.mrb[0].mxu0
        %v2117 = vadd.f32 %v2046, %v2116
        %v2118 = vpop.f32.mrb[0].mxu0
        %2119 = vdwg.mxu0
        %v2120 = vmax.f32 %v2117, 0.0
        %v2121 = vld [vmem:[#allocation2 + $0x4f8] sm:$0xff]
        %v2122 = vld [vmem:[#allocation2 + $0x500] sm:$0xff]
        %v2123 = vld [vmem:[#allocation2 + $0x508] sm:$0xff]
        %v2124 = vld [vmem:[#allocation2 + $0x510] sm:$0xff]
        %v2125 = vld [vmem:[#allocation2 + $0x518] sm:$0xff]
        %v2126 = vld [vmem:[#allocation2 + $0x520] sm:$0xff]
        %v2127 = vld [vmem:[#allocation2 + $0x528] sm:$0xff]
        %v2128 = vld [vmem:[#allocation2 + $0x530] sm:$0xff]
        %v2129 = vld [vmem:[#allocation2 + $0x538] sm:$0xff]
        %v2130 = vld [vmem:[#allocation2 + $0x540] sm:$0xff]
        %v2131 = vld [vmem:[#allocation2 + $0x548] sm:$0xff]
        %v2132 = vld [vmem:[#allocation2 + $0x550] sm:$0xff]
        %v2133 = vld [vmem:[#allocation2 + $0x558] sm:$0x1]
        %v2134 = vrot.slane %v2120, 7
        %v2135 = vsel %vm1185, %v2134, 0.0
        %v2136 = vrot.slane %v2120, 1
        %v2137 = vsel %vm1189, %v2136, 0.0
        %2139 = vrot.lane.b32.xlu0 %v2120, 32
        %v2140 = vpop.permute.xlu0 %2139
        %2143 = vrot.lane.b32.xlu0 %v2137, 64
        %v2144 = vpop.permute.xlu0 %2143
        %v2146 = vsel %vm450, %v2135, %v2140
        %v2147 = vsel %vm455, %v2146, %v2144
        %v2148 = vlaneseq
        %v2149 = vshrl.u32 %v2148, 7
        %v2150 = vsub.s32 0, %v2149
        %v2151 = vrot.slane %v2133, %v2150
        %v2153 = vsel %vm464, %v2147, 0
        %2155 = vmatprep.subr.mxu0 0.0
        %2156 = vmatpush1.msra.mxu0 %v2121
        %2157 = vmatprep.subr.mxu0 0.0
        %2158 = vmatpush1.msra.mxu0 %v2122
        %2159 = vmatprep.subr.mxu0 0.0
        %2160 = vmatpush1.msra.mxu0 %v2123
        %2161 = vmatprep.subr.mxu0 0.0
        %2162 = vmatpush1.msra.mxu0 %v2124
        %2163 = vmatprep.subr.mxu0 0.0
        %2164 = vmatpush1.msra.mxu0 %v2125
        %2165 = vmatprep.subr.mxu0 0.0
        %2166 = vmatpush1.msra.mxu0 %v2126
        %2167 = vmatprep.subr.mxu0 0.0
        %2168 = vmatpush1.msra.mxu0 %v2127
        %2169 = vmatprep.subr.mxu0 0.0
        %2170 = vmatpush1.msra.mxu0 %v2128
        %2171 = vmatprep.subr.mxu0 0.0
        %2172 = vmatpush1.msra.mxu0 %v2129
        %2173 = vmatprep.subr.mxu0 0.0
        %2174 = vmatpush1.msra.mxu0 %v2130
        %2175 = vmatprep.subr.mxu0 0.0
        %2176 = vmatpush1.msra.mxu0 %v2131
        %2177 = vmatprep.subr.mxu0 0.0
        %2178 = vmatpush1.msra.mxu0 %v2132
        %2179 = vmatprep.subr.mxu0 0.0
        %2180 = vmatpush1.msra.mxu0 0.0
        %2181 = vmatprep.subr.mxu0 0.0
        %2182 = vmatpush1.msra.mxu0 0.0
        %2183 = vmatprep.subr.mxu0 0.0
        %2184 = vmatpush1.msra.mxu0 0.0
        %2185 = vmatprep.subr.mxu0 0.0
        %2186 = vmatpush1.msra.mxu0 0.0
        %2187 = vmatprep.subr.mxu0 0.0
        %2188 = vmatpush1.msra.mxu0 0.0
        %2189 = vmatprep.subr.mxu0 0.0
        %2190 = vmatpush1.msra.mxu0 0.0
        %2191 = vmatprep.subr.mxu0 0.0
        %2192 = vmatpush1.msra.mxu0 0.0
        %2193 = vmatprep.subr.mxu0 0.0
        %2194 = vmatpush1.msra.mxu0 0.0
        %2195 = vmatprep.subr.mxu0 0.0
        %2196 = vmatpush1.msra.mxu0 0.0
        %2197 = vmatprep.subr.mxu0 0.0
        %2198 = vmatpush1.msra.mxu0 0.0
        %2199 = vmatprep.subr.mxu0 0.0
        %2200 = vmatpush1.msra.mxu0 0.0
        %2201 = vmatprep.subr.mxu0 0.0
        %2202 = vmatpush1.msra.mxu0 0.0
        %2203 = vmatprep.subr.mxu0 0.0
        %2204 = vmatpush1.msra.mxu0 0.0
        %2205 = vmatprep.subr.mxu0 0.0
        %2206 = vmatpush1.msra.mxu0 0.0
        %2207 = vmatprep.subr.mxu0 0.0
        %2208 = vmatpush1.msra.mxu0 0.0
        %2209 = vmatprep.subr.mxu0 0.0
        %2210 = vmatpush1.msra.mxu0 0.0
        %2211 = vmatprep.subr.mxu0 0.0
        %2212 = vmatpush1.msra.mxu0 0.0
        %2213 = vmatprep.subr.mxu0 0.0
        %2214 = vmatpush1.msra.mxu0 0.0
        %2215 = vmatprep.subr.mxu0 0.0
        %2216 = vmatpush1.msra.mxu0 0.0
        %2217 = vmatprep.subr.mxu0 0.0
        %2218 = vmatpush1.msra.mxu0 0.0
        %2219 = vmatprep.mubr.f32.mxu0 0.0
        %2220 = vmatmul.mubr.f32.gmra.mrb[0].mxu0 %v2153
        %v2221 = vpop.f32.mrb[0].mxu0
        %v2222 = vadd.f32 %v2151, %v2221
        %v2223 = vpop.f32.mrb[0].mxu0
        %2224 = vdwg.mxu0
        %v2225 = vld [vmem:[#allocation2 + $0x560] sm:$0xff]
        %v2226 = vld [vmem:[#allocation2 + $0x568] sm:$0xff]
        %v2227 = vld [vmem:[#allocation2 + $0x570] sm:$0xff]
        %v2228 = vld [vmem:[#allocation2 + $0x578] sm:$0xff]
        %v2229 = vld [vmem:[#allocation2 + $0x580] sm:$0xff]
        %v2230 = vld [vmem:[#allocation2 + $0x588] sm:$0xff]
        %v2231 = vld [vmem:[#allocation2 + $0x590] sm:$0xff]
        %v2232 = vld [vmem:[#allocation2 + $0x598] sm:$0xff]
        %v2233 = vld [vmem:[#allocation2 + $0x5a0] sm:$0xff]
        %v2234 = vld [vmem:[#allocation2 + $0x5a8] sm:$0xff]
        %v2235 = vld [vmem:[#allocation2 + $0x5b0] sm:$0xff]
        %v2236 = vld [vmem:[#allocation2 + $0x5b8] sm:$0xff]
        %v2237 = vld [vmem:[#allocation2 + $0x5c0] sm:$0x1]
        %v2238 = vrot.slane %v2222, 7
        %v2239 = vsel %vm1185, %v2238, 0.0
        %v2240 = vrot.slane %v2222, 1
        %v2241 = vsel %vm1189, %v2240, 0.0
        %2243 = vrot.lane.b32.xlu0 %v2222, 32
        %v2244 = vpop.permute.xlu0 %2243
        %2247 = vrot.lane.b32.xlu0 %v2241, 64
        %v2248 = vpop.permute.xlu0 %2247
        %v2250 = vsel %vm450, %v2239, %v2244
        %v2251 = vsel %vm455, %v2250, %v2248
        %v2252 = vlaneseq
        %v2253 = vshrl.u32 %v2252, 7
        %v2254 = vsub.s32 0, %v2253
        %v2255 = vrot.slane %v2237, %v2254
        %v2257 = vsel %vm464, %v2251, 0
        %2259 = vmatprep.subr.mxu0 0.0
        %2260 = vmatpush1.msra.mxu0 %v2225
        %2261 = vmatprep.subr.mxu0 0.0
        %2262 = vmatpush1.msra.mxu0 %v2226
        %2263 = vmatprep.subr.mxu0 0.0
        %2264 = vmatpush1.msra.mxu0 %v2227
        %2265 = vmatprep.subr.mxu0 0.0
        %2266 = vmatpush1.msra.mxu0 %v2228
        %2267 = vmatprep.subr.mxu0 0.0
        %2268 = vmatpush1.msra.mxu0 %v2229
        %2269 = vmatprep.subr.mxu0 0.0
        %2270 = vmatpush1.msra.mxu0 %v2230
        %2271 = vmatprep.subr.mxu0 0.0
        %2272 = vmatpush1.msra.mxu0 %v2231
        %2273 = vmatprep.subr.mxu0 0.0
        %2274 = vmatpush1.msra.mxu0 %v2232
        %2275 = vmatprep.subr.mxu0 0.0
        %2276 = vmatpush1.msra.mxu0 %v2233
        %2277 = vmatprep.subr.mxu0 0.0
        %2278 = vmatpush1.msra.mxu0 %v2234
        %2279 = vmatprep.subr.mxu0 0.0
        %2280 = vmatpush1.msra.mxu0 %v2235
        %2281 = vmatprep.subr.mxu0 0.0
        %2282 = vmatpush1.msra.mxu0 %v2236
        %2283 = vmatprep.subr.mxu0 0.0
        %2284 = vmatpush1.msra.mxu0 0.0
        %2285 = vmatprep.subr.mxu0 0.0
        %2286 = vmatpush1.msra.mxu0 0.0
        %2287 = vmatprep.subr.mxu0 0.0
        %2288 = vmatpush1.msra.mxu0 0.0
        %2289 = vmatprep.subr.mxu0 0.0
        %2290 = vmatpush1.msra.mxu0 0.0
        %2291 = vmatprep.subr.mxu0 0.0
        %2292 = vmatpush1.msra.mxu0 0.0
        %2293 = vmatprep.subr.mxu0 0.0
        %2294 = vmatpush1.msra.mxu0 0.0
        %2295 = vmatprep.subr.mxu0 0.0
        %2296 = vmatpush1.msra.mxu0 0.0
        %2297 = vmatprep.subr.mxu0 0.0
        %2298 = vmatpush1.msra.mxu0 0.0
        %2299 = vmatprep.subr.mxu0 0.0
        %2300 = vmatpush1.msra.mxu0 0.0
        %2301 = vmatprep.subr.mxu0 0.0
        %2302 = vmatpush1.msra.mxu0 0.0
        %2303 = vmatprep.subr.mxu0 0.0
        %2304 = vmatpush1.msra.mxu0 0.0
        %2305 = vmatprep.subr.mxu0 0.0
        %2306 = vmatpush1.msra.mxu0 0.0
        %2307 = vmatprep.subr.mxu0 0.0
        %2308 = vmatpush1.msra.mxu0 0.0
        %2309 = vmatprep.subr.mxu0 0.0
        %2310 = vmatpush1.msra.mxu0 0.0
        %2311 = vmatprep.subr.mxu0 0.0
        %2312 = vmatpush1.msra.mxu0 0.0
        %2313 = vmatprep.subr.mxu0 0.0
        %2314 = vmatpush1.msra.mxu0 0.0
        %2315 = vmatprep.subr.mxu0 0.0
        %2316 = vmatpush1.msra.mxu0 0.0
        %2317 = vmatprep.subr.mxu0 0.0
        %2318 = vmatpush1.msra.mxu0 0.0
        %2319 = vmatprep.subr.mxu0 0.0
        %2320 = vmatpush1.msra.mxu0 0.0
        %2321 = vmatprep.subr.mxu0 0.0
        %2322 = vmatpush1.msra.mxu0 0.0
        %2323 = vmatprep.mubr.f32.mxu0 0.0
        %2324 = vmatmul.mubr.f32.gmra.mrb[0].mxu0 %v2257
        %v2325 = vpop.f32.mrb[0].mxu0
        %v2326 = vadd.f32 %v2255, %v2325
        %v2327 = vpop.f32.mrb[0].mxu0
        %2328 = vdwg.mxu0
        %v2329 = vmax.f32 %v2326, 0.0
        %v2330 = vld [vmem:[#allocation2 + $0x5c8] sm:$0xff]
        %v2331 = vld [vmem:[#allocation2 + $0x5d0] sm:$0xff]
        %v2332 = vld [vmem:[#allocation2 + $0x5d8] sm:$0xff]
        %v2333 = vld [vmem:[#allocation2 + $0x5e0] sm:$0xff]
        %v2334 = vld [vmem:[#allocation2 + $0x5e8] sm:$0xff]
        %v2335 = vld [vmem:[#allocation2 + $0x5f0] sm:$0xff]
        %v2336 = vld [vmem:[#allocation2 + $0x5f8] sm:$0xff]
        %v2337 = vld [vmem:[#allocation2 + $0x600] sm:$0xff]
        %v2338 = vld [vmem:[#allocation2 + $0x608] sm:$0xff]
        %v2339 = vld [vmem:[#allocation2 + $0x610] sm:$0xff]
        %v2340 = vld [vmem:[#allocation2 + $0x618] sm:$0xff]
        %v2341 = vld [vmem:[#allocation2 + $0x620] sm:$0xff]
        %v2342 = vld [vmem:[#allocation2 + $0x628] sm:$0x1]
        %v2343 = vrot.slane %v2329, 6
        %v2344 = vsel %vm1503, %v2343, 0.0
        %v2345 = vrot.slane %v2329, 2
        %v2346 = vsel %vm1507, %v2345, 0.0
        %2348 = vrot.lane.b32.xlu0 %v2329, 32
        %v2349 = vpop.permute.xlu0 %2348
        %2352 = vrot.lane.b32.xlu0 %v2346, 64
        %v2353 = vpop.permute.xlu0 %2352
        %v2355 = vsel %vm450, %v2344, %v2349
        %v2356 = vsel %vm455, %v2355, %v2353
        %v2357 = vlaneseq
        %v2358 = vshrl.u32 %v2357, 7
        %v2359 = vsub.s32 0, %v2358
        %v2360 = vrot.slane %v2342, %v2359
        %v2362 = vsel %vm464, %v2356, 0
        %2364 = vmatprep.subr.mxu0 0.0
        %2365 = vmatpush1.msra.mxu0 %v2330
        %2366 = vmatprep.subr.mxu0 0.0
        %2367 = vmatpush1.msra.mxu0 %v2331
        %2368 = vmatprep.subr.mxu0 0.0
        %2369 = vmatpush1.msra.mxu0 %v2332
        %2370 = vmatprep.subr.mxu0 0.0
        %2371 = vmatpush1.msra.mxu0 %v2333
        %2372 = vmatprep.subr.mxu0 0.0
        %2373 = vmatpush1.msra.mxu0 %v2334
        %2374 = vmatprep.subr.mxu0 0.0
        %2375 = vmatpush1.msra.mxu0 %v2335
        %2376 = vmatprep.subr.mxu0 0.0
        %2377 = vmatpush1.msra.mxu0 %v2336
        %2378 = vmatprep.subr.mxu0 0.0
        %2379 = vmatpush1.msra.mxu0 %v2337
        %2380 = vmatprep.subr.mxu0 0.0
        %2381 = vmatpush1.msra.mxu0 %v2338
        %2382 = vmatprep.subr.mxu0 0.0
        %2383 = vmatpush1.msra.mxu0 %v2339
        %2384 = vmatprep.subr.mxu0 0.0
        %2385 = vmatpush1.msra.mxu0 %v2340
        %2386 = vmatprep.subr.mxu0 0.0
        %2387 = vmatpush1.msra.mxu0 %v2341
        %2388 = vmatprep.subr.mxu0 0.0
        %2389 = vmatpush1.msra.mxu0 0.0
        %2390 = vmatprep.subr.mxu0 0.0
        %2391 = vmatpush1.msra.mxu0 0.0
        %2392 = vmatprep.subr.mxu0 0.0
        %2393 = vmatpush1.msra.mxu0 0.0
        %2394 = vmatprep.subr.mxu0 0.0
        %2395 = vmatpush1.msra.mxu0 0.0
        %2396 = vmatprep.subr.mxu0 0.0
        %2397 = vmatpush1.msra.mxu0 0.0
        %2398 = vmatprep.subr.mxu0 0.0
        %2399 = vmatpush1.msra.mxu0 0.0
        %2400 = vmatprep.subr.mxu0 0.0
        %2401 = vmatpush1.msra.mxu0 0.0
        %2402 = vmatprep.subr.mxu0 0.0
        %2403 = vmatpush1.msra.mxu0 0.0
        %2404 = vmatprep.subr.mxu0 0.0
        %2405 = vmatpush1.msra.mxu0 0.0
        %2406 = vmatprep.subr.mxu0 0.0
        %2407 = vmatpush1.msra.mxu0 0.0
        %2408 = vmatprep.subr.mxu0 0.0
        %2409 = vmatpush1.msra.mxu0 0.0
        %2410 = vmatprep.subr.mxu0 0.0
        %2411 = vmatpush1.msra.mxu0 0.0
        %2412 = vmatprep.subr.mxu0 0.0
        %2413 = vmatpush1.msra.mxu0 0.0
        %2414 = vmatprep.subr.mxu0 0.0
        %2415 = vmatpush1.msra.mxu0 0.0
        %2416 = vmatprep.subr.mxu0 0.0
        %2417 = vmatpush1.msra.mxu0 0.0
        %2418 = vmatprep.subr.mxu0 0.0
        %2419 = vmatpush1.msra.mxu0 0.0
        %2420 = vmatprep.subr.mxu0 0.0
        %2421 = vmatpush1.msra.mxu0 0.0
        %2422 = vmatprep.subr.mxu0 0.0
        %2423 = vmatpush1.msra.mxu0 0.0
        %2424 = vmatprep.subr.mxu0 0.0
        %2425 = vmatpush1.msra.mxu0 0.0
        %2426 = vmatprep.subr.mxu0 0.0
        %2427 = vmatpush1.msra.mxu0 0.0
        %2428 = vmatprep.mubr.f32.mxu0 0.0
        %2429 = vmatmul.mubr.f32.gmra.mrb[0].mxu0 %v2362
        %v2430 = vpop.f32.mrb[0].mxu0
        %v2431 = vadd.f32 %v2360, %v2430
        %v2432 = vpop.f32.mrb[0].mxu0
        %2433 = vdwg.mxu0
        %v2434 = vmax.f32 %v2431, 0.0
        %v2435 = vld [vmem:[#allocation2 + $0x630] sm:$0xff]
        %v2436 = vld [vmem:[#allocation2 + $0x638] sm:$0xff]
        %v2437 = vld [vmem:[#allocation2 + $0x640] sm:$0xff]
        %v2438 = vld [vmem:[#allocation2 + $0x648] sm:$0xff]
        %v2439 = vld [vmem:[#allocation2 + $0x650] sm:$0xff]
        %v2440 = vld [vmem:[#allocation2 + $0x658] sm:$0xff]
        %v2441 = vld [vmem:[#allocation2 + $0x660] sm:$0xff]
        %v2442 = vld [vmem:[#allocation2 + $0x668] sm:$0xff]
        %v2443 = vld [vmem:[#allocation2 + $0x670] sm:$0xff]
        %v2444 = vld [vmem:[#allocation2 + $0x678] sm:$0xff]
        %v2445 = vld [vmem:[#allocation2 + $0x680] sm:$0xff]
        %v2446 = vld [vmem:[#allocation2 + $0x688] sm:$0xff]
        %v2447 = vld [vmem:[#allocation2 + $0x690] sm:$0x1]
        %v2448 = vrot.slane %v2434, 7
        %v2449 = vsel %vm1185, %v2448, 0.0
        %v2450 = vrot.slane %v2434, 1
        %v2451 = vsel %vm1189, %v2450, 0.0
        %2453 = vrot.lane.b32.xlu0 %v2434, 32
        %v2454 = vpop.permute.xlu0 %2453
        %2457 = vrot.lane.b32.xlu0 %v2451, 64
        %v2458 = vpop.permute.xlu0 %2457
        %v2460 = vsel %vm450, %v2449, %v2454
        %v2461 = vsel %vm455, %v2460, %v2458
        %v2462 = vlaneseq
        %v2463 = vshrl.u32 %v2462, 7
        %v2464 = vsub.s32 0, %v2463
        %v2465 = vrot.slane %v2447, %v2464
        %v2467 = vsel %vm464, %v2461, 0
        %2469 = vmatprep.subr.mxu0 0.0
        %2470 = vmatpush1.msra.mxu0 %v2435
        %2471 = vmatprep.subr.mxu0 0.0
        %2472 = vmatpush1.msra.mxu0 %v2436
        %2473 = vmatprep.subr.mxu0 0.0
        %2474 = vmatpush1.msra.mxu0 %v2437
        %2475 = vmatprep.subr.mxu0 0.0
        %2476 = vmatpush1.msra.mxu0 %v2438
        %2477 = vmatprep.subr.mxu0 0.0
        %2478 = vmatpush1.msra.mxu0 %v2439
        %2479 = vmatprep.subr.mxu0 0.0
        %2480 = vmatpush1.msra.mxu0 %v2440
        %2481 = vmatprep.subr.mxu0 0.0
        %2482 = vmatpush1.msra.mxu0 %v2441
        %2483 = vmatprep.subr.mxu0 0.0
        %2484 = vmatpush1.msra.mxu0 %v2442
        %2485 = vmatprep.subr.mxu0 0.0
        %2486 = vmatpush1.msra.mxu0 %v2443
        %2487 = vmatprep.subr.mxu0 0.0
        %2488 = vmatpush1.msra.mxu0 %v2444
        %2489 = vmatprep.subr.mxu0 0.0
        %2490 = vmatpush1.msra.mxu0 %v2445
        %2491 = vmatprep.subr.mxu0 0.0
        %2492 = vmatpush1.msra.mxu0 %v2446
        %2493 = vmatprep.subr.mxu0 0.0
        %2494 = vmatpush1.msra.mxu0 0.0
        %2495 = vmatprep.subr.mxu0 0.0
        %2496 = vmatpush1.msra.mxu0 0.0
        %2497 = vmatprep.subr.mxu0 0.0
        %2498 = vmatpush1.msra.mxu0 0.0
        %2499 = vmatprep.subr.mxu0 0.0
        %2500 = vmatpush1.msra.mxu0 0.0
        %2501 = vmatprep.subr.mxu0 0.0
        %2502 = vmatpush1.msra.mxu0 0.0
        %2503 = vmatprep.subr.mxu0 0.0
        %2504 = vmatpush1.msra.mxu0 0.0
        %2505 = vmatprep.subr.mxu0 0.0
        %2506 = vmatpush1.msra.mxu0 0.0
        %2507 = vmatprep.subr.mxu0 0.0
        %2508 = vmatpush1.msra.mxu0 0.0
        %2509 = vmatprep.subr.mxu0 0.0
        %2510 = vmatpush1.msra.mxu0 0.0
        %2511 = vmatprep.subr.mxu0 0.0
        %2512 = vmatpush1.msra.mxu0 0.0
        %2513 = vmatprep.subr.mxu0 0.0
        %2514 = vmatpush1.msra.mxu0 0.0
        %2515 = vmatprep.subr.mxu0 0.0
        %2516 = vmatpush1.msra.mxu0 0.0
        %2517 = vmatprep.subr.mxu0 0.0
        %2518 = vmatpush1.msra.mxu0 0.0
        %2519 = vmatprep.subr.mxu0 0.0
        %2520 = vmatpush1.msra.mxu0 0.0
        %2521 = vmatprep.subr.mxu0 0.0
        %2522 = vmatpush1.msra.mxu0 0.0
        %2523 = vmatprep.subr.mxu0 0.0
        %2524 = vmatpush1.msra.mxu0 0.0
        %2525 = vmatprep.subr.mxu0 0.0
        %2526 = vmatpush1.msra.mxu0 0.0
        %2527 = vmatprep.subr.mxu0 0.0
        %2528 = vmatpush1.msra.mxu0 0.0
        %2529 = vmatprep.subr.mxu0 0.0
        %2530 = vmatpush1.msra.mxu0 0.0
        %2531 = vmatprep.subr.mxu0 0.0
        %2532 = vmatpush1.msra.mxu0 0.0
        %2533 = vmatprep.mubr.f32.mxu0 0.0
        %2534 = vmatmul.mubr.f32.gmra.mrb[0].mxu0 %v2467
        %v2535 = vpop.f32.mrb[0].mxu0
        %v2536 = vadd.f32 %v2465, %v2535
        %v2537 = vpop.f32.mrb[0].mxu0
        %2538 = vdwg.mxu0
        %v2539 = vmax.f32 %v2536, 0.0
        %v2540 = vld [vmem:[#allocation2 + $0x698] sm:$0xff]
        %v2541 = vld [vmem:[#allocation2 + $0x6a0] sm:$0xff]
        %v2542 = vld [vmem:[#allocation2 + $0x6a8] sm:$0xff]
        %v2543 = vld [vmem:[#allocation2 + $0x6b0] sm:$0xff]
        %v2544 = vld [vmem:[#allocation2 + $0x6b8] sm:$0xff]
        %v2545 = vld [vmem:[#allocation2 + $0x6c0] sm:$0xff]
        %v2546 = vld [vmem:[#allocation2 + $0x6c8] sm:$0xff]
        %v2547 = vld [vmem:[#allocation2 + $0x6d0] sm:$0xff]
        %v2548 = vld [vmem:[#allocation2 + $0x6d8] sm:$0xff]
        %v2549 = vld [vmem:[#allocation2 + $0x6e0] sm:$0xff]
        %v2550 = vld [vmem:[#allocation2 + $0x6e8] sm:$0xff]
        %v2551 = vld [vmem:[#allocation2 + $0x6f0] sm:$0xff]
        %v2552 = vld [vmem:[#allocation2 + $0x6f8] sm:$0x1]
        %v2553 = vrot.slane %v2539, 7
        %v2554 = vsel %vm1185, %v2553, 0.0
        %v2555 = vrot.slane %v2539, 1
        %v2556 = vsel %vm1189, %v2555, 0.0
        %2558 = vrot.lane.b32.xlu0 %v2539, 32
        %v2559 = vpop.permute.xlu0 %2558
        %2562 = vrot.lane.b32.xlu0 %v2556, 64
        %v2563 = vpop.permute.xlu0 %2562
        %v2565 = vsel %vm450, %v2554, %v2559
        %v2566 = vsel %vm455, %v2565, %v2563
        %v2567 = vlaneseq
        %v2568 = vshrl.u32 %v2567, 7
        %v2569 = vsub.s32 0, %v2568
        %v2570 = vrot.slane %v2552, %v2569
        %v2572 = vsel %vm464, %v2566, 0
        %2574 = vmatprep.subr.mxu0 0.0
        %2575 = vmatpush1.msra.mxu0 %v2540
        %2576 = vmatprep.subr.mxu0 0.0
        %2577 = vmatpush1.msra.mxu0 %v2541
        %2578 = vmatprep.subr.mxu0 0.0
        %2579 = vmatpush1.msra.mxu0 %v2542
        %2580 = vmatprep.subr.mxu0 0.0
        %2581 = vmatpush1.msra.mxu0 %v2543
        %2582 = vmatprep.subr.mxu0 0.0
        %2583 = vmatpush1.msra.mxu0 %v2544
        %2584 = vmatprep.subr.mxu0 0.0
        %2585 = vmatpush1.msra.mxu0 %v2545
        %2586 = vmatprep.subr.mxu0 0.0
        %2587 = vmatpush1.msra.mxu0 %v2546
        %2588 = vmatprep.subr.mxu0 0.0
        %2589 = vmatpush1.msra.mxu0 %v2547
        %2590 = vmatprep.subr.mxu0 0.0
        %2591 = vmatpush1.msra.mxu0 %v2548
        %2592 = vmatprep.subr.mxu0 0.0
        %2593 = vmatpush1.msra.mxu0 %v2549
        %2594 = vmatprep.subr.mxu0 0.0
        %2595 = vmatpush1.msra.mxu0 %v2550
        %2596 = vmatprep.subr.mxu0 0.0
        %2597 = vmatpush1.msra.mxu0 %v2551
        %2598 = vmatprep.subr.mxu0 0.0
        %2599 = vmatpush1.msra.mxu0 0.0
        %2600 = vmatprep.subr.mxu0 0.0
        %2601 = vmatpush1.msra.mxu0 0.0
        %2602 = vmatprep.subr.mxu0 0.0
        %2603 = vmatpush1.msra.mxu0 0.0
        %2604 = vmatprep.subr.mxu0 0.0
        %2605 = vmatpush1.msra.mxu0 0.0
        %2606 = vmatprep.subr.mxu0 0.0
        %2607 = vmatpush1.msra.mxu0 0.0
        %2608 = vmatprep.subr.mxu0 0.0
        %2609 = vmatpush1.msra.mxu0 0.0
        %2610 = vmatprep.subr.mxu0 0.0
        %2611 = vmatpush1.msra.mxu0 0.0
        %2612 = vmatprep.subr.mxu0 0.0
        %2613 = vmatpush1.msra.mxu0 0.0
        %2614 = vmatprep.subr.mxu0 0.0
        %2615 = vmatpush1.msra.mxu0 0.0
        %2616 = vmatprep.subr.mxu0 0.0
        %2617 = vmatpush1.msra.mxu0 0.0
        %2618 = vmatprep.subr.mxu0 0.0
        %2619 = vmatpush1.msra.mxu0 0.0
        %2620 = vmatprep.subr.mxu0 0.0
        %2621 = vmatpush1.msra.mxu0 0.0
        %2622 = vmatprep.subr.mxu0 0.0
        %2623 = vmatpush1.msra.mxu0 0.0
        %2624 = vmatprep.subr.mxu0 0.0
        %2625 = vmatpush1.msra.mxu0 0.0
        %2626 = vmatprep.subr.mxu0 0.0
        %2627 = vmatpush1.msra.mxu0 0.0
        %2628 = vmatprep.subr.mxu0 0.0
        %2629 = vmatpush1.msra.mxu0 0.0
        %2630 = vmatprep.subr.mxu0 0.0
        %2631 = vmatpush1.msra.mxu0 0.0
        %2632 = vmatprep.subr.mxu0 0.0
        %2633 = vmatpush1.msra.mxu0 0.0
        %2634 = vmatprep.subr.mxu0 0.0
        %2635 = vmatpush1.msra.mxu0 0.0
        %2636 = vmatprep.subr.mxu0 0.0
        %2637 = vmatpush1.msra.mxu0 0.0
        %2638 = vmatprep.mubr.f32.mxu0 0.0
        %2639 = vmatmul.mubr.f32.gmra.mrb[0].mxu0 %v2572
        %v2640 = vpop.f32.mrb[0].mxu0
        %v2641 = vadd.f32 %v2570, %v2640
        %v2642 = vpop.f32.mrb[0].mxu0
        %2643 = vdwg.mxu0
        %v2644 = vld [vmem:[#allocation2 + $0x700] sm:$0xff]
        %v2645 = vld [vmem:[#allocation2 + $0x708] sm:$0xff]
        %v2646 = vld [vmem:[#allocation2 + $0x710] sm:$0xff]
        %v2647 = vld [vmem:[#allocation2 + $0x718] sm:$0xff]
        %v2648 = vld [vmem:[#allocation2 + $0x720] sm:$0xff]
        %v2649 = vld [vmem:[#allocation2 + $0x728] sm:$0xff]
        %v2650 = vld [vmem:[#allocation2 + $0x730] sm:$0xff]
        %v2651 = vld [vmem:[#allocation2 + $0x738] sm:$0xff]
        %v2652 = vld [vmem:[#allocation2 + $0x740] sm:$0xff]
        %v2653 = vld [vmem:[#allocation2 + $0x748] sm:$0xff]
        %v2654 = vld [vmem:[#allocation2 + $0x750] sm:$0xff]
        %v2655 = vld [vmem:[#allocation2 + $0x758] sm:$0xff]
        %v2656 = vld [vmem:[#allocation2 + $0x760] sm:$0x1]
        %v2657 = vrot.slane %v2641, 7
        %v2658 = vsel %vm1185, %v2657, 0.0
        %v2659 = vrot.slane %v2641, 1
        %v2660 = vsel %vm1189, %v2659, 0.0
        %2662 = vrot.lane.b32.xlu0 %v2641, 32
        %v2663 = vpop.permute.xlu0 %2662
        %2666 = vrot.lane.b32.xlu0 %v2660, 64
        %v2667 = vpop.permute.xlu0 %2666
        %v2669 = vsel %vm450, %v2658, %v2663
        %v2670 = vsel %vm455, %v2669, %v2667
        %v2671 = vlaneseq
        %v2672 = vshrl.u32 %v2671, 7
        %v2673 = vsub.s32 0, %v2672
        %v2674 = vrot.slane %v2656, %v2673
        %v2676 = vsel %vm464, %v2670, 0
        %2678 = vmatprep.subr.mxu0 0.0
        %2679 = vmatpush1.msra.mxu0 %v2644
        %2680 = vmatprep.subr.mxu0 0.0
        %2681 = vmatpush1.msra.mxu0 %v2645
        %2682 = vmatprep.subr.mxu0 0.0
        %2683 = vmatpush1.msra.mxu0 %v2646
        %2684 = vmatprep.subr.mxu0 0.0
        %2685 = vmatpush1.msra.mxu0 %v2647
        %2686 = vmatprep.subr.mxu0 0.0
        %2687 = vmatpush1.msra.mxu0 %v2648
        %2688 = vmatprep.subr.mxu0 0.0
        %2689 = vmatpush1.msra.mxu0 %v2649
        %2690 = vmatprep.subr.mxu0 0.0
        %2691 = vmatpush1.msra.mxu0 %v2650
        %2692 = vmatprep.subr.mxu0 0.0
        %2693 = vmatpush1.msra.mxu0 %v2651
        %2694 = vmatprep.subr.mxu0 0.0
        %2695 = vmatpush1.msra.mxu0 %v2652
        %2696 = vmatprep.subr.mxu0 0.0
        %2697 = vmatpush1.msra.mxu0 %v2653
        %2698 = vmatprep.subr.mxu0 0.0
        %2699 = vmatpush1.msra.mxu0 %v2654
        %2700 = vmatprep.subr.mxu0 0.0
        %2701 = vmatpush1.msra.mxu0 %v2655
        %2702 = vmatprep.subr.mxu0 0.0
        %2703 = vmatpush1.msra.mxu0 0.0
        %2704 = vmatprep.subr.mxu0 0.0
        %2705 = vmatpush1.msra.mxu0 0.0
        %2706 = vmatprep.subr.mxu0 0.0
        %2707 = vmatpush1.msra.mxu0 0.0
        %2708 = vmatprep.subr.mxu0 0.0
        %2709 = vmatpush1.msra.mxu0 0.0
        %2710 = vmatprep.subr.mxu0 0.0
        %2711 = vmatpush1.msra.mxu0 0.0
        %2712 = vmatprep.subr.mxu0 0.0
        %2713 = vmatpush1.msra.mxu0 0.0
        %2714 = vmatprep.subr.mxu0 0.0
        %2715 = vmatpush1.msra.mxu0 0.0
        %2716 = vmatprep.subr.mxu0 0.0
        %2717 = vmatpush1.msra.mxu0 0.0
        %2718 = vmatprep.subr.mxu0 0.0
        %2719 = vmatpush1.msra.mxu0 0.0
        %2720 = vmatprep.subr.mxu0 0.0
        %2721 = vmatpush1.msra.mxu0 0.0
        %2722 = vmatprep.subr.mxu0 0.0
        %2723 = vmatpush1.msra.mxu0 0.0
        %2724 = vmatprep.subr.mxu0 0.0
        %2725 = vmatpush1.msra.mxu0 0.0
        %2726 = vmatprep.subr.mxu0 0.0
        %2727 = vmatpush1.msra.mxu0 0.0
        %2728 = vmatprep.subr.mxu0 0.0
        %2729 = vmatpush1.msra.mxu0 0.0
        %2730 = vmatprep.subr.mxu0 0.0
        %2731 = vmatpush1.msra.mxu0 0.0
        %2732 = vmatprep.subr.mxu0 0.0
        %2733 = vmatpush1.msra.mxu0 0.0
        %2734 = vmatprep.subr.mxu0 0.0
        %2735 = vmatpush1.msra.mxu0 0.0
        %2736 = vmatprep.subr.mxu0 0.0
        %2737 = vmatpush1.msra.mxu0 0.0
        %2738 = vmatprep.subr.mxu0 0.0
        %2739 = vmatpush1.msra.mxu0 0.0
        %2740 = vmatprep.subr.mxu0 0.0
        %2741 = vmatpush1.msra.mxu0 0.0
        %2742 = vmatprep.mubr.f32.mxu0 0.0
        %2743 = vmatmul.mubr.f32.gmra.mrb[0].mxu0 %v2676
        %v2744 = vpop.f32.mrb[0].mxu0
        %v2745 = vadd.f32 %v2674, %v2744
        %v2746 = vpop.f32.mrb[0].mxu0
        %2747 = vdwg.mxu0
        %v2748 = vmax.f32 %v2745, 0.0
        %v2749 = vld [vmem:[#allocation2 + $0x768] sm:$0xff]
        %v2750 = vld [vmem:[#allocation2 + $0x770] sm:$0xff]
        %v2751 = vld [vmem:[#allocation2 + $0x778] sm:$0xff]
        %v2752 = vld [vmem:[#allocation2 + $0x780] sm:$0xff]
        %v2753 = vld [vmem:[#allocation2 + $0x788] sm:$0xff]
        %v2754 = vld [vmem:[#allocation2 + $0x790] sm:$0xff]
        %v2755 = vld [vmem:[#allocation2 + $0x798] sm:$0xff]
        %v2756 = vld [vmem:[#allocation2 + $0x7a0] sm:$0xff]
        %v2757 = vld [vmem:[#allocation2 + $0x7a8] sm:$0xff]
        %v2758 = vld [vmem:[#allocation2 + $0x7b0] sm:$0xff]
        %v2759 = vld [vmem:[#allocation2 + $0x7b8] sm:$0xff]
        %v2760 = vld [vmem:[#allocation2 + $0x7c0] sm:$0xff]
        %v2761 = vld [vmem:[#allocation2 + $0x7c8] sm:$0x1]
        %v2762 = vrot.slane %v2748, 6
        %v2763 = vsel %vm1503, %v2762, 0.0
        %v2764 = vrot.slane %v2748, 2
        %v2765 = vsel %vm1507, %v2764, 0.0
        %2767 = vrot.lane.b32.xlu0 %v2748, 32
        %v2768 = vpop.permute.xlu0 %2767
        %2771 = vrot.lane.b32.xlu0 %v2765, 64
        %v2772 = vpop.permute.xlu0 %2771
        %v2774 = vsel %vm450, %v2763, %v2768
        %v2775 = vsel %vm455, %v2774, %v2772
        %v2776 = vlaneseq
        %v2777 = vshrl.u32 %v2776, 7
        %v2778 = vsub.s32 0, %v2777
        %v2779 = vrot.slane %v2761, %v2778
        %v2781 = vsel %vm464, %v2775, 0
        %2783 = vmatprep.subr.mxu0 0.0
        %2784 = vmatpush1.msra.mxu0 %v2749
        %2785 = vmatprep.subr.mxu0 0.0
        %2786 = vmatpush1.msra.mxu0 %v2750
        %2787 = vmatprep.subr.mxu0 0.0
        %2788 = vmatpush1.msra.mxu0 %v2751
        %2789 = vmatprep.subr.mxu0 0.0
        %2790 = vmatpush1.msra.mxu0 %v2752
        %2791 = vmatprep.subr.mxu0 0.0
        %2792 = vmatpush1.msra.mxu0 %v2753
        %2793 = vmatprep.subr.mxu0 0.0
        %2794 = vmatpush1.msra.mxu0 %v2754
        %2795 = vmatprep.subr.mxu0 0.0
        %2796 = vmatpush1.msra.mxu0 %v2755
        %2797 = vmatprep.subr.mxu0 0.0
        %2798 = vmatpush1.msra.mxu0 %v2756
        %2799 = vmatprep.subr.mxu0 0.0
        %2800 = vmatpush1.msra.mxu0 %v2757
        %2801 = vmatprep.subr.mxu0 0.0
        %2802 = vmatpush1.msra.mxu0 %v2758
        %2803 = vmatprep.subr.mxu0 0.0
        %2804 = vmatpush1.msra.mxu0 %v2759
        %2805 = vmatprep.subr.mxu0 0.0
        %2806 = vmatpush1.msra.mxu0 %v2760
        %2807 = vmatprep.subr.mxu0 0.0
        %2808 = vmatpush1.msra.mxu0 0.0
        %2809 = vmatprep.subr.mxu0 0.0
        %2810 = vmatpush1.msra.mxu0 0.0
        %2811 = vmatprep.subr.mxu0 0.0
        %2812 = vmatpush1.msra.mxu0 0.0
        %2813 = vmatprep.subr.mxu0 0.0
        %2814 = vmatpush1.msra.mxu0 0.0
        %2815 = vmatprep.subr.mxu0 0.0
        %2816 = vmatpush1.msra.mxu0 0.0
        %2817 = vmatprep.subr.mxu0 0.0
        %2818 = vmatpush1.msra.mxu0 0.0
        %2819 = vmatprep.subr.mxu0 0.0
        %2820 = vmatpush1.msra.mxu0 0.0
        %2821 = vmatprep.subr.mxu0 0.0
        %2822 = vmatpush1.msra.mxu0 0.0
        %2823 = vmatprep.subr.mxu0 0.0
        %2824 = vmatpush1.msra.mxu0 0.0
        %2825 = vmatprep.subr.mxu0 0.0
        %2826 = vmatpush1.msra.mxu0 0.0
        %2827 = vmatprep.subr.mxu0 0.0
        %2828 = vmatpush1.msra.mxu0 0.0
        %2829 = vmatprep.subr.mxu0 0.0
        %2830 = vmatpush1.msra.mxu0 0.0
        %2831 = vmatprep.subr.mxu0 0.0
        %2832 = vmatpush1.msra.mxu0 0.0
        %2833 = vmatprep.subr.mxu0 0.0
        %2834 = vmatpush1.msra.mxu0 0.0
        %2835 = vmatprep.subr.mxu0 0.0
        %2836 = vmatpush1.msra.mxu0 0.0
        %2837 = vmatprep.subr.mxu0 0.0
        %2838 = vmatpush1.msra.mxu0 0.0
        %2839 = vmatprep.subr.mxu0 0.0
        %2840 = vmatpush1.msra.mxu0 0.0
        %2841 = vmatprep.subr.mxu0 0.0
        %2842 = vmatpush1.msra.mxu0 0.0
        %2843 = vmatprep.subr.mxu0 0.0
        %2844 = vmatpush1.msra.mxu0 0.0
        %2845 = vmatprep.subr.mxu0 0.0
        %2846 = vmatpush1.msra.mxu0 0.0
        %2847 = vmatprep.mubr.f32.mxu0 0.0
        %2848 = vmatmul.mubr.f32.gmra.mrb[0].mxu0 %v2781
        %v2849 = vpop.f32.mrb[0].mxu0
        %v2850 = vadd.f32 %v2779, %v2849
        %v2851 = vpop.f32.mrb[0].mxu0
        %2852 = vdwg.mxu0
        %v2853 = vmax.f32 %v2850, 0.0
        %v2854 = vld [vmem:[#allocation2 + $0x7d0] sm:$0xff]
        %v2855 = vld [vmem:[#allocation2 + $0x7d8] sm:$0xff]
        %v2856 = vld [vmem:[#allocation2 + $0x7e0] sm:$0xff]
        %v2857 = vld [vmem:[#allocation2 + $0x7e8] sm:$0xff]
        %v2858 = vld [vmem:[#allocation2 + $0x7f0] sm:$0xff]
        %v2859 = vld [vmem:[#allocation2 + $0x7f8] sm:$0xff]
        %v2860 = vld [vmem:[#allocation2 + $0x800] sm:$0xff]
        %v2861 = vld [vmem:[#allocation2 + $0x808] sm:$0xff]
        %v2862 = vld [vmem:[#allocation2 + $0x810] sm:$0xff]
        %v2863 = vld [vmem:[#allocation2 + $0x818] sm:$0xff]
        %v2864 = vld [vmem:[#allocation2 + $0x820] sm:$0xff]
        %v2865 = vld [vmem:[#allocation2 + $0x828] sm:$0xff]
        %v2866 = vld [vmem:[#allocation2 + $0x830] sm:$0xff]
        %v2867 = vld [vmem:[#allocation2 + $0x838] sm:$0xff]
        %v2868 = vld [vmem:[#allocation2 + $0x840] sm:$0xff]
        %v2869 = vld [vmem:[#allocation2 + $0x848] sm:$0xff]
        %v2870 = vld [vmem:[#allocation2 + $0x850] sm:$0xff]
        %v2871 = vld [vmem:[#allocation2 + $0x858] sm:$0xff]
        %v2872 = vld [vmem:[#allocation2 + $0x860] sm:$0xff]
        %v2873 = vld [vmem:[#allocation2 + $0x868] sm:$0xff]
        %v2874 = vld [vmem:[#allocation2 + $0x870] sm:$0xff]
        %v2875 = vld [vmem:[#allocation2 + $0x878] sm:$0xff]
        %v2876 = vld [vmem:[#allocation2 + $0x880] sm:$0xff]
        %v2877 = vld [vmem:[#allocation2 + $0x888] sm:$0xff]
        %v2878 = vld [vmem:[#allocation2 + $0x890] sm:$0x1]
        %v2879 = vsel %vm450, %v2853, %v2454
        %v2880 = vrot.slane %v2879, 7
        %v2881 = vsel %vm1185, %v2880, 0.0
        %v2882 = vrot.slane %v2879, 1
        %v2883 = vsel %vm1189, %v2882, 0.0
        %2885 = vrot.lane.b32.xlu0 %v2879, 64
        %v2886 = vpop.permute.xlu0 %2885
        %v2888 = vsel %vm455, %v2881, %v2886
        %v2889 = vlaneseq
        %v2890 = vshrl.u32 %v2889, 7
        %v2891 = vsub.s32 0, %v2890
        %v2892 = vrot.slane %v2878, %v2891
        %v2894 = vsel %vm455, %v2883, 0
        %2896 = vmatprep.subr.mxu0 0.0
        %2897 = vmatpush1.msra.mxu0 %v2854
        %2898 = vmatprep.subr.mxu0 0.0
        %2899 = vmatpush1.msra.mxu0 %v2855
        %2900 = vmatprep.subr.mxu0 0.0
        %2901 = vmatpush1.msra.mxu0 %v2856
        %2902 = vmatprep.subr.mxu0 0.0
        %2903 = vmatpush1.msra.mxu0 %v2857
        %2904 = vmatprep.subr.mxu0 0.0
        %2905 = vmatpush1.msra.mxu0 %v2858
        %2906 = vmatprep.subr.mxu0 0.0
        %2907 = vmatpush1.msra.mxu0 %v2859
        %2908 = vmatprep.subr.mxu0 0.0
        %2909 = vmatpush1.msra.mxu0 %v2860
        %2910 = vmatprep.subr.mxu0 0.0
        %2911 = vmatpush1.msra.mxu0 %v2861
        %2912 = vmatprep.subr.mxu0 0.0
        %2913 = vmatpush1.msra.mxu0 %v2862
        %2914 = vmatprep.subr.mxu0 0.0
        %2915 = vmatpush1.msra.mxu0 %v2863
        %2916 = vmatprep.subr.mxu0 0.0
        %2917 = vmatpush1.msra.mxu0 %v2864
        %2918 = vmatprep.subr.mxu0 0.0
        %2919 = vmatpush1.msra.mxu0 %v2865
        %2920 = vmatprep.subr.mxu0 0.0
        %2921 = vmatpush1.msra.mxu0 %v2866
        %2922 = vmatprep.subr.mxu0 0.0
        %2923 = vmatpush1.msra.mxu0 %v2867
        %2924 = vmatprep.subr.mxu0 0.0
        %2925 = vmatpush1.msra.mxu0 %v2868
        %2926 = vmatprep.subr.mxu0 0.0
        %2927 = vmatpush1.msra.mxu0 %v2869
        %2928 = vmatprep.subr.mxu0 0.0
        %2929 = vmatpush1.msra.mxu0 %v2870
        %2930 = vmatprep.subr.mxu0 0.0
        %2931 = vmatpush1.msra.mxu0 %v2871
        %2932 = vmatprep.subr.mxu0 0.0
        %2933 = vmatpush1.msra.mxu0 %v2872
        %2934 = vmatprep.subr.mxu0 0.0
        %2935 = vmatpush1.msra.mxu0 %v2873
        %2936 = vmatprep.subr.mxu0 0.0
        %2937 = vmatpush1.msra.mxu0 %v2874
        %2938 = vmatprep.subr.mxu0 0.0
        %2939 = vmatpush1.msra.mxu0 %v2875
        %2940 = vmatprep.subr.mxu0 0.0
        %2941 = vmatpush1.msra.mxu0 %v2876
        %2942 = vmatprep.subr.mxu0 0.0
        %2943 = vmatpush1.msra.mxu0 %v2877
        %2944 = vmatprep.subr.mxu0 0.0
        %2945 = vmatpush1.msra.mxu0 0.0
        %2946 = vmatprep.subr.mxu0 0.0
        %2947 = vmatpush1.msra.mxu0 0.0
        %2948 = vmatprep.subr.mxu0 0.0
        %2949 = vmatpush1.msra.mxu0 0.0
        %2950 = vmatprep.subr.mxu0 0.0
        %2951 = vmatpush1.msra.mxu0 0.0
        %2952 = vmatprep.subr.mxu0 0.0
        %2953 = vmatpush1.msra.mxu0 0.0
        %2954 = vmatprep.subr.mxu0 0.0
        %2955 = vmatpush1.msra.mxu0 0.0
        %2956 = vmatprep.subr.mxu0 0.0
        %2957 = vmatpush1.msra.mxu0 0.0
        %2958 = vmatprep.subr.mxu0 0.0
        %2959 = vmatpush1.msra.mxu0 0.0
        %2960 = vmatprep.mubr.f32.mxu0 %v2894
        %2961 = vmatmul.mubr.f32.gmra.mrb[0].mxu0 %v2888
        %v2962 = vpop.f32.mrb[0].mxu0
        %v2963 = vadd.f32 %v2892, %v2962
        %v2964 = vpop.f32.mrb[0].mxu0
        %2965 = vdwg.mxu0
        %v2966 = vmax.f32 %v2963, 0.0
        %v2967 = vld [vmem:[#allocation2 + $0x898] sm:$0xff]
        %v2968 = vld [vmem:[#allocation2 + $0x8a0] sm:$0xff]
        %v2969 = vld [vmem:[#allocation2 + $0x8a8] sm:$0xff]
        %v2970 = vld [vmem:[#allocation2 + $0x8b0] sm:$0xff]
        %v2971 = vld [vmem:[#allocation2 + $0x8b8] sm:$0xff]
        %v2972 = vld [vmem:[#allocation2 + $0x8c0] sm:$0xff]
        %v2973 = vld [vmem:[#allocation2 + $0x8c8] sm:$0xff]
        %v2974 = vld [vmem:[#allocation2 + $0x8d0] sm:$0xff]
        %v2975 = vld [vmem:[#allocation2 + $0x8d8] sm:$0xff]
        %v2976 = vld [vmem:[#allocation2 + $0x8e0] sm:$0xff]
        %v2977 = vld [vmem:[#allocation2 + $0x8e8] sm:$0xff]
        %v2978 = vld [vmem:[#allocation2 + $0x8f0] sm:$0xff]
        %v2979 = vld [vmem:[#allocation2 + $0x8f8] sm:$0x1]
        %v2980 = vrot.slane %v2966, 7
        %v2981 = vsel %vm1185, %v2980, 0.0
        %v2982 = vrot.slane %v2966, 1
        %v2983 = vsel %vm1189, %v2982, 0.0
        %2985 = vrot.lane.b32.xlu0 %v2966, 32
        %v2986 = vpop.permute.xlu0 %2985
        %2989 = vrot.lane.b32.xlu0 %v2983, 64
        %v2990 = vpop.permute.xlu0 %2989
        %v2992 = vsel %vm450, %v2981, %v2986
        %v2993 = vsel %vm455, %v2992, %v2990
        %v2994 = vlaneseq
        %v2995 = vshrl.u32 %v2994, 7
        %v2996 = vsub.s32 0, %v2995
        %v2997 = vrot.slane %v2979, %v2996
        %v2999 = vsel %vm464, %v2993, 0
        %3001 = vmatprep.subr.mxu0 0.0
        %3002 = vmatpush1.msra.mxu0 %v2967
        %3003 = vmatprep.subr.mxu0 0.0
        %3004 = vmatpush1.msra.mxu0 %v2968
        %3005 = vmatprep.subr.mxu0 0.0
        %3006 = vmatpush1.msra.mxu0 %v2969
        %3007 = vmatprep.subr.mxu0 0.0
        %3008 = vmatpush1.msra.mxu0 %v2970
        %3009 = vmatprep.subr.mxu0 0.0
        %3010 = vmatpush1.msra.mxu0 %v2971
        %3011 = vmatprep.subr.mxu0 0.0
        %3012 = vmatpush1.msra.mxu0 %v2972
        %3013 = vmatprep.subr.mxu0 0.0
        %3014 = vmatpush1.msra.mxu0 %v2973
        %3015 = vmatprep.subr.mxu0 0.0
        %3016 = vmatpush1.msra.mxu0 %v2974
        %3017 = vmatprep.subr.mxu0 0.0
        %3018 = vmatpush1.msra.mxu0 %v2975
        %3019 = vmatprep.subr.mxu0 0.0
        %3020 = vmatpush1.msra.mxu0 %v2976
        %3021 = vmatprep.subr.mxu0 0.0
        %3022 = vmatpush1.msra.mxu0 %v2977
        %3023 = vmatprep.subr.mxu0 0.0
        %3024 = vmatpush1.msra.mxu0 %v2978
        %3025 = vmatprep.subr.mxu0 0.0
        %3026 = vmatpush1.msra.mxu0 0.0
        %3027 = vmatprep.subr.mxu0 0.0
        %3028 = vmatpush1.msra.mxu0 0.0
        %3029 = vmatprep.subr.mxu0 0.0
        %3030 = vmatpush1.msra.mxu0 0.0
        %3031 = vmatprep.subr.mxu0 0.0
        %3032 = vmatpush1.msra.mxu0 0.0
        %3033 = vmatprep.subr.mxu0 0.0
        %3034 = vmatpush1.msra.mxu0 0.0
        %3035 = vmatprep.subr.mxu0 0.0
        %3036 = vmatpush1.msra.mxu0 0.0
        %3037 = vmatprep.subr.mxu0 0.0
        %3038 = vmatpush1.msra.mxu0 0.0
        %3039 = vmatprep.subr.mxu0 0.0
        %3040 = vmatpush1.msra.mxu0 0.0
        %3041 = vmatprep.subr.mxu0 0.0
        %3042 = vmatpush1.msra.mxu0 0.0
        %3043 = vmatprep.subr.mxu0 0.0
        %3044 = vmatpush1.msra.mxu0 0.0
        %3045 = vmatprep.subr.mxu0 0.0
        %3046 = vmatpush1.msra.mxu0 0.0
        %3047 = vmatprep.subr.mxu0 0.0
        %3048 = vmatpush1.msra.mxu0 0.0
        %3049 = vmatprep.subr.mxu0 0.0
        %3050 = vmatpush1.msra.mxu0 0.0
        %3051 = vmatprep.subr.mxu0 0.0
        %3052 = vmatpush1.msra.mxu0 0.0
        %3053 = vmatprep.subr.mxu0 0.0
        %3054 = vmatpush1.msra.mxu0 0.0
        %3055 = vmatprep.subr.mxu0 0.0
        %3056 = vmatpush1.msra.mxu0 0.0
        %3057 = vmatprep.subr.mxu0 0.0
        %3058 = vmatpush1.msra.mxu0 0.0
        %3059 = vmatprep.subr.mxu0 0.0
        %3060 = vmatpush1.msra.mxu0 0.0
        %3061 = vmatprep.subr.mxu0 0.0
        %3062 = vmatpush1.msra.mxu0 0.0
        %3063 = vmatprep.subr.mxu0 0.0
        %3064 = vmatpush1.msra.mxu0 0.0
        %3065 = vmatprep.mubr.f32.mxu0 0.0
        %3066 = vmatmul.mubr.f32.gmra.mrb[0].mxu0 %v2999
        %v3067 = vpop.f32.mrb[0].mxu0
        %v3068 = vadd.f32 %v2997, %v3067
        %v3069 = vpop.f32.mrb[0].mxu0
        %3070 = vdwg.mxu0
        %v3071 = vld [vmem:[#allocation2 + $0x900] sm:$0xff]
        %v3072 = vld [vmem:[#allocation2 + $0x908] sm:$0xff]
        %v3073 = vld [vmem:[#allocation2 + $0x910] sm:$0xff]
        %v3074 = vld [vmem:[#allocation2 + $0x918] sm:$0xff]
        %v3075 = vld [vmem:[#allocation2 + $0x920] sm:$0xff]
        %v3076 = vld [vmem:[#allocation2 + $0x928] sm:$0xff]
        %v3077 = vld [vmem:[#allocation2 + $0x930] sm:$0xff]
        %v3078 = vld [vmem:[#allocation2 + $0x938] sm:$0xff]
        %v3079 = vld [vmem:[#allocation2 + $0x940] sm:$0xff]
        %v3080 = vld [vmem:[#allocation2 + $0x948] sm:$0xff]
        %v3081 = vld [vmem:[#allocation2 + $0x950] sm:$0xff]
        %v3082 = vld [vmem:[#allocation2 + $0x958] sm:$0xff]
        %v3083 = vld [vmem:[#allocation2 + $0x960] sm:$0xff]
        %v3084 = vld [vmem:[#allocation2 + $0x968] sm:$0xff]
        %v3085 = vld [vmem:[#allocation2 + $0x970] sm:$0xff]
        %v3086 = vld [vmem:[#allocation2 + $0x978] sm:$0xff]
        %v3087 = vld [vmem:[#allocation2 + $0x980] sm:$0xff]
        %v3088 = vld [vmem:[#allocation2 + $0x988] sm:$0xff]
        %v3089 = vld [vmem:[#allocation2 + $0x990] sm:$0xff]
        %v3090 = vld [vmem:[#allocation2 + $0x998] sm:$0xff]
        %v3091 = vld [vmem:[#allocation2 + $0x9a0] sm:$0xff]
        %v3092 = vld [vmem:[#allocation2 + $0x9a8] sm:$0xff]
        %v3093 = vld [vmem:[#allocation2 + $0x9b0] sm:$0xff]
        %v3094 = vld [vmem:[#allocation2 + $0x9b8] sm:$0xff]
        %v3095 = vld [vmem:[#allocation2 + $0x9c0] sm:$0x1]
        %v3096 = vsel %vm450, %v3068, %v2035
        %v3097 = vrot.slane %v3096, 7
        %v3098 = vsel %vm1185, %v3097, 0.0
        %v3099 = vrot.slane %v3096, 1
        %v3100 = vsel %vm1189, %v3099, 0.0
        %3102 = vrot.lane.b32.xlu0 %v3096, 64
        %v3103 = vpop.permute.xlu0 %3102
        %v3105 = vsel %vm455, %v3098, %v3103
        %v3106 = vlaneseq
        %v3107 = vshrl.u32 %v3106, 7
        %v3108 = vsub.s32 0, %v3107
        %v3109 = vrot.slane %v3095, %v3108
        %v3111 = vsel %vm455, %v3100, 0
        %3113 = vmatprep.subr.mxu0 0.0
        %3114 = vmatpush1.msra.mxu0 %v3071
        %3115 = vmatprep.subr.mxu0 0.0
        %3116 = vmatpush1.msra.mxu0 %v3072
        %3117 = vmatprep.subr.mxu0 0.0
        %3118 = vmatpush1.msra.mxu0 %v3073
        %3119 = vmatprep.subr.mxu0 0.0
        %3120 = vmatpush1.msra.mxu0 %v3074
        %3121 = vmatprep.subr.mxu0 0.0
        %3122 = vmatpush1.msra.mxu0 %v3075
        %3123 = vmatprep.subr.mxu0 0.0
        %3124 = vmatpush1.msra.mxu0 %v3076
        %3125 = vmatprep.subr.mxu0 0.0
        %3126 = vmatpush1.msra.mxu0 %v3077
        %3127 = vmatprep.subr.mxu0 0.0
        %3128 = vmatpush1.msra.mxu0 %v3078
        %3129 = vmatprep.subr.mxu0 0.0
        %3130 = vmatpush1.msra.mxu0 %v3079
        %3131 = vmatprep.subr.mxu0 0.0
        %3132 = vmatpush1.msra.mxu0 %v3080
        %3133 = vmatprep.subr.mxu0 0.0
        %3134 = vmatpush1.msra.mxu0 %v3081
        %3135 = vmatprep.subr.mxu0 0.0
        %3136 = vmatpush1.msra.mxu0 %v3082
        %3137 = vmatprep.subr.mxu0 0.0
        %3138 = vmatpush1.msra.mxu0 %v3083
        %3139 = vmatprep.subr.mxu0 0.0
        %3140 = vmatpush1.msra.mxu0 %v3084
        %3141 = vmatprep.subr.mxu0 0.0
        %3142 = vmatpush1.msra.mxu0 %v3085
        %3143 = vmatprep.subr.mxu0 0.0
        %3144 = vmatpush1.msra.mxu0 %v3086
        %3145 = vmatprep.subr.mxu0 0.0
        %3146 = vmatpush1.msra.mxu0 %v3087
        %3147 = vmatprep.subr.mxu0 0.0
        %3148 = vmatpush1.msra.mxu0 %v3088
        %3149 = vmatprep.subr.mxu0 0.0
        %3150 = vmatpush1.msra.mxu0 %v3089
        %3151 = vmatprep.subr.mxu0 0.0
        %3152 = vmatpush1.msra.mxu0 %v3090
        %3153 = vmatprep.subr.mxu0 0.0
        %3154 = vmatpush1.msra.mxu0 %v3091
        %3155 = vmatprep.subr.mxu0 0.0
        %3156 = vmatpush1.msra.mxu0 %v3092
        %3157 = vmatprep.subr.mxu0 0.0
        %3158 = vmatpush1.msra.mxu0 %v3093
        %3159 = vmatprep.subr.mxu0 0.0
        %3160 = vmatpush1.msra.mxu0 %v3094
        %3161 = vmatprep.subr.mxu0 0.0
        %3162 = vmatpush1.msra.mxu0 0.0
        %3163 = vmatprep.subr.mxu0 0.0
        %3164 = vmatpush1.msra.mxu0 0.0
        %3165 = vmatprep.subr.mxu0 0.0
        %3166 = vmatpush1.msra.mxu0 0.0
        %3167 = vmatprep.subr.mxu0 0.0
        %3168 = vmatpush1.msra.mxu0 0.0
        %3169 = vmatprep.subr.mxu0 0.0
        %3170 = vmatpush1.msra.mxu0 0.0
        %3171 = vmatprep.subr.mxu0 0.0
        %3172 = vmatpush1.msra.mxu0 0.0
        %3173 = vmatprep.subr.mxu0 0.0
        %3174 = vmatpush1.msra.mxu0 0.0
        %3175 = vmatprep.subr.mxu0 0.0
        %3176 = vmatpush1.msra.mxu0 0.0
        %3177 = vmatprep.mubr.f32.mxu0 %v3111
        %3178 = vmatmul.mubr.f32.gmra.mrb[0].mxu0 %v3105
        %v3179 = vpop.f32.mrb[0].mxu0
        %v3180 = vadd.f32 %v3109, %v3179
        %v3181 = vpop.f32.mrb[0].mxu0
        %3182 = vdwg.mxu0
        %v3183 = vmax.f32 %v3180, 0.0
        %v3184 = vld [vmem:[#allocation2 + $0x9c8] sm:$0xff]
        %v3185 = vld [vmem:[#allocation2 + $0x9d0] sm:$0xff]
        %v3186 = vld [vmem:[#allocation2 + $0x9d8] sm:$0xff]
        %v3187 = vld [vmem:[#allocation2 + $0x9e0] sm:$0xff]
        %v3188 = vld [vmem:[#allocation2 + $0x9e8] sm:$0xff]
        %v3189 = vld [vmem:[#allocation2 + $0x9f0] sm:$0xff]
        %v3190 = vld [vmem:[#allocation2 + $0x9f8] sm:$0xff]
        %v3191 = vld [vmem:[#allocation2 + $0xa00] sm:$0xff]
        %v3192 = vld [vmem:[#allocation2 + $0xa08] sm:$0xff]
        %v3193 = vld [vmem:[#allocation2 + $0xa10] sm:$0xff]
        %v3194 = vld [vmem:[#allocation2 + $0xa18] sm:$0xff]
        %v3195 = vld [vmem:[#allocation2 + $0xa20] sm:$0xff]
        %v3196 = vld [vmem:[#allocation2 + $0xa28] sm:$0x1]
        %v3197 = vrot.slane %v3183, 7
        %v3198 = vsel %vm1185, %v3197, 0.0
        %v3199 = vrot.slane %v3183, 1
        %v3200 = vsel %vm1189, %v3199, 0.0
        %3202 = vrot.lane.b32.xlu0 %v3183, 32
        %v3203 = vpop.permute.xlu0 %3202
        %3206 = vrot.lane.b32.xlu0 %v3200, 64
        %v3207 = vpop.permute.xlu0 %3206
        %v3209 = vsel %vm450, %v3198, %v3203
        %v3210 = vsel %vm455, %v3209, %v3207
        %v3211 = vlaneseq
        %v3212 = vshrl.u32 %v3211, 7
        %v3213 = vsub.s32 0, %v3212
        %v3214 = vrot.slane %v3196, %v3213
        %v3216 = vsel %vm464, %v3210, 0
        %3218 = vmatprep.subr.mxu0 0.0
        %3219 = vmatpush1.msra.mxu0 %v3184
        %3220 = vmatprep.subr.mxu0 0.0
        %3221 = vmatpush1.msra.mxu0 %v3185
        %3222 = vmatprep.subr.mxu0 0.0
        %3223 = vmatpush1.msra.mxu0 %v3186
        %3224 = vmatprep.subr.mxu0 0.0
        %3225 = vmatpush1.msra.mxu0 %v3187
        %3226 = vmatprep.subr.mxu0 0.0
        %3227 = vmatpush1.msra.mxu0 %v3188
        %3228 = vmatprep.subr.mxu0 0.0
        %3229 = vmatpush1.msra.mxu0 %v3189
        %3230 = vmatprep.subr.mxu0 0.0
        %3231 = vmatpush1.msra.mxu0 %v3190
        %3232 = vmatprep.subr.mxu0 0.0
        %3233 = vmatpush1.msra.mxu0 %v3191
        %3234 = vmatprep.subr.mxu0 0.0
        %3235 = vmatpush1.msra.mxu0 %v3192
        %3236 = vmatprep.subr.mxu0 0.0
        %3237 = vmatpush1.msra.mxu0 %v3193
        %3238 = vmatprep.subr.mxu0 0.0
        %3239 = vmatpush1.msra.mxu0 %v3194
        %3240 = vmatprep.subr.mxu0 0.0
        %3241 = vmatpush1.msra.mxu0 %v3195
        %3242 = vmatprep.subr.mxu0 0.0
        %3243 = vmatpush1.msra.mxu0 0.0
        %3244 = vmatprep.subr.mxu0 0.0
        %3245 = vmatpush1.msra.mxu0 0.0
        %3246 = vmatprep.subr.mxu0 0.0
        %3247 = vmatpush1.msra.mxu0 0.0
        %3248 = vmatprep.subr.mxu0 0.0
        %3249 = vmatpush1.msra.mxu0 0.0
        %3250 = vmatprep.subr.mxu0 0.0
        %3251 = vmatpush1.msra.mxu0 0.0
        %3252 = vmatprep.subr.mxu0 0.0
        %3253 = vmatpush1.msra.mxu0 0.0
        %3254 = vmatprep.subr.mxu0 0.0
        %3255 = vmatpush1.msra.mxu0 0.0
        %3256 = vmatprep.subr.mxu0 0.0
        %3257 = vmatpush1.msra.mxu0 0.0
        %3258 = vmatprep.subr.mxu0 0.0
        %3259 = vmatpush1.msra.mxu0 0.0
        %3260 = vmatprep.subr.mxu0 0.0
        %3261 = vmatpush1.msra.mxu0 0.0
        %3262 = vmatprep.subr.mxu0 0.0
        %3263 = vmatpush1.msra.mxu0 0.0
        %3264 = vmatprep.subr.mxu0 0.0
        %3265 = vmatpush1.msra.mxu0 0.0
        %3266 = vmatprep.subr.mxu0 0.0
        %3267 = vmatpush1.msra.mxu0 0.0
        %3268 = vmatprep.subr.mxu0 0.0
        %3269 = vmatpush1.msra.mxu0 0.0
        %3270 = vmatprep.subr.mxu0 0.0
        %3271 = vmatpush1.msra.mxu0 0.0
        %3272 = vmatprep.subr.mxu0 0.0
        %3273 = vmatpush1.msra.mxu0 0.0
        %3274 = vmatprep.subr.mxu0 0.0
        %3275 = vmatpush1.msra.mxu0 0.0
        %3276 = vmatprep.subr.mxu0 0.0
        %3277 = vmatpush1.msra.mxu0 0.0
        %3278 = vmatprep.subr.mxu0 0.0
        %3279 = vmatpush1.msra.mxu0 0.0
        %3280 = vmatprep.subr.mxu0 0.0
        %3281 = vmatpush1.msra.mxu0 0.0
        %3282 = vmatprep.mubr.f32.mxu0 0.0
        %3283 = vmatmul.mubr.f32.gmra.mrb[0].mxu0 %v3216
        %v3284 = vpop.f32.mrb[0].mxu0
        %v3285 = vadd.f32 %v3214, %v3284
        %v3286 = vpop.f32.mrb[0].mxu0
        %3287 = vdwg.mxu0
        %v3288 = vld [vmem:[#allocation2 + $0xa30] sm:$0xff]
        %v3289 = vld [vmem:[#allocation2 + $0xa38] sm:$0xff]
        %v3290 = vld [vmem:[#allocation2 + $0xa40] sm:$0xff]
        %v3291 = vld [vmem:[#allocation2 + $0xa48] sm:$0xff]
        %v3292 = vld [vmem:[#allocation2 + $0xa50] sm:$0xff]
        %v3293 = vld [vmem:[#allocation2 + $0xa58] sm:$0xff]
        %v3294 = vld [vmem:[#allocation2 + $0xa60] sm:$0xff]
        %v3295 = vld [vmem:[#allocation2 + $0xa68] sm:$0xff]
        %v3296 = vld [vmem:[#allocation2 + $0xa70] sm:$0xff]
        %v3297 = vld [vmem:[#allocation2 + $0xa78] sm:$0xff]
        %v3298 = vld [vmem:[#allocation2 + $0xa80] sm:$0xff]
        %v3299 = vld [vmem:[#allocation2 + $0xa88] sm:$0xff]
        %v3300 = vld [vmem:[#allocation2 + $0xa90] sm:$0xff]
        %v3301 = vld [vmem:[#allocation2 + $0xa98] sm:$0xff]
        %v3302 = vld [vmem:[#allocation2 + $0xaa0] sm:$0xff]
        %v3303 = vld [vmem:[#allocation2 + $0xaa8] sm:$0xff]
        %v3304 = vld [vmem:[#allocation2 + $0xab0] sm:$0xff]
        %v3305 = vld [vmem:[#allocation2 + $0xab8] sm:$0xff]
        %v3306 = vld [vmem:[#allocation2 + $0xac0] sm:$0xff]
        %v3307 = vld [vmem:[#allocation2 + $0xac8] sm:$0xff]
        %v3308 = vld [vmem:[#allocation2 + $0xad0] sm:$0xff]
        %v3309 = vld [vmem:[#allocation2 + $0xad8] sm:$0xff]
        %v3310 = vld [vmem:[#allocation2 + $0xae0] sm:$0xff]
        %v3311 = vld [vmem:[#allocation2 + $0xae8] sm:$0xff]
        %v3312 = vld [vmem:[#allocation2 + $0xaf0] sm:$0x1]
        %v3313 = vsel %vm450, %v3285, %v1616
        %v3314 = vrot.slane %v3313, 7
        %v3315 = vsel %vm1185, %v3314, 0.0
        %v3316 = vrot.slane %v3313, 1
        %v3317 = vsel %vm1189, %v3316, 0.0
        %3319 = vrot.lane.b32.xlu0 %v3313, 64
        %v3320 = vpop.permute.xlu0 %3319
        %v3322 = vsel %vm455, %v3315, %v3320
        %v3323 = vlaneseq
        %v3324 = vshrl.u32 %v3323, 7
        %v3325 = vsub.s32 0, %v3324
        %v3326 = vrot.slane %v3312, %v3325
        %v3328 = vsel %vm455, %v3317, 0
        %3330 = vmatprep.subr.mxu0 0.0
        %3331 = vmatpush1.msra.mxu0 %v3288
        %3332 = vmatprep.subr.mxu0 0.0
        %3333 = vmatpush1.msra.mxu0 %v3289
        %3334 = vmatprep.subr.mxu0 0.0
        %3335 = vmatpush1.msra.mxu0 %v3290
        %3336 = vmatprep.subr.mxu0 0.0
        %3337 = vmatpush1.msra.mxu0 %v3291
        %3338 = vmatprep.subr.mxu0 0.0
        %3339 = vmatpush1.msra.mxu0 %v3292
        %3340 = vmatprep.subr.mxu0 0.0
        %3341 = vmatpush1.msra.mxu0 %v3293
        %3342 = vmatprep.subr.mxu0 0.0
        %3343 = vmatpush1.msra.mxu0 %v3294
        %3344 = vmatprep.subr.mxu0 0.0
        %3345 = vmatpush1.msra.mxu0 %v3295
        %3346 = vmatprep.subr.mxu0 0.0
        %3347 = vmatpush1.msra.mxu0 %v3296
        %3348 = vmatprep.subr.mxu0 0.0
        %3349 = vmatpush1.msra.mxu0 %v3297
        %3350 = vmatprep.subr.mxu0 0.0
        %3351 = vmatpush1.msra.mxu0 %v3298
        %3352 = vmatprep.subr.mxu0 0.0
        %3353 = vmatpush1.msra.mxu0 %v3299
        %3354 = vmatprep.subr.mxu0 0.0
        %3355 = vmatpush1.msra.mxu0 %v3300
        %3356 = vmatprep.subr.mxu0 0.0
        %3357 = vmatpush1.msra.mxu0 %v3301
        %3358 = vmatprep.subr.mxu0 0.0
        %3359 = vmatpush1.msra.mxu0 %v3302
        %3360 = vmatprep.subr.mxu0 0.0
        %3361 = vmatpush1.msra.mxu0 %v3303
        %3362 = vmatprep.subr.mxu0 0.0
        %3363 = vmatpush1.msra.mxu0 %v3304
        %3364 = vmatprep.subr.mxu0 0.0
        %3365 = vmatpush1.msra.mxu0 %v3305
        %3366 = vmatprep.subr.mxu0 0.0
        %3367 = vmatpush1.msra.mxu0 %v3306
        %3368 = vmatprep.subr.mxu0 0.0
        %3369 = vmatpush1.msra.mxu0 %v3307
        %3370 = vmatprep.subr.mxu0 0.0
        %3371 = vmatpush1.msra.mxu0 %v3308
        %3372 = vmatprep.subr.mxu0 0.0
        %3373 = vmatpush1.msra.mxu0 %v3309
        %3374 = vmatprep.subr.mxu0 0.0
        %3375 = vmatpush1.msra.mxu0 %v3310
        %3376 = vmatprep.subr.mxu0 0.0
        %3377 = vmatpush1.msra.mxu0 %v3311
        %3378 = vmatprep.subr.mxu0 0.0
        %3379 = vmatpush1.msra.mxu0 0.0
        %3380 = vmatprep.subr.mxu0 0.0
        %3381 = vmatpush1.msra.mxu0 0.0
        %3382 = vmatprep.subr.mxu0 0.0
        %3383 = vmatpush1.msra.mxu0 0.0
        %3384 = vmatprep.subr.mxu0 0.0
        %3385 = vmatpush1.msra.mxu0 0.0
        %3386 = vmatprep.subr.mxu0 0.0
        %3387 = vmatpush1.msra.mxu0 0.0
        %3388 = vmatprep.subr.mxu0 0.0
        %3389 = vmatpush1.msra.mxu0 0.0
        %3390 = vmatprep.subr.mxu0 0.0
        %3391 = vmatpush1.msra.mxu0 0.0
        %3392 = vmatprep.subr.mxu0 0.0
        %3393 = vmatpush1.msra.mxu0 0.0
        %3394 = vmatprep.mubr.f32.mxu0 %v3328
        %3395 = vmatmul.mubr.f32.gmra.mrb[0].mxu0 %v3322
        %v3396 = vpop.f32.mrb[0].mxu0
        %v3397 = vadd.f32 %v3326, %v3396
        %v3398 = vpop.f32.mrb[0].mxu0
        %3399 = vdwg.mxu0
        %v3400 = vmax.f32 %v3397, 0.0
        %v3401 = vld [vmem:[#allocation2 + $0xaf8] sm:$0xff]
        %v3402 = vld [vmem:[#allocation2 + $0xb00] sm:$0xff]
        %v3403 = vld [vmem:[#allocation2 + $0xb08] sm:$0xff]
        %v3404 = vld [vmem:[#allocation2 + $0xb10] sm:$0xff]
        %v3405 = vld [vmem:[#allocation2 + $0xb18] sm:$0xff]
        %v3406 = vld [vmem:[#allocation2 + $0xb20] sm:$0xff]
        %v3407 = vld [vmem:[#allocation2 + $0xb28] sm:$0xff]
        %v3408 = vld [vmem:[#allocation2 + $0xb30] sm:$0xff]
        %v3409 = vld [vmem:[#allocation2 + $0xb38] sm:$0xff]
        %v3410 = vld [vmem:[#allocation2 + $0xb40] sm:$0xff]
        %v3411 = vld [vmem:[#allocation2 + $0xb48] sm:$0xff]
        %v3412 = vld [vmem:[#allocation2 + $0xb50] sm:$0xff]
        %v3413 = vld [vmem:[#allocation2 + $0xb58] sm:$0x1]
        %v3414 = vrot.slane %v3400, 7
        %v3415 = vsel %vm1185, %v3414, 0.0
        %v3416 = vrot.slane %v3400, 1
        %v3417 = vsel %vm1189, %v3416, 0.0
        %3419 = vrot.lane.b32.xlu0 %v3400, 32
        %v3420 = vpop.permute.xlu0 %3419
        %3423 = vrot.lane.b32.xlu0 %v3417, 64
        %v3424 = vpop.permute.xlu0 %3423
        %v3426 = vsel %vm450, %v3415, %v3420
        %v3427 = vsel %vm455, %v3426, %v3424
        %v3428 = vlaneseq
        %v3429 = vshrl.u32 %v3428, 7
        %v3430 = vsub.s32 0, %v3429
        %v3431 = vrot.slane %v3413, %v3430
        %v3433 = vsel %vm464, %v3427, 0
        %3435 = vmatprep.subr.mxu0 0.0
        %3436 = vmatpush1.msra.mxu0 %v3401
        %3437 = vmatprep.subr.mxu0 0.0
        %3438 = vmatpush1.msra.mxu0 %v3402
        %3439 = vmatprep.subr.mxu0 0.0
        %3440 = vmatpush1.msra.mxu0 %v3403
        %3441 = vmatprep.subr.mxu0 0.0
        %3442 = vmatpush1.msra.mxu0 %v3404
        %3443 = vmatprep.subr.mxu0 0.0
        %3444 = vmatpush1.msra.mxu0 %v3405
        %3445 = vmatprep.subr.mxu0 0.0
        %3446 = vmatpush1.msra.mxu0 %v3406
        %3447 = vmatprep.subr.mxu0 0.0
        %3448 = vmatpush1.msra.mxu0 %v3407
        %3449 = vmatprep.subr.mxu0 0.0
        %3450 = vmatpush1.msra.mxu0 %v3408
        %3451 = vmatprep.subr.mxu0 0.0
        %3452 = vmatpush1.msra.mxu0 %v3409
        %3453 = vmatprep.subr.mxu0 0.0
        %3454 = vmatpush1.msra.mxu0 %v3410
        %3455 = vmatprep.subr.mxu0 0.0
        %3456 = vmatpush1.msra.mxu0 %v3411
        %3457 = vmatprep.subr.mxu0 0.0
        %3458 = vmatpush1.msra.mxu0 %v3412
        %3459 = vmatprep.subr.mxu0 0.0
        %3460 = vmatpush1.msra.mxu0 0.0
        %3461 = vmatprep.subr.mxu0 0.0
        %3462 = vmatpush1.msra.mxu0 0.0
        %3463 = vmatprep.subr.mxu0 0.0
        %3464 = vmatpush1.msra.mxu0 0.0
        %3465 = vmatprep.subr.mxu0 0.0
        %3466 = vmatpush1.msra.mxu0 0.0
        %3467 = vmatprep.subr.mxu0 0.0
        %3468 = vmatpush1.msra.mxu0 0.0
        %3469 = vmatprep.subr.mxu0 0.0
        %3470 = vmatpush1.msra.mxu0 0.0
        %3471 = vmatprep.subr.mxu0 0.0
        %3472 = vmatpush1.msra.mxu0 0.0
        %3473 = vmatprep.subr.mxu0 0.0
        %3474 = vmatpush1.msra.mxu0 0.0
        %3475 = vmatprep.subr.mxu0 0.0
        %3476 = vmatpush1.msra.mxu0 0.0
        %3477 = vmatprep.subr.mxu0 0.0
        %3478 = vmatpush1.msra.mxu0 0.0
        %3479 = vmatprep.subr.mxu0 0.0
        %3480 = vmatpush1.msra.mxu0 0.0
        %3481 = vmatprep.subr.mxu0 0.0
        %3482 = vmatpush1.msra.mxu0 0.0
        %3483 = vmatprep.subr.mxu0 0.0
        %3484 = vmatpush1.msra.mxu0 0.0
        %3485 = vmatprep.subr.mxu0 0.0
        %3486 = vmatpush1.msra.mxu0 0.0
        %3487 = vmatprep.subr.mxu0 0.0
        %3488 = vmatpush1.msra.mxu0 0.0
        %3489 = vmatprep.subr.mxu0 0.0
        %3490 = vmatpush1.msra.mxu0 0.0
        %3491 = vmatprep.subr.mxu0 0.0
        %3492 = vmatpush1.msra.mxu0 0.0
        %3493 = vmatprep.subr.mxu0 0.0
        %3494 = vmatpush1.msra.mxu0 0.0
        %3495 = vmatprep.subr.mxu0 0.0
        %3496 = vmatpush1.msra.mxu0 0.0
        %3497 = vmatprep.subr.mxu0 0.0
        %3498 = vmatpush1.msra.mxu0 0.0
        %3499 = vmatprep.mubr.f32.mxu0 0.0
        %3500 = vmatmul.mubr.f32.gmra.mrb[0].mxu0 %v3433
        %v3501 = vpop.f32.mrb[0].mxu0
        %v3502 = vadd.f32 %v3431, %v3501
        %v3503 = vpop.f32.mrb[0].mxu0
        %3504 = vdwg.mxu0
        %v3505 = vld [vmem:[#allocation2 + $0xd08] sm:$0xff]
        %v3506 = vld [vmem:[#allocation2 + $0xd10] sm:$0xff]
        %v3508 = vsel %vm266, %v3505, 0
        %v3511 = vsel %vm266, %v3506, 0
        %3513 = vmatprep.subr.mxu0 0.0
        %3514 = vmatpush1.msra.mxu0 %v3502
        %3515 = vmatprep.subr.mxu0 0.0
        %3516 = vmatpush1.msra.mxu0 0.0
        %3517 = vmatprep.subr.mxu0 0.0
        %3518 = vmatpush1.msra.mxu0 0.0
        %3519 = vmatprep.subr.mxu0 0.0
        %3520 = vmatpush1.msra.mxu0 0.0
        %3521 = vmatprep.subr.mxu0 0.0
        %3522 = vmatpush1.msra.mxu0 0.0
        %3523 = vmatprep.subr.mxu0 0.0
        %3524 = vmatpush1.msra.mxu0 0.0
        %3525 = vmatprep.subr.mxu0 0.0
        %3526 = vmatpush1.msra.mxu0 0.0
        %3527 = vmatprep.subr.mxu0 0.0
        %3528 = vmatpush1.msra.mxu0 0.0
        %3529 = vmatprep.subr.mxu0 0.0
        %3530 = vmatpush1.msra.mxu0 0.0
        %3531 = vmatprep.subr.mxu0 0.0
        %3532 = vmatpush1.msra.mxu0 0.0
        %3533 = vmatprep.subr.mxu0 0.0
        %3534 = vmatpush1.msra.mxu0 0.0
        %3535 = vmatprep.subr.mxu0 0.0
        %3536 = vmatpush1.msra.mxu0 0.0
        %3537 = vmatprep.subr.mxu0 0.0
        %3538 = vmatpush1.msra.mxu0 0.0
        %3539 = vmatprep.subr.mxu0 0.0
        %3540 = vmatpush1.msra.mxu0 0.0
        %3541 = vmatprep.subr.mxu0 0.0
        %3542 = vmatpush1.msra.mxu0 0.0
        %3543 = vmatprep.subr.mxu0 0.0
        %3544 = vmatpush1.msra.mxu0 0.0
        %3545 = vmatprep.subr.mxu0 0.0
        %3546 = vmatpush1.msra.mxu0 0.0
        %3547 = vmatprep.subr.mxu0 0.0
        %3548 = vmatpush1.msra.mxu0 0.0
        %3549 = vmatprep.subr.mxu0 0.0
        %3550 = vmatpush1.msra.mxu0 0.0
        %3551 = vmatprep.subr.mxu0 0.0
        %3552 = vmatpush1.msra.mxu0 0.0
        %3553 = vmatprep.subr.mxu0 0.0
        %3554 = vmatpush1.msra.mxu0 0.0
        %3555 = vmatprep.subr.mxu0 0.0
        %3556 = vmatpush1.msra.mxu0 0.0
        %3557 = vmatprep.subr.mxu0 0.0
        %3558 = vmatpush1.msra.mxu0 0.0
        %3559 = vmatprep.subr.mxu0 0.0
        %3560 = vmatpush1.msra.mxu0 0.0
        %3561 = vmatprep.subr.mxu0 0.0
        %3562 = vmatpush1.msra.mxu0 0.0
        %3563 = vmatprep.subr.mxu0 0.0
        %3564 = vmatpush1.msra.mxu0 0.0
        %3565 = vmatprep.subr.mxu0 0.0
        %3566 = vmatpush1.msra.mxu0 0.0
        %3567 = vmatprep.subr.mxu0 0.0
        %3568 = vmatpush1.msra.mxu0 0.0
        %3569 = vmatprep.subr.mxu0 0.0
        %3570 = vmatpush1.msra.mxu0 0.0
        %3571 = vmatprep.subr.mxu0 0.0
        %3572 = vmatpush1.msra.mxu0 0.0
        %3573 = vmatprep.subr.mxu0 0.0
        %3574 = vmatpush1.msra.mxu0 0.0
        %3575 = vmatprep.subr.mxu0 0.0
        %3576 = vmatpush1.msra.mxu0 0.0
        %3577 = vmatprep.mubr.f32.mxu0 0.0
        %3578 = vmatmul.mubr.f32.gmra.mrb[0].mxu0 %v3508
        %v3579 = vpop.f32.mrb[0].mxu0
        %v3580 = vadd.f32 0.0, %v3579
        %v3581 = vpop.f32.mrb[0].mxu0
        %3582 = vmatprep.mubr.f32.mxu0 0.0
        %3583 = vmatmul.mubr.f32.gmra.mrb[0].mxu0 %v3511
        %v3584 = vpop.f32.mrb[0].mxu0
        %v3585 = vadd.f32 0.0, %v3584
        %v3586 = vpop.f32.mrb[0].mxu0
        %3587 = vdwg.mxu0
        %v3588 = vld [vmem:[#allocation2 + $0xb60] sm:$0xff]
        %v3589 = vld [vmem:[#allocation2 + $0xb68] sm:$0xff]
        %v3590 = vld [vmem:[#allocation2 + $0xb70] sm:$0xff]
        %v3591 = vld [vmem:[#allocation2 + $0xb78] sm:$0xff]
        %v3592 = vld [vmem:[#allocation2 + $0xb80] sm:$0xff]
        %v3593 = vld [vmem:[#allocation2 + $0xb88] sm:$0xff]
        %v3594 = vld [vmem:[#allocation2 + $0xb90] sm:$0xff]
        %v3595 = vld [vmem:[#allocation2 + $0xb98] sm:$0xff]
        %v3596 = vld [vmem:[#allocation2 + $0xba0] sm:$0xff]
        %v3597 = vld [vmem:[#allocation2 + $0xba8] sm:$0xff]
        %v3598 = vld [vmem:[#allocation2 + $0xbb0] sm:$0xff]
        %v3599 = vld [vmem:[#allocation2 + $0xbb8] sm:$0xff]
        %v3600 = vld [vmem:[#allocation2 + $0xbc0] sm:$0xff]
        %v3601 = vld [vmem:[#allocation2 + $0xbc8] sm:$0xff]
        %v3602 = vld [vmem:[#allocation2 + $0xbd0] sm:$0xff]
        %v3603 = vld [vmem:[#allocation2 + $0xbd8] sm:$0xff]
        %v3604 = vld [vmem:[#allocation2 + $0xbe0] sm:$0xff]
        %v3605 = vld [vmem:[#allocation2 + $0xbe8] sm:$0xff]
        %v3606 = vld [vmem:[#allocation2 + $0xbf0] sm:$0xff]
        %v3607 = vld [vmem:[#allocation2 + $0xbf8] sm:$0xff]
        %v3608 = vld [vmem:[#allocation2 + $0xc00] sm:$0xff]
        %v3609 = vld [vmem:[#allocation2 + $0xc08] sm:$0xff]
        %v3610 = vld [vmem:[#allocation2 + $0xc10] sm:$0xff]
        %v3611 = vld [vmem:[#allocation2 + $0xc18] sm:$0xff]
        %v3612 = vld [vmem:[#allocation2 + $0xc20] sm:$0x1]
        %3615 = vrot.lane.b32.xlu0 %v1018, 32
        %v3616 = vpop.permute.xlu0 %3615
        %3617 = vrot.lane.b32.xlu0 %v1019, 32
        %v3618 = vpop.permute.xlu0 %3617
        %v3621 = vsel %vm450, %v3580, %v3616
        %v3622 = vsel %vm450, %v3585, %v3618
        %v3623 = vrot.slane %v3621, 7
        %v3624 = vrot.slane %v3622, 7
        %v3625 = vsel %vm172, %v3623, %v3624
        %v3626 = vsel %vm172, %v3624, %v3623
        %v3627 = vsel %vm749, %v3626, 0.0
        %v3628 = vsel %vm750, %v3625, 0.0
        %v3629 = vrot.slane %v3621, 1
        %v3630 = vrot.slane %v3622, 1
        %v3631 = vsel %vm204, %v3629, %v3630
        %v3632 = vsel %vm204, %v3630, %v3629
        %v3633 = vsel %vm759, %v3631, 0.0
        %v3634 = vsel %vm760, %v3632, 0.0
        %3637 = vrot.lane.b32.xlu0 %v3621, 64
        %v3638 = vpop.permute.xlu0 %3637
        %3639 = vrot.lane.b32.xlu0 %v3622, 64
        %v3640 = vpop.permute.xlu0 %3639
        %v3643 = vsel %vm455, %v3627, %v3638
        %v3644 = vsel %vm455, %v3628, %v3640
        %v3645 = vlaneseq
        %v3646 = vshrl.u32 %v3645, 7
        %v3647 = vsub.s32 0, %v3646
        %v3648 = vrot.slane %v3612, %v3647
        %v3650 = vsel %vm455, %v3633, 0
        %v3653 = vsel %vm455, %v3634, 0
        %3655 = vmatprep.subr.mxu0 0.0
        %3656 = vmatpush1.msra.mxu0 %v3588
        %3657 = vmatprep.subr.mxu0 0.0
        %3658 = vmatpush1.msra.mxu0 %v3589
        %3659 = vmatprep.subr.mxu0 0.0
        %3660 = vmatpush1.msra.mxu0 %v3590
        %3661 = vmatprep.subr.mxu0 0.0
        %3662 = vmatpush1.msra.mxu0 %v3591
        %3663 = vmatprep.subr.mxu0 0.0
        %3664 = vmatpush1.msra.mxu0 %v3592
        %3665 = vmatprep.subr.mxu0 0.0
        %3666 = vmatpush1.msra.mxu0 %v3593
        %3667 = vmatprep.subr.mxu0 0.0
        %3668 = vmatpush1.msra.mxu0 %v3594
        %3669 = vmatprep.subr.mxu0 0.0
        %3670 = vmatpush1.msra.mxu0 %v3595
        %3671 = vmatprep.subr.mxu0 0.0
        %3672 = vmatpush1.msra.mxu0 %v3596
        %3673 = vmatprep.subr.mxu0 0.0
        %3674 = vmatpush1.msra.mxu0 %v3597
        %3675 = vmatprep.subr.mxu0 0.0
        %3676 = vmatpush1.msra.mxu0 %v3598
        %3677 = vmatprep.subr.mxu0 0.0
        %3678 = vmatpush1.msra.mxu0 %v3599
        %3679 = vmatprep.subr.mxu0 0.0
        %3680 = vmatpush1.msra.mxu0 %v3600
        %3681 = vmatprep.subr.mxu0 0.0
        %3682 = vmatpush1.msra.mxu0 %v3601
        %3683 = vmatprep.subr.mxu0 0.0
        %3684 = vmatpush1.msra.mxu0 %v3602
        %3685 = vmatprep.subr.mxu0 0.0
        %3686 = vmatpush1.msra.mxu0 %v3603
        %3687 = vmatprep.subr.mxu0 0.0
        %3688 = vmatpush1.msra.mxu0 %v3604
        %3689 = vmatprep.subr.mxu0 0.0
        %3690 = vmatpush1.msra.mxu0 %v3605
        %3691 = vmatprep.subr.mxu0 0.0
        %3692 = vmatpush1.msra.mxu0 %v3606
        %3693 = vmatprep.subr.mxu0 0.0
        %3694 = vmatpush1.msra.mxu0 %v3607
        %3695 = vmatprep.subr.mxu0 0.0
        %3696 = vmatpush1.msra.mxu0 %v3608
        %3697 = vmatprep.subr.mxu0 0.0
        %3698 = vmatpush1.msra.mxu0 %v3609
        %3699 = vmatprep.subr.mxu0 0.0
        %3700 = vmatpush1.msra.mxu0 %v3610
        %3701 = vmatprep.subr.mxu0 0.0
        %3702 = vmatpush1.msra.mxu0 %v3611
        %3703 = vmatprep.subr.mxu0 0.0
        %3704 = vmatpush1.msra.mxu0 0.0
        %3705 = vmatprep.subr.mxu0 0.0
        %3706 = vmatpush1.msra.mxu0 0.0
        %3707 = vmatprep.subr.mxu0 0.0
        %3708 = vmatpush1.msra.mxu0 0.0
        %3709 = vmatprep.subr.mxu0 0.0
        %3710 = vmatpush1.msra.mxu0 0.0
        %3711 = vmatprep.subr.mxu0 0.0
        %3712 = vmatpush1.msra.mxu0 0.0
        %3713 = vmatprep.subr.mxu0 0.0
        %3714 = vmatpush1.msra.mxu0 0.0
        %3715 = vmatprep.subr.mxu0 0.0
        %3716 = vmatpush1.msra.mxu0 0.0
        %3717 = vmatprep.subr.mxu0 0.0
        %3718 = vmatpush1.msra.mxu0 0.0
        %3719 = vmatprep.mubr.f32.mxu0 %v3650
        %3720 = vmatmul.mubr.f32.gmra.mrb[0].mxu0 %v3643
        %v3721 = vpop.f32.mrb[0].mxu0
        %v3722 = vadd.f32 %v3648, %v3721
        %v3723 = vpop.f32.mrb[0].mxu0
        %3724 = vmatprep.mubr.f32.mxu0 %v3653
        %3725 = vmatmul.mubr.f32.gmra.mrb[0].mxu0 %v3644
        %v3726 = vpop.f32.mrb[0].mxu0
        %v3727 = vadd.f32 %v3648, %v3726
        %v3728 = vpop.f32.mrb[0].mxu0
        %3729 = vdwg.mxu0
        %v3730 = vmax.f32 %v3722, 0.0
        %v3731 = vmax.f32 %v3727, 0.0
        %v3732 = vld [vmem:[#allocation2 + $0xc28] sm:$0xff]
        %v3733 = vld [vmem:[#allocation2 + $0xc30] sm:$0xff]
        %v3734 = vld [vmem:[#allocation2 + $0xc38] sm:$0xff]
        %v3735 = vld [vmem:[#allocation2 + $0xc40] sm:$0xff]
        %v3736 = vld [vmem:[#allocation2 + $0xc48] sm:$0xff]
        %v3737 = vld [vmem:[#allocation2 + $0xc50] sm:$0xff]
        %v3738 = vld [vmem:[#allocation2 + $0xc58] sm:$0xff]
        %v3739 = vld [vmem:[#allocation2 + $0xc60] sm:$0xff]
        %v3740 = vld [vmem:[#allocation2 + $0xc68] sm:$0xff]
        %v3741 = vld [vmem:[#allocation2 + $0xc70] sm:$0xff]
        %v3742 = vld [vmem:[#allocation2 + $0xc78] sm:$0xff]
        %v3743 = vld [vmem:[#allocation2 + $0xc80] sm:$0xff]
        %v3744 = vld [vmem:[#allocation2 + $0xc88] sm:$0x1]
        %v3745 = vrot.slane %v3730, 7
        %v3746 = vrot.slane %v3731, 7
        %v3747 = vsel %vm172, %v3745, %v3746
        %v3748 = vsel %vm172, %v3746, %v3745
        %v3749 = vsel %vm749, %v3748, 0.0
        %v3750 = vsel %vm750, %v3747, 0.0
        %v3751 = vrot.slane %v3730, 1
        %v3752 = vrot.slane %v3731, 1
        %v3753 = vsel %vm204, %v3751, %v3752
        %v3754 = vsel %vm204, %v3752, %v3751
        %v3755 = vsel %vm759, %v3753, 0.0
        %v3756 = vsel %vm760, %v3754, 0.0
        %3759 = vrot.lane.b32.xlu0 %v3730, 32
        %v3760 = vpop.permute.xlu0 %3759
        %3761 = vrot.lane.b32.xlu0 %v3731, 32
        %v3762 = vpop.permute.xlu0 %3761
        %3767 = vrot.lane.b32.xlu0 %v3755, 64
        %v3768 = vpop.permute.xlu0 %3767
        %3769 = vrot.lane.b32.xlu0 %v3756, 64
        %v3770 = vpop.permute.xlu0 %3769
        %v3773 = vsel %vm450, %v3749, %v3760
        %v3774 = vsel %vm450, %v3750, %v3762
        %v3775 = vsel %vm455, %v3773, %v3768
        %v3776 = vsel %vm455, %v3774, %v3770
        %v3777 = vlaneseq
        %v3778 = vshrl.u32 %v3777, 7
        %v3779 = vsub.s32 0, %v3778
        %v3780 = vrot.slane %v3744, %v3779
        %v3782 = vsel %vm464, %v3775, 0
        %v3785 = vsel %vm464, %v3776, 0
        %3787 = vmatprep.subr.mxu0 0.0
        %3788 = vmatpush1.msra.mxu0 %v3732
        %3789 = vmatprep.subr.mxu0 0.0
        %3790 = vmatpush1.msra.mxu0 %v3733
        %3791 = vmatprep.subr.mxu0 0.0
        %3792 = vmatpush1.msra.mxu0 %v3734
        %3793 = vmatprep.subr.mxu0 0.0
        %3794 = vmatpush1.msra.mxu0 %v3735
        %3795 = vmatprep.subr.mxu0 0.0
        %3796 = vmatpush1.msra.mxu0 %v3736
        %3797 = vmatprep.subr.mxu0 0.0
        %3798 = vmatpush1.msra.mxu0 %v3737
        %3799 = vmatprep.subr.mxu0 0.0
        %3800 = vmatpush1.msra.mxu0 %v3738
        %3801 = vmatprep.subr.mxu0 0.0
        %3802 = vmatpush1.msra.mxu0 %v3739
        %3803 = vmatprep.subr.mxu0 0.0
        %3804 = vmatpush1.msra.mxu0 %v3740
        %3805 = vmatprep.subr.mxu0 0.0
        %3806 = vmatpush1.msra.mxu0 %v3741
        %3807 = vmatprep.subr.mxu0 0.0
        %3808 = vmatpush1.msra.mxu0 %v3742
        %3809 = vmatprep.subr.mxu0 0.0
        %3810 = vmatpush1.msra.mxu0 %v3743
        %3811 = vmatprep.subr.mxu0 0.0
        %3812 = vmatpush1.msra.mxu0 0.0
        %3813 = vmatprep.subr.mxu0 0.0
        %3814 = vmatpush1.msra.mxu0 0.0
        %3815 = vmatprep.subr.mxu0 0.0
        %3816 = vmatpush1.msra.mxu0 0.0
        %3817 = vmatprep.subr.mxu0 0.0
        %3818 = vmatpush1.msra.mxu0 0.0
        %3819 = vmatprep.subr.mxu0 0.0
        %3820 = vmatpush1.msra.mxu0 0.0
        %3821 = vmatprep.subr.mxu0 0.0
        %3822 = vmatpush1.msra.mxu0 0.0
        %3823 = vmatprep.subr.mxu0 0.0
        %3824 = vmatpush1.msra.mxu0 0.0
        %3825 = vmatprep.subr.mxu0 0.0
        %3826 = vmatpush1.msra.mxu0 0.0
        %3827 = vmatprep.subr.mxu0 0.0
        %3828 = vmatpush1.msra.mxu0 0.0
        %3829 = vmatprep.subr.mxu0 0.0
        %3830 = vmatpush1.msra.mxu0 0.0
        %3831 = vmatprep.subr.mxu0 0.0
        %3832 = vmatpush1.msra.mxu0 0.0
        %3833 = vmatprep.subr.mxu0 0.0
        %3834 = vmatpush1.msra.mxu0 0.0
        %3835 = vmatprep.subr.mxu0 0.0
        %3836 = vmatpush1.msra.mxu0 0.0
        %3837 = vmatprep.subr.mxu0 0.0
        %3838 = vmatpush1.msra.mxu0 0.0
        %3839 = vmatprep.subr.mxu0 0.0
        %3840 = vmatpush1.msra.mxu0 0.0
        %3841 = vmatprep.subr.mxu0 0.0
        %3842 = vmatpush1.msra.mxu0 0.0
        %3843 = vmatprep.subr.mxu0 0.0
        %3844 = vmatpush1.msra.mxu0 0.0
        %3845 = vmatprep.subr.mxu0 0.0
        %3846 = vmatpush1.msra.mxu0 0.0
        %3847 = vmatprep.subr.mxu0 0.0
        %3848 = vmatpush1.msra.mxu0 0.0
        %3849 = vmatprep.subr.mxu0 0.0
        %3850 = vmatpush1.msra.mxu0 0.0
        %3851 = vmatprep.mubr.f32.mxu0 0.0
        %3852 = vmatmul.mubr.f32.gmra.mrb[0].mxu0 %v3782
        %v3853 = vpop.f32.mrb[0].mxu0
        %v3854 = vadd.f32 %v3780, %v3853
        %v3855 = vpop.f32.mrb[0].mxu0
        %3856 = vmatprep.mubr.f32.mxu0 0.0
        %3857 = vmatmul.mubr.f32.gmra.mrb[0].mxu0 %v3785
        %v3858 = vpop.f32.mrb[0].mxu0
        %v3859 = vadd.f32 %v3780, %v3858
        %v3860 = vpop.f32.mrb[0].mxu0
        %3861 = vdwg.mxu0
        %3862 = vmatprep.subr.mxu0 0.0
        %3863 = vmatpush1.msra.mxu0 %v3854
        %3864 = vmatprep.subr.mxu0 0.0
        %3865 = vmatpush1.msra.mxu0 %v3859
        %3866 = vmatprep.subr.mxu0 0.0
        %3867 = vmatpush1.msra.mxu0 0.0
        %3868 = vmatprep.subr.mxu0 0.0
        %3869 = vmatpush1.msra.mxu0 0.0
        %3870 = vmatprep.subr.mxu0 0.0
        %3871 = vmatpush1.msra.mxu0 0.0
        %3872 = vmatprep.subr.mxu0 0.0
        %3873 = vmatpush1.msra.mxu0 0.0
        %3874 = vmatprep.subr.mxu0 0.0
        %3875 = vmatpush1.msra.mxu0 0.0
        %3876 = vmatprep.subr.mxu0 0.0
        %3877 = vmatpush1.msra.mxu0 0.0
        %3878 = vmatprep.subr.mxu0 0.0
        %3879 = vmatpush1.msra.mxu0 0.0
        %3880 = vmatprep.subr.mxu0 0.0
        %3881 = vmatpush1.msra.mxu0 0.0
        %3882 = vmatprep.subr.mxu0 0.0
        %3883 = vmatpush1.msra.mxu0 0.0
        %3884 = vmatprep.subr.mxu0 0.0
        %3885 = vmatpush1.msra.mxu0 0.0
        %3886 = vmatprep.subr.mxu0 0.0
        %3887 = vmatpush1.msra.mxu0 0.0
        %3888 = vmatprep.subr.mxu0 0.0
        %3889 = vmatpush1.msra.mxu0 0.0
        %3890 = vmatprep.subr.mxu0 0.0
        %3891 = vmatpush1.msra.mxu0 0.0
        %3892 = vmatprep.subr.mxu0 0.0
        %3893 = vmatpush1.msra.mxu0 0.0
        %3894 = vmatprep.subr.mxu0 0.0
        %3895 = vmatpush1.msra.mxu0 0.0
        %3896 = vmatprep.subr.mxu0 0.0
        %3897 = vmatpush1.msra.mxu0 0.0
        %3898 = vmatprep.subr.mxu0 0.0
        %3899 = vmatpush1.msra.mxu0 0.0
        %3900 = vmatprep.subr.mxu0 0.0
        %3901 = vmatpush1.msra.mxu0 0.0
        %3902 = vmatprep.subr.mxu0 0.0
        %3903 = vmatpush1.msra.mxu0 0.0
        %3904 = vmatprep.subr.mxu0 0.0
        %3905 = vmatpush1.msra.mxu0 0.0
        %3906 = vmatprep.subr.mxu0 0.0
        %3907 = vmatpush1.msra.mxu0 0.0
        %3908 = vmatprep.subr.mxu0 0.0
        %3909 = vmatpush1.msra.mxu0 0.0
        %3910 = vmatprep.subr.mxu0 0.0
        %3911 = vmatpush1.msra.mxu0 0.0
        %3912 = vmatprep.subr.mxu0 0.0
        %3913 = vmatpush1.msra.mxu0 0.0
        %3914 = vmatprep.subr.mxu0 0.0
        %3915 = vmatpush1.msra.mxu0 0.0
        %3916 = vmatprep.subr.mxu0 0.0
        %3917 = vmatpush1.msra.mxu0 0.0
        %3918 = vmatprep.subr.mxu0 0.0
        %3919 = vmatpush1.msra.mxu0 0.0
        %3920 = vmatprep.subr.mxu0 0.0
        %3921 = vmatpush1.msra.mxu0 0.0
        %3922 = vmatprep.subr.mxu0 0.0
        %3923 = vmatpush1.msra.mxu0 0.0
        %3924 = vmatprep.subr.mxu0 0.0
        %3925 = vmatpush1.msra.mxu0 0.0
        %3926 = vmatprep.mubr.f32.mxu0 0.0
        %3927 = vmatmul.mubr.f32.gmra.mrb[0].mxu0 %v1023
        %v3928 = vpop.f32.mrb[0].mxu0
        %v3929 = vadd.f32 0.0, %v3928
        %v3930 = vpop.f32.mrb[0].mxu0
        %3931 = vdwg.mxu0
        %3932 = vmatprep.subr.mxu0 0.0
        %3933 = vmatpush1.msra.mxu0 %v3854
        %3934 = vmatprep.subr.mxu0 0.0
        %3935 = vmatpush1.msra.mxu0 %v3859
        %3936 = vmatprep.subr.mxu0 0.0
        %3937 = vmatpush1.msra.mxu0 0.0
        %3938 = vmatprep.subr.mxu0 0.0
        %3939 = vmatpush1.msra.mxu0 0.0
        %3940 = vmatprep.subr.mxu0 0.0
        %3941 = vmatpush1.msra.mxu0 0.0
        %3942 = vmatprep.subr.mxu0 0.0
        %3943 = vmatpush1.msra.mxu0 0.0
        %3944 = vmatprep.subr.mxu0 0.0
        %3945 = vmatpush1.msra.mxu0 0.0
        %3946 = vmatprep.subr.mxu0 0.0
        %3947 = vmatpush1.msra.mxu0 0.0
        %3948 = vmatprep.subr.mxu0 0.0
        %3949 = vmatpush1.msra.mxu0 0.0
        %3950 = vmatprep.subr.mxu0 0.0
        %3951 = vmatpush1.msra.mxu0 0.0
        %3952 = vmatprep.subr.mxu0 0.0
        %3953 = vmatpush1.msra.mxu0 0.0
        %3954 = vmatprep.subr.mxu0 0.0
        %3955 = vmatpush1.msra.mxu0 0.0
        %3956 = vmatprep.subr.mxu0 0.0
        %3957 = vmatpush1.msra.mxu0 0.0
        %3958 = vmatprep.subr.mxu0 0.0
        %3959 = vmatpush1.msra.mxu0 0.0
        %3960 = vmatprep.subr.mxu0 0.0
        %3961 = vmatpush1.msra.mxu0 0.0
        %3962 = vmatprep.subr.mxu0 0.0
        %3963 = vmatpush1.msra.mxu0 0.0
        %3964 = vmatprep.subr.mxu0 0.0
        %3965 = vmatpush1.msra.mxu0 0.0
        %3966 = vmatprep.subr.mxu0 0.0
        %3967 = vmatpush1.msra.mxu0 0.0
        %3968 = vmatprep.subr.mxu0 0.0
        %3969 = vmatpush1.msra.mxu0 0.0
        %3970 = vmatprep.subr.mxu0 0.0
        %3971 = vmatpush1.msra.mxu0 0.0
        %3972 = vmatprep.subr.mxu0 0.0
        %3973 = vmatpush1.msra.mxu0 0.0
        %3974 = vmatprep.subr.mxu0 0.0
        %3975 = vmatpush1.msra.mxu0 0.0
        %3976 = vmatprep.subr.mxu0 0.0
        %3977 = vmatpush1.msra.mxu0 0.0
        %3978 = vmatprep.subr.mxu0 0.0
        %3979 = vmatpush1.msra.mxu0 0.0
        %3980 = vmatprep.subr.mxu0 0.0
        %3981 = vmatpush1.msra.mxu0 0.0
        %3982 = vmatprep.subr.mxu0 0.0
        %3983 = vmatpush1.msra.mxu0 0.0
        %3984 = vmatprep.subr.mxu0 0.0
        %3985 = vmatpush1.msra.mxu0 0.0
        %3986 = vmatprep.subr.mxu0 0.0
        %3987 = vmatpush1.msra.mxu0 0.0
        %3988 = vmatprep.subr.mxu0 0.0
        %3989 = vmatpush1.msra.mxu0 0.0
        %3990 = vmatprep.subr.mxu0 0.0
        %3991 = vmatpush1.msra.mxu0 0.0
        %3992 = vmatprep.subr.mxu0 0.0
        %3993 = vmatpush1.msra.mxu0 0.0
        %3994 = vmatprep.subr.mxu0 0.0
        %3995 = vmatpush1.msra.mxu0 0.0
        %3996 = vmatprep.mubr.f32.mxu0 0.0
        %3997 = vmatmul.mubr.f32.gmra.mrb[0].mxu0 %v1097
        %v3998 = vpop.f32.mrb[0].mxu0
        %v3999 = vadd.f32 0.0, %v3998
        %v4000 = vpop.f32.mrb[0].mxu0
        %4001 = vdwg.mxu0
        %v4002 = vmax.f32 %v3929, %v3999
        %v4003 = vld [vmem:[#allocation2 + $0xd18] sm:$0xff]
        %v4004 = vld [vmem:[#allocation2 + $0xd20] sm:$0xff]
        %v4005 = vld [vmem:[#allocation2 + $0xd28] sm:$0xff]
        %v4006 = vld [vmem:[#allocation2 + $0xd30] sm:$0xff]
        %v4007 = vld [vmem:[#allocation2 + $0xd38] sm:$0xff]
        %v4009 = vsel %vm266, %v4003, 0
        %v4012 = vsel %vm266, %v4004, 0
        %v4015 = vsel %vm266, %v4005, 0
        %v4018 = vsel %vm266, %v4006, 0
        %v4021 = vsel %vm266, %v4007, 0
        %4023 = vmatprep.subr.mxu0 0.0
        %4024 = vmatpush1.msra.mxu0 %v4002
        %4025 = vmatprep.subr.mxu0 0.0
        %4026 = vmatpush1.msra.mxu0 0.0
        %4027 = vmatprep.subr.mxu0 0.0
        %4028 = vmatpush1.msra.mxu0 0.0
        %4029 = vmatprep.subr.mxu0 0.0
        %4030 = vmatpush1.msra.mxu0 0.0
        %4031 = vmatprep.subr.mxu0 0.0
        %4032 = vmatpush1.msra.mxu0 0.0
        %4033 = vmatprep.subr.mxu0 0.0
        %4034 = vmatpush1.msra.mxu0 0.0
        %4035 = vmatprep.subr.mxu0 0.0
        %4036 = vmatpush1.msra.mxu0 0.0
        %4037 = vmatprep.subr.mxu0 0.0
        %4038 = vmatpush1.msra.mxu0 0.0
        %4039 = vmatprep.subr.mxu0 0.0
        %4040 = vmatpush1.msra.mxu0 0.0
        %4041 = vmatprep.subr.mxu0 0.0
        %4042 = vmatpush1.msra.mxu0 0.0
        %4043 = vmatprep.subr.mxu0 0.0
        %4044 = vmatpush1.msra.mxu0 0.0
        %4045 = vmatprep.subr.mxu0 0.0
        %4046 = vmatpush1.msra.mxu0 0.0
        %4047 = vmatprep.subr.mxu0 0.0
        %4048 = vmatpush1.msra.mxu0 0.0
        %4049 = vmatprep.subr.mxu0 0.0
        %4050 = vmatpush1.msra.mxu0 0.0
        %4051 = vmatprep.subr.mxu0 0.0
        %4052 = vmatpush1.msra.mxu0 0.0
        %4053 = vmatprep.subr.mxu0 0.0
        %4054 = vmatpush1.msra.mxu0 0.0
        %4055 = vmatprep.subr.mxu0 0.0
        %4056 = vmatpush1.msra.mxu0 0.0
        %4057 = vmatprep.subr.mxu0 0.0
        %4058 = vmatpush1.msra.mxu0 0.0
        %4059 = vmatprep.subr.mxu0 0.0
        %4060 = vmatpush1.msra.mxu0 0.0
        %4061 = vmatprep.subr.mxu0 0.0
        %4062 = vmatpush1.msra.mxu0 0.0
        %4063 = vmatprep.subr.mxu0 0.0
        %4064 = vmatpush1.msra.mxu0 0.0
        %4065 = vmatprep.subr.mxu0 0.0
        %4066 = vmatpush1.msra.mxu0 0.0
        %4067 = vmatprep.subr.mxu0 0.0
        %4068 = vmatpush1.msra.mxu0 0.0
        %4069 = vmatprep.subr.mxu0 0.0
        %4070 = vmatpush1.msra.mxu0 0.0
        %4071 = vmatprep.subr.mxu0 0.0
        %4072 = vmatpush1.msra.mxu0 0.0
        %4073 = vmatprep.subr.mxu0 0.0
        %4074 = vmatpush1.msra.mxu0 0.0
        %4075 = vmatprep.subr.mxu0 0.0
        %4076 = vmatpush1.msra.mxu0 0.0
        %4077 = vmatprep.subr.mxu0 0.0
        %4078 = vmatpush1.msra.mxu0 0.0
        %4079 = vmatprep.subr.mxu0 0.0
        %4080 = vmatpush1.msra.mxu0 0.0
        %4081 = vmatprep.subr.mxu0 0.0
        %4082 = vmatpush1.msra.mxu0 0.0
        %4083 = vmatprep.subr.mxu0 0.0
        %4084 = vmatpush1.msra.mxu0 0.0
        %4085 = vmatprep.subr.mxu0 0.0
        %4086 = vmatpush1.msra.mxu0 0.0
        %4087 = vmatprep.mubr.f32.mxu0 0.0
        %4088 = vmatmul.mubr.f32.gmra.mrb[0].mxu0 %v4009
        %v4089 = vpop.f32.mrb[0].mxu0
        %v4090 = vadd.f32 0.0, %v4089
        %v4091 = vpop.f32.mrb[0].mxu0
        %4092 = vmatprep.mubr.f32.mxu0 0.0
        %4093 = vmatmul.mubr.f32.gmra.mrb[0].mxu0 %v4012
        %v4094 = vpop.f32.mrb[0].mxu0
        %v4095 = vadd.f32 0.0, %v4094
        %v4096 = vpop.f32.mrb[0].mxu0
        %4097 = vmatprep.mubr.f32.mxu0 0.0
        %4098 = vmatmul.mubr.f32.gmra.mrb[0].mxu0 %v4015
        %v4099 = vpop.f32.mrb[0].mxu0
        %v4100 = vadd.f32 0.0, %v4099
        %v4101 = vpop.f32.mrb[0].mxu0
        %4102 = vmatprep.mubr.f32.mxu0 0.0
        %4103 = vmatmul.mubr.f32.gmra.mrb[0].mxu0 %v4018
        %v4104 = vpop.f32.mrb[0].mxu0
        %v4105 = vadd.f32 0.0, %v4104
        %v4106 = vpop.f32.mrb[0].mxu0
        %4107 = vmatprep.mubr.f32.mxu0 0.0
        %4108 = vmatmul.mubr.f32.gmra.mrb[0].mxu0 %v4021
        %v4109 = vpop.f32.mrb[0].mxu0
        %v4110 = vadd.f32 0.0, %v4109
        %v4111 = vpop.f32.mrb[0].mxu0
        %4112 = vdwg.mxu0
        %v4113 = vld [vmem:[#allocation2 + $0xc90] sm:$0xff]
        %v4114 = vld [vmem:[#allocation2 + $0xc98] sm:$0xff]
        %v4115 = vld [vmem:[#allocation2 + $0xca0] sm:$0xff]
        %v4116 = vld [vmem:[#allocation2 + $0xca8] sm:$0xff]
        %v4117 = vld [vmem:[#allocation2 + $0xcb0] sm:$0x1]
        %v4118 = vlaneseq
        %v4119 = vshrl.u32 %v4118, 7
        %v4120 = vsub.s32 0, %v4119
        %v4121 = vrot.slane %v4117, %v4120
        %v4123 = vsel %vm450, %v4090, 0
        %v4126 = vsel %vm450, %v4095, 0
        %v4129 = vsel %vm450, %v4100, 0
        %v4132 = vsel %vm450, %v4105, 0
        %v4135 = vsel %vm450, %v4110, 0
        %4137 = vmatprep.subr.mxu0 0.0
        %4138 = vmatpush1.msra.mxu0 %v4113
        %4139 = vmatprep.subr.mxu0 0.0
        %4140 = vmatpush1.msra.mxu0 %v4114
        %4141 = vmatprep.subr.mxu0 0.0
        %4142 = vmatpush1.msra.mxu0 %v4115
        %4143 = vmatprep.subr.mxu0 0.0
        %4144 = vmatpush1.msra.mxu0 %v4116
        %4145 = vmatprep.subr.mxu0 0.0
        %4146 = vmatpush1.msra.mxu0 0.0
        %4147 = vmatprep.subr.mxu0 0.0
        %4148 = vmatpush1.msra.mxu0 0.0
        %4149 = vmatprep.subr.mxu0 0.0
        %4150 = vmatpush1.msra.mxu0 0.0
        %4151 = vmatprep.subr.mxu0 0.0
        %4152 = vmatpush1.msra.mxu0 0.0
        %4153 = vmatprep.subr.mxu0 0.0
        %4154 = vmatpush1.msra.mxu0 0.0
        %4155 = vmatprep.subr.mxu0 0.0
        %4156 = vmatpush1.msra.mxu0 0.0
        %4157 = vmatprep.subr.mxu0 0.0
        %4158 = vmatpush1.msra.mxu0 0.0
        %4159 = vmatprep.subr.mxu0 0.0
        %4160 = vmatpush1.msra.mxu0 0.0
        %4161 = vmatprep.subr.mxu0 0.0
        %4162 = vmatpush1.msra.mxu0 0.0
        %4163 = vmatprep.subr.mxu0 0.0
        %4164 = vmatpush1.msra.mxu0 0.0
        %4165 = vmatprep.subr.mxu0 0.0
        %4166 = vmatpush1.msra.mxu0 0.0
        %4167 = vmatprep.subr.mxu0 0.0
        %4168 = vmatpush1.msra.mxu0 0.0
        %4169 = vmatprep.subr.mxu0 0.0
        %4170 = vmatpush1.msra.mxu0 0.0
        %4171 = vmatprep.subr.mxu0 0.0
        %4172 = vmatpush1.msra.mxu0 0.0
        %4173 = vmatprep.subr.mxu0 0.0
        %4174 = vmatpush1.msra.mxu0 0.0
        %4175 = vmatprep.subr.mxu0 0.0
        %4176 = vmatpush1.msra.mxu0 0.0
        %4177 = vmatprep.subr.mxu0 0.0
        %4178 = vmatpush1.msra.mxu0 0.0
        %4179 = vmatprep.subr.mxu0 0.0
        %4180 = vmatpush1.msra.mxu0 0.0
        %4181 = vmatprep.subr.mxu0 0.0
        %4182 = vmatpush1.msra.mxu0 0.0
        %4183 = vmatprep.subr.mxu0 0.0
        %4184 = vmatpush1.msra.mxu0 0.0
        %4185 = vmatprep.subr.mxu0 0.0
        %4186 = vmatpush1.msra.mxu0 0.0
        %4187 = vmatprep.subr.mxu0 0.0
        %4188 = vmatpush1.msra.mxu0 0.0
        %4189 = vmatprep.subr.mxu0 0.0
        %4190 = vmatpush1.msra.mxu0 0.0
        %4191 = vmatprep.subr.mxu0 0.0
        %4192 = vmatpush1.msra.mxu0 0.0
        %4193 = vmatprep.subr.mxu0 0.0
        %4194 = vmatpush1.msra.mxu0 0.0
        %4195 = vmatprep.subr.mxu0 0.0
        %4196 = vmatpush1.msra.mxu0 0.0
        %4197 = vmatprep.subr.mxu0 0.0
        %4198 = vmatpush1.msra.mxu0 0.0
        %4199 = vmatprep.subr.mxu0 0.0
        %4200 = vmatpush1.msra.mxu0 0.0
        %4201 = vmatprep.mubr.f32.mxu0 0.0
        %4202 = vmatmul.mubr.f32.gmra.mrb[0].mxu0 %v4123
        %v4203 = vpop.f32.mrb[0].mxu0
        %v4204 = vadd.f32 %v4121, %v4203
        %v4205 = vpop.f32.mrb[0].mxu0
        %4206 = vmatprep.mubr.f32.mxu0 0.0
        %4207 = vmatmul.mubr.f32.gmra.mrb[0].mxu0 %v4126
        %v4208 = vpop.f32.mrb[0].mxu0
        %v4209 = vadd.f32 %v4121, %v4208
        %v4210 = vpop.f32.mrb[0].mxu0
        %4211 = vmatprep.mubr.f32.mxu0 0.0
        %4212 = vmatmul.mubr.f32.gmra.mrb[0].mxu0 %v4129
        %v4213 = vpop.f32.mrb[0].mxu0
        %v4214 = vadd.f32 %v4121, %v4213
        %v4215 = vpop.f32.mrb[0].mxu0
        %4216 = vmatprep.mubr.f32.mxu0 0.0
        %4217 = vmatmul.mubr.f32.gmra.mrb[0].mxu0 %v4132
        %v4218 = vpop.f32.mrb[0].mxu0
        %v4219 = vadd.f32 %v4121, %v4218
        %v4220 = vpop.f32.mrb[0].mxu0
        %4221 = vmatprep.mubr.f32.mxu0 0.0
        %4222 = vmatmul.mubr.f32.gmra.mrb[0].mxu0 %v4135
        %v4223 = vpop.f32.mrb[0].mxu0
        %v4224 = vadd.f32 %v4121, %v4223
        %v4225 = vpop.f32.mrb[0].mxu0
        %4226 = vdwg.mxu0
        %v4227 = vld [vmem:[#allocation2 + $0xd40] sm:$0xff]
        %v4228 = vld [vmem:[#allocation2 + $0xd48] sm:$0xff]
        %v4229 = vld [vmem:[#allocation2 + $0xd50] sm:$0xff]
        %v4230 = vld [vmem:[#allocation2 + $0xd58] sm:$0xff]
        %v4232 = vsel %vm450, %v4204, 0
        %v4235 = vsel %vm450, %v4209, 0
        %v4238 = vsel %vm450, %v4214, 0
        %v4241 = vsel %vm450, %v4219, 0
        %v4244 = vsel %vm450, %v4224, 0
        %4246 = vmatprep.subr.mxu0 0.0
        %4247 = vmatpush1.msra.mxu0 %v4227
        %4248 = vmatprep.subr.mxu0 0.0
        %4249 = vmatpush1.msra.mxu0 %v4228
        %4250 = vmatprep.subr.mxu0 0.0
        %4251 = vmatpush1.msra.mxu0 %v4229
        %4252 = vmatprep.subr.mxu0 0.0
        %4253 = vmatpush1.msra.mxu0 %v4230
        %4254 = vmatprep.subr.mxu0 0.0
        %4255 = vmatpush1.msra.mxu0 0.0
        %4256 = vmatprep.subr.mxu0 0.0
        %4257 = vmatpush1.msra.mxu0 0.0
        %4258 = vmatprep.subr.mxu0 0.0
        %4259 = vmatpush1.msra.mxu0 0.0
        %4260 = vmatprep.subr.mxu0 0.0
        %4261 = vmatpush1.msra.mxu0 0.0
        %4262 = vmatprep.subr.mxu0 0.0
        %4263 = vmatpush1.msra.mxu0 0.0
        %4264 = vmatprep.subr.mxu0 0.0
        %4265 = vmatpush1.msra.mxu0 0.0
        %4266 = vmatprep.subr.mxu0 0.0
        %4267 = vmatpush1.msra.mxu0 0.0
        %4268 = vmatprep.subr.mxu0 0.0
        %4269 = vmatpush1.msra.mxu0 0.0
        %4270 = vmatprep.subr.mxu0 0.0
        %4271 = vmatpush1.msra.mxu0 0.0
        %4272 = vmatprep.subr.mxu0 0.0
        %4273 = vmatpush1.msra.mxu0 0.0
        %4274 = vmatprep.subr.mxu0 0.0
        %4275 = vmatpush1.msra.mxu0 0.0
        %4276 = vmatprep.subr.mxu0 0.0
        %4277 = vmatpush1.msra.mxu0 0.0
        %4278 = vmatprep.subr.mxu0 0.0
        %4279 = vmatpush1.msra.mxu0 0.0
        %4280 = vmatprep.subr.mxu0 0.0
        %4281 = vmatpush1.msra.mxu0 0.0
        %4282 = vmatprep.subr.mxu0 0.0
        %4283 = vmatpush1.msra.mxu0 0.0
        %4284 = vmatprep.subr.mxu0 0.0
        %4285 = vmatpush1.msra.mxu0 0.0
        %4286 = vmatprep.subr.mxu0 0.0
        %4287 = vmatpush1.msra.mxu0 0.0
        %4288 = vmatprep.subr.mxu0 0.0
        %4289 = vmatpush1.msra.mxu0 0.0
        %4290 = vmatprep.subr.mxu0 0.0
        %4291 = vmatpush1.msra.mxu0 0.0
        %4292 = vmatprep.subr.mxu0 0.0
        %4293 = vmatpush1.msra.mxu0 0.0
        %4294 = vmatprep.subr.mxu0 0.0
        %4295 = vmatpush1.msra.mxu0 0.0
        %4296 = vmatprep.subr.mxu0 0.0
        %4297 = vmatpush1.msra.mxu0 0.0
        %4298 = vmatprep.subr.mxu0 0.0
        %4299 = vmatpush1.msra.mxu0 0.0
        %4300 = vmatprep.subr.mxu0 0.0
        %4301 = vmatpush1.msra.mxu0 0.0
        %4302 = vmatprep.subr.mxu0 0.0
        %4303 = vmatpush1.msra.mxu0 0.0
        %4304 = vmatprep.subr.mxu0 0.0
        %4305 = vmatpush1.msra.mxu0 0.0
        %4306 = vmatprep.subr.mxu0 0.0
        %4307 = vmatpush1.msra.mxu0 0.0
        %4308 = vmatprep.subr.mxu0 0.0
        %4309 = vmatpush1.msra.mxu0 0.0
        %4310 = vmatprep.mubr.f32.mxu0 0.0
        %4311 = vmatmul.mubr.f32.gmra.mrb[0].mxu0 %v4232
        %v4312 = vpop.f32.mrb[0].mxu0
        %v4313 = vadd.f32 0.0, %v4312
        %v4314 = vpop.f32.mrb[0].mxu0
        %4315 = vmatprep.mubr.f32.mxu0 0.0
        %4316 = vmatmul.mubr.f32.gmra.mrb[0].mxu0 %v4235
        %v4317 = vpop.f32.mrb[0].mxu0
        %v4318 = vadd.f32 0.0, %v4317
        %v4319 = vpop.f32.mrb[0].mxu0
        %4320 = vmatprep.mubr.f32.mxu0 0.0
        %4321 = vmatmul.mubr.f32.gmra.mrb[0].mxu0 %v4238
        %v4322 = vpop.f32.mrb[0].mxu0
        %v4323 = vadd.f32 0.0, %v4322
        %v4324 = vpop.f32.mrb[0].mxu0
        %4325 = vmatprep.mubr.f32.mxu0 0.0
        %4326 = vmatmul.mubr.f32.gmra.mrb[0].mxu0 %v4241
        %v4327 = vpop.f32.mrb[0].mxu0
        %v4328 = vadd.f32 0.0, %v4327
        %v4329 = vpop.f32.mrb[0].mxu0
        %4330 = vmatprep.mubr.f32.mxu0 0.0
        %4331 = vmatmul.mubr.f32.gmra.mrb[0].mxu0 %v4244
        %v4332 = vpop.f32.mrb[0].mxu0
        %v4333 = vadd.f32 0.0, %v4332
        %v4334 = vpop.f32.mrb[0].mxu0
        %4335 = vdwg.mxu0
        %v4336 = vld [vmem:[#allocation2 + $0xcb8] sm:$0xff]
        %v4337 = vld [vmem:[#allocation2 + $0xcc0] sm:$0xff]
        %v4338 = vld [vmem:[#allocation2 + $0xcc8] sm:$0xff]
        %v4339 = vld [vmem:[#allocation2 + $0xcd0] sm:$0x1]
        %v4340 = vrot.slane %v4313, 7
        %v4341 = vrot.slane %v4318, 7
        %v4342 = vrot.slane %v4323, 7
        %v4343 = vrot.slane %v4328, 7
        %v4344 = vrot.slane %v4333, 7
        %v4345 = vsel %vm172, %v4343, %v4344
        %v4346 = vsel %vm172, %v4342, %v4343
        %v4347 = vsel %vm172, %v4341, %v4342
        %v4348 = vsel %vm172, %v4340, %v4341
        %v4349 = vsel %vm172, %v4344, %v4340
        %v4350 = vadd.s32 %v171, 32
        %v4351 = vadd.s32 %v4350, 4294967295
        %vm4352 = vcmp.ge.s32.totalorder %v4351, 0
        %vm4353 = vcmp.lt.s32.totalorder %v180, 40
        %vm4354 = vcmp.lt.s32.totalorder %v181, 40
        %vm4355 = vcmp.lt.s32.totalorder %v182, 40
        %vm4356 = vcmp.lt.s32.totalorder %v183, 40
        %vm4357 = vcmp.lt.s32.totalorder %v4351, 40
        %vm4358 = vmand %vm184, %vm4353
        %vm4359 = vmand %vm185, %vm4354
        %vm4360 = vmand %vm186, %vm4355
        %vm4361 = vmand %vm187, %vm4356
        %vm4362 = vmand %vm4352, %vm4357
        %v4363 = vsel %vm4358, %v4349, 0.0
        %v4364 = vsel %vm4359, %v4348, 0.0
        %v4365 = vsel %vm4360, %v4347, 0.0
        %v4366 = vsel %vm4361, %v4346, 0.0
        %v4367 = vsel %vm4362, %v4345, 0.0
        %v4368 = vrot.slane %v4313, 1
        %v4369 = vrot.slane %v4318, 1
        %v4370 = vrot.slane %v4323, 1
        %v4371 = vrot.slane %v4328, 1
        %v4372 = vrot.slane %v4333, 1
        %v4373 = vsel %vm204, %v4371, %v4372
        %v4374 = vsel %vm204, %v4370, %v4371
        %v4375 = vsel %vm204, %v4369, %v4370
        %v4376 = vsel %vm204, %v4368, %v4369
        %v4377 = vsel %vm204, %v4372, %v4368
        %v4378 = vadd.s32 %v4350, 1
        %vm4379 = vcmp.ge.s32.totalorder %v4378, 0
        %vm4380 = vcmp.lt.s32.totalorder %v209, 40
        %vm4381 = vcmp.lt.s32.totalorder %v210, 40
        %vm4382 = vcmp.lt.s32.totalorder %v211, 40
        %vm4383 = vcmp.lt.s32.totalorder %v212, 40
        %vm4384 = vcmp.lt.s32.totalorder %v4378, 40
        %vm4385 = vmand %vm213, %vm4380
        %vm4386 = vmand %vm214, %vm4381
        %vm4387 = vmand %vm215, %vm4382
        %vm4388 = vmand %vm216, %vm4383
        %vm4389 = vmand %vm4379, %vm4384
        %v4390 = vsel %vm4385, %v4376, 0.0
        %v4391 = vsel %vm4386, %v4375, 0.0
        %v4392 = vsel %vm4387, %v4374, 0.0
        %v4393 = vsel %vm4388, %v4373, 0.0
        %v4394 = vsel %vm4389, %v4377, 0.0
        %4400 = vrot.lane.b32.xlu0 %v4313, 8
        %v4401 = vpop.permute.xlu0 %4400
        %4402 = vrot.lane.b32.xlu0 %v4318, 8
        %v4403 = vpop.permute.xlu0 %4402
        %4404 = vrot.lane.b32.xlu0 %v4323, 8
        %v4405 = vpop.permute.xlu0 %4404
        %4406 = vrot.lane.b32.xlu0 %v4328, 8
        %v4407 = vpop.permute.xlu0 %4406
        %4408 = vrot.lane.b32.xlu0 %v4333, 8
        %v4409 = vpop.permute.xlu0 %4408
        %4420 = vrot.lane.b32.xlu0 %v4390, 16
        %v4421 = vpop.permute.xlu0 %4420
        %4422 = vrot.lane.b32.xlu0 %v4391, 16
        %v4423 = vpop.permute.xlu0 %4422
        %4424 = vrot.lane.b32.xlu0 %v4392, 16
        %v4425 = vpop.permute.xlu0 %4424
        %4426 = vrot.lane.b32.xlu0 %v4393, 16
        %v4427 = vpop.permute.xlu0 %4426
        %4428 = vrot.lane.b32.xlu0 %v4394, 16
        %v4429 = vpop.permute.xlu0 %4428
        %v4435 = vsel %vm266, %v4363, %v4401
        %v4436 = vsel %vm266, %v4364, %v4403
        %v4437 = vsel %vm266, %v4365, %v4405
        %v4438 = vsel %vm266, %v4366, %v4407
        %v4439 = vsel %vm266, %v4367, %v4409
        %v4440 = vsel %vm1021, %v4435, %v4421
        %v4441 = vsel %vm1021, %v4436, %v4423
        %v4442 = vsel %vm1021, %v4437, %v4425
        %v4443 = vsel %vm1021, %v4438, %v4427
        %v4444 = vsel %vm1021, %v4439, %v4429
        %v4445 = vlaneseq
        %v4446 = vshrl.u32 %v4445, 7
        %v4447 = vsub.s32 0, %v4446
        %v4448 = vrot.slane %v4339, %v4447
        %vm4449 = vcmask 195584
        %v4451 = vsel %vm4449, %v4440, 0
        %v4454 = vsel %vm4449, %v4441, 0
        %v4457 = vsel %vm4449, %v4442, 0
        %v4460 = vsel %vm4449, %v4443, 0
        %v4463 = vsel %vm4449, %v4444, 0
        %4465 = vmatprep.subr.mxu0 0.0
        %4466 = vmatpush1.msra.mxu0 %v4336
        %4467 = vmatprep.subr.mxu0 0.0
        %4468 = vmatpush1.msra.mxu0 %v4337
        %4469 = vmatprep.subr.mxu0 0.0
        %4470 = vmatpush1.msra.mxu0 %v4338
        %4471 = vmatprep.subr.mxu0 0.0
        %4472 = vmatpush1.msra.mxu0 0.0
        %4473 = vmatprep.subr.mxu0 0.0
        %4474 = vmatpush1.msra.mxu0 0.0
        %4475 = vmatprep.subr.mxu0 0.0
        %4476 = vmatpush1.msra.mxu0 0.0
        %4477 = vmatprep.subr.mxu0 0.0
        %4478 = vmatpush1.msra.mxu0 0.0
        %4479 = vmatprep.subr.mxu0 0.0
        %4480 = vmatpush1.msra.mxu0 0.0
        %4481 = vmatprep.subr.mxu0 0.0
        %4482 = vmatpush1.msra.mxu0 0.0
        %4483 = vmatprep.subr.mxu0 0.0
        %4484 = vmatpush1.msra.mxu0 0.0
        %4485 = vmatprep.subr.mxu0 0.0
        %4486 = vmatpush1.msra.mxu0 0.0
        %4487 = vmatprep.subr.mxu0 0.0
        %4488 = vmatpush1.msra.mxu0 0.0
        %4489 = vmatprep.subr.mxu0 0.0
        %4490 = vmatpush1.msra.mxu0 0.0
        %4491 = vmatprep.subr.mxu0 0.0
        %4492 = vmatpush1.msra.mxu0 0.0
        %4493 = vmatprep.subr.mxu0 0.0
        %4494 = vmatpush1.msra.mxu0 0.0
        %4495 = vmatprep.subr.mxu0 0.0
        %4496 = vmatpush1.msra.mxu0 0.0
        %4497 = vmatprep.subr.mxu0 0.0
        %4498 = vmatpush1.msra.mxu0 0.0
        %4499 = vmatprep.subr.mxu0 0.0
        %4500 = vmatpush1.msra.mxu0 0.0
        %4501 = vmatprep.subr.mxu0 0.0
        %4502 = vmatpush1.msra.mxu0 0.0
        %4503 = vmatprep.subr.mxu0 0.0
        %4504 = vmatpush1.msra.mxu0 0.0
        %4505 = vmatprep.subr.mxu0 0.0
        %4506 = vmatpush1.msra.mxu0 0.0
        %4507 = vmatprep.subr.mxu0 0.0
        %4508 = vmatpush1.msra.mxu0 0.0
        %4509 = vmatprep.subr.mxu0 0.0
        %4510 = vmatpush1.msra.mxu0 0.0
        %4511 = vmatprep.subr.mxu0 0.0
        %4512 = vmatpush1.msra.mxu0 0.0
        %4513 = vmatprep.subr.mxu0 0.0
        %4514 = vmatpush1.msra.mxu0 0.0
        %4515 = vmatprep.subr.mxu0 0.0
        %4516 = vmatpush1.msra.mxu0 0.0
        %4517 = vmatprep.subr.mxu0 0.0
        %4518 = vmatpush1.msra.mxu0 0.0
        %4519 = vmatprep.subr.mxu0 0.0
        %4520 = vmatpush1.msra.mxu0 0.0
        %4521 = vmatprep.subr.mxu0 0.0
        %4522 = vmatpush1.msra.mxu0 0.0
        %4523 = vmatprep.subr.mxu0 0.0
        %4524 = vmatpush1.msra.mxu0 0.0
        %4525 = vmatprep.subr.mxu0 0.0
        %4526 = vmatpush1.msra.mxu0 0.0
        %4527 = vmatprep.subr.mxu0 0.0
        %4528 = vmatpush1.msra.mxu0 0.0
        %4529 = vmatprep.mubr.f32.mxu0 0.0
        %4530 = vmatmul.mubr.f32.gmra.mrb[0].mxu0 %v4451
        %v4531 = vpop.f32.mrb[0].mxu0
        %v4532 = vadd.f32 %v4448, %v4531
        %v4533 = vpop.f32.mrb[0].mxu0
        %4534 = vmatprep.mubr.f32.mxu0 0.0
        %4535 = vmatmul.mubr.f32.gmra.mrb[0].mxu0 %v4454
        %v4536 = vpop.f32.mrb[0].mxu0
        %v4537 = vadd.f32 %v4448, %v4536
        %v4538 = vpop.f32.mrb[0].mxu0
        %4539 = vmatprep.mubr.f32.mxu0 0.0
        %4540 = vmatmul.mubr.f32.gmra.mrb[0].mxu0 %v4457
        %v4541 = vpop.f32.mrb[0].mxu0
        %v4542 = vadd.f32 %v4448, %v4541
        %v4543 = vpop.f32.mrb[0].mxu0
        %4544 = vmatprep.mubr.f32.mxu0 0.0
        %4545 = vmatmul.mubr.f32.gmra.mrb[0].mxu0 %v4460
        %v4546 = vpop.f32.mrb[0].mxu0
        %v4547 = vadd.f32 %v4448, %v4546
        %v4548 = vpop.f32.mrb[0].mxu0
        %4549 = vmatprep.mubr.f32.mxu0 0.0
        %4550 = vmatmul.mubr.f32.gmra.mrb[0].mxu0 %v4463
        %v4551 = vpop.f32.mrb[0].mxu0
        %v4552 = vadd.f32 %v4448, %v4551
        %v4553 = vpop.f32.mrb[0].mxu0
        %4554 = vdwg.mxu0
        %4555 = vmax.xlane.f32.xlu0 %v4532
        %v4556 = vpop.xlane.xlu0 %4555
        %4557 = vmax.xlane.f32.xlu0 %v4537
        %v4558 = vpop.xlane.xlu0 %4557
        %4559 = vmax.xlane.f32.xlu0 %v4542
        %v4560 = vpop.xlane.xlu0 %4559
        %4561 = vmax.xlane.f32.xlu0 %v4547
        %v4562 = vpop.xlane.xlu0 %4561
        %4563 = vmax.xlane.f32.xlu0 %v4552
        %v4564 = vpop.xlane.xlu0 %4563
        %v4565 = vsub.f32 %v4532, %v4556
        %v4566 = vsub.f32 %v4537, %v4558
        %v4567 = vsub.f32 %v4542, %v4560
        %v4568 = vsub.f32 %v4547, %v4562
        %v4569 = vsub.f32 %v4552, %v4564
        %v4570 = vmul.f32 %v4565, 1.442695
        %v4571 = vpow.pop %v4570
        %v4572 = vmul.f32 %v4566, 1.442695
        %v4573 = vpow.pop %v4572
        %v4574 = vmul.f32 %v4567, 1.442695
        %v4575 = vpow.pop %v4574
        %v4576 = vmul.f32 %v4568, 1.442695
        %v4577 = vpow.pop %v4576
        %v4578 = vmul.f32 %v4569, 1.442695
        %v4579 = vpow.pop %v4578
        %4580 = vadd.xlane.f32.xlu0 %v4571
        %v4581 = vpop.xlane.xlu0 %4580
        %4582 = vadd.xlane.f32.xlu0 %v4573
        %v4583 = vpop.xlane.xlu0 %4582
        %4584 = vadd.xlane.f32.xlu0 %v4575
        %v4585 = vpop.xlane.xlu0 %4584
        %4586 = vadd.xlane.f32.xlu0 %v4577
        %v4587 = vpop.xlane.xlu0 %4586
        %4588 = vadd.xlane.f32.xlu0 %v4579
        %v4589 = vpop.xlane.xlu0 %4588
        %v4590 = vrcp.pop %v4581
        %v4591 = vmul.f32 %v4571, %v4590
        %v4592 = vrcp.pop %v4583
        %v4593 = vmul.f32 %v4573, %v4592
        %v4594 = vrcp.pop %v4585
        %v4595 = vmul.f32 %v4575, %v4594
        %v4596 = vrcp.pop %v4587
        %v4597 = vmul.f32 %v4577, %v4596
        %v4598 = vrcp.pop %v4589
        %v4599 = vmul.f32 %v4579, %v4598
        %4600 = vst [vmem:[%s158] sm:$0xff] %v4591
        %4601 = vst [vmem:[%s158 + $0x8] sm:$0xff] %v4593
        %4602 = vst [vmem:[%s158 + $0x10] sm:$0xff] %v4595
        %4603 = vst [vmem:[%s158 + $0x18] sm:$0xff] %v4597
        %4604 = vst [vmem:[%s158 + $0x20] sm:$0xff] %v4599
        %p4605 = scmp.lt.s32.totalorder %s14, 1
        %s4606 = scalar_select %p4605, %s14, 1
        %s4607 = smul.addr %s4606, 5
        %s4608 = smul.addr %s4607, 8
        %s4609 = scalar_lea.vmem %s2, %s4608
        // Predicated region
        $region33: #{forward.1} parent=27 // pred_check
          %p4610 = pneg %p79
        $region34: #{forward.1} parent=27 // pred_check_branch
          %4612 = sbr.rel (%p4610) target = $region36
        $region35: #{forward.1} parent=27 // pred_region
          _
        $region36: #{forward.1} parent=27 // pred_fallthru
          _
      $region28: #{forward.1} parent=5 // pred_fallthru
        _
      %p4613 = scmp.le.s32.totalorder 2, %s9
      // Predicated region
      $region37: #{forward.1} parent=5 // pred_check
        %p4614 = pneg %p4613
      $region38: #{forward.1} parent=5 // pred_check_branch
        %4616 = sbr.rel (%p4614) target = $region40
      $region39: #{forward.1} parent=5 // pred_region
        %s4617 = ssub.s32 %s9, 2
        // Predicated region
        $region41: #{forward.1} parent=39 // pred_check
          %p4618 = pneg %p85
        $region42: #{forward.1} parent=39 // pred_check_branch
          %4620 = sbr.rel (%p4618) target = $region44
        $region43: #{forward.1} parent=39 // pred_region
          %p4621 = scmp.lt.s32.totalorder %s15, 1
          %s4622 = scalar_select %p4621, %s15, 1
          %s4623 = smul.addr %s4622, 5
          %s4624 = smul.addr %s4623, 8
          %s4625 = scalar_lea.vmem %s2, %s4624
        $region44: #{forward.1} parent=39 // pred_fallthru
          _
      $region40: #{forward.1} parent=5 // pred_fallthru
        _
    $region6: #{forward.1} parent=1 // loop_footer
      %s13 = sadd.s32 1, %s9
    $region7: #{forward.1} parent=1 // loop_footer_branch
      %8 = sbr.rel target = $region3
    $region8: #{forward.1} parent=1 // loop_exit
      _
    %4626 = vsyncpa [#allocation3], 1
    %s4627 = scalar_lea.sflag [#allocation3], 1
    %4628 = vsyncpa %s4627, 1

</llo_original>
